<compile_context>
chip_gen: v5e
topology: v5e:2x2
jax: 0.10.0
libtpu: 0.0.40
codegen_flags: <defaults>
</compile_context>

<pallas_src>
import math

import jax
import jax.numpy as jnp
from jax.experimental import pallas as pl
from jax.experimental.pallas import tpu as pltpu

# ----------------------------- module constants -----------------------------
FEAT_DIM = 32
MAX_NUM_ATOMS = 4                                   # A
MAX_AA_TYPES = 22
MAX_RELPOS = 32
NUM_FUNCS = 3                                       # AngularEncoding default
AA_UNK = 21                                         # AA.UNK
CA_IDX = 1                                          # BBHeavyAtom.CA
FREQ_BANDS = [float(i + 1) for i in range(NUM_FUNCS)] + [1.0 / (i + 1) for i in range(NUM_FUNCS)]
NF2 = 2 * NUM_FUNCS                                 # 6
FEAT_DIHED = 2 * (1 + 2 * NF2)                      # 26
INFEAT = 3 * FEAT_DIM + FEAT_DIHED                  # 122
A2 = MAX_NUM_ATOMS * MAX_NUM_ATOMS                  # 16
N_AAPAIR = MAX_AA_TYPES * MAX_AA_TYPES              # 484
N_RELPOS = 2 * MAX_RELPOS + 1                       # 65
ROW_COLS = 2 + 2 * A2 + 2 + 2 * NF2 + 2             # 50
WO1_K = 128                                         # 122 real rows + 6 zero pad
HALF_PI = math.pi / 2.0


# ------------------------------- Pallas kernel -------------------------------
def pair_embed_kernel(row_ref, tab_aa_ref, tab_rel_ref, w_slab_ref, b_slab_ref, out_ref):
    f32 = jnp.float32
    bf16 = jnp.bfloat16
    F = FEAT_DIM

    rows = row_ref[...]                       # (TP, 50) f32
    TP = rows.shape[0]
    Q = TP // 4

    aa_idx = rows[:, 0:1]                     # exact small-int values, f32-coded
    rel_idx = rows[:, 1:2]
    d2 = rows[:, 2:2 + A2]                    # angstrom^2
    mask_ap = rows[:, 2 + A2:2 + 2 * A2]
    dihed = rows[:, 34:36]
    xf = rows[:, 36:48]                       # dihed pre-scaled by freq bands
    psm = rows[:, 48:49]                      # pair structure mask
    mpair = rows[:, 49:50]                    # pair residue mask

    # --- fused aa-pair embedding + (pre-softplused) dist-coef: one-hot matmul ---
    iota_aa = jax.lax.broadcasted_iota(jnp.int32, (1, N_AAPAIR), 1).astype(f32)
    oh_aa = (aa_idx == iota_aa).astype(bf16)                          # (TP, 484)
    z = jnp.dot(oh_aa, tab_aa_ref[...], preferred_element_type=f32)   # (TP, 48)
    feat_aapair = z[:, :F]
    c = z[:, F:F + A2]                                                # softplus done in wrapper

    iota_rel = jax.lax.broadcasted_iota(jnp.int32, (1, N_RELPOS), 1).astype(f32)
    oh_rel = (rel_idx == iota_rel).astype(bf16)                       # (TP, 65)
    feat_relpos = jnp.dot(oh_rel, tab_rel_ref[...], preferred_element_type=f32)

    # --- packed weight slabs (static sublane slices) ---
    W = w_slab_ref[...]                       # (240, 32) bf16
    wd1 = W[0:16]
    wd2 = W[16:48]
    wo1 = W[48:176]                           # (128, 32), rows 122..127 are zero
    wo2 = W[176:208]
    wo3 = W[208:240]
    B = b_slab_ref[...]                       # (5, 32) f32
    bd1, bd2, bo1, bo2, bo3 = B[0:1], B[1:2], B[2:3], B[3:4], B[4:5]

    # --- distance features: d(nm)^2 = d2(angstrom^2) / 100 ---
    x_dist = (jnp.exp(-c * d2 * 0.01) * mask_ap).astype(bf16)
    h = jnp.maximum(jnp.dot(x_dist, wd1, preferred_element_type=f32) + bd1, 0.0)
    feat_dist = jnp.maximum(
        jnp.dot(h.astype(bf16), wd2, preferred_element_type=f32) + bd2, 0.0) * psm

    # --- angular encoding: one EUP pass, cos(x) = sin(x + pi/2) ---
    s24 = jnp.sin(jnp.concatenate([xf, xf + HALF_PI], axis=-1))       # (TP, 24)
    sin_xf = s24[:, 0:2 * NF2]
    cos_xf = s24[:, 2 * NF2:4 * NF2]

    # --- fused out-MLP layer 1: one lane-dense (TP,128)@(128,32) matmul ---
    feat_all = jnp.concatenate(
        [feat_aapair.astype(bf16), feat_relpos.astype(bf16), feat_dist.astype(bf16),
         (dihed * psm).astype(bf16), (sin_xf * psm).astype(bf16), (cos_xf * psm).astype(bf16),
         jnp.zeros((TP, WO1_K - INFEAT), bf16)], axis=-1)             # (TP, 128)
    h1 = jnp.maximum(jnp.dot(feat_all, wo1, preferred_element_type=f32) + bo1, 0.0)
    h2 = jnp.maximum(jnp.dot(h1.astype(bf16), wo2, preferred_element_type=f32) + bo2, 0.0)
    h3 = (jnp.dot(h2.astype(bf16), wo3, preferred_element_type=f32) + bo3) * mpair

    # --- lane-dense store: four contiguous row-quarters packed into 128 lanes ---
    out_ref[...] = jnp.concatenate(
        [h3[0:Q], h3[Q:2 * Q], h3[2 * Q:3 * Q], h3[3 * Q:4 * Q]], axis=-1)


# --------------------------- plain-JAX glue helpers ---------------------------
def _dihedral_from_four_points(p0, p1, p2, p3):
    v0 = p2 - p1
    v1 = p0 - p1
    v2 = p3 - p2
    u1 = jnp.cross(v0, v1)
    n1 = u1 / jnp.linalg.norm(u1, axis=-1, keepdims=True)
    u2 = jnp.cross(v0, v2)
    n2 = u2 / jnp.linalg.norm(u2, axis=-1, keepdims=True)
    sgn = jnp.sign(jnp.sum(jnp.cross(v1, v2) * v0, axis=-1))
    dihed = sgn * jnp.arccos(jnp.clip(jnp.sum(n1 * n2, axis=-1), -0.999999, 0.999999))
    return jnp.nan_to_num(dihed)


def pairwise_dihedrals(pos_atoms):
    # pos_atoms: (N, L, A, 3) -> (N, L, L, 2) inter-residue phi / psi
    N, L = pos_atoms.shape[:2]
    pos_N = pos_atoms[:, :, 0]
    pos_CA = pos_atoms[:, :, 1]
    pos_C = pos_atoms[:, :, 2]
    b = lambda x: jnp.broadcast_to(x, (N, L, L, 3))
    ir_phi = _dihedral_from_four_points(
        b(pos_C[:, :, None]), b(pos_N[:, None, :]), b(pos_CA[:, None, :]), b(pos_C[:, None, :]))
    ir_psi = _dihedral_from_four_points(
        b(pos_N[:, :, None]), b(pos_N[:, None, :]), b(pos_CA[:, None, :]), b(pos_C[:, None, :]))
    return jnp.stack([ir_phi, ir_psi], axis=-1)


def _softplus(x):
    return jnp.maximum(x, 0.0) + jnp.log1p(jnp.exp(-jnp.abs(x)))


def _angular_encoding(x):
    freq = jnp.asarray(FREQ_BANDS, jnp.float32)
    xe = x[..., None]
    code = jnp.concatenate([xe, jnp.sin(xe * freq), jnp.cos(xe * freq)], axis=-1)
    return code.reshape(*x.shape[:-1], -1)


def _round_up(x, m):
    return (x + m - 1) // m * m


# ------------------------------ forward wrapper ------------------------------
def pair_embedding_forward(params, aa, res_nb, pos_atoms, mask_atoms,
                           structure_mask=None, sequence_mask=None, max_tile=1024):
    N, L = aa.shape
    A = MAX_NUM_ATOMS
    F = FEAT_DIM

    pos_atoms = pos_atoms[:, :, :A].astype(jnp.float32)
    mask_atoms = mask_atoms[:, :, :A].astype(jnp.float32)

    mask_residue = mask_atoms[:, :, CA_IDX]                               # (N, L)
    mask_pair = mask_residue[:, :, None] * mask_residue[:, None, :]       # (N, L, L)

    sm = (structure_mask.astype(jnp.float32) if structure_mask is not None
          else jnp.ones((N, L), jnp.float32))
    psm = sm[:, :, None] * sm[:, None, :]                                 # (N, L, L)

    if sequence_mask is not None:
        aa = jnp.where(sequence_mask, aa, jnp.full_like(aa, AA_UNK))
    aa = aa.astype(jnp.int32)
    res_nb = res_nb.astype(jnp.int32)

    aa_pair_idx = aa[:, :, None] * MAX_AA_TYPES + aa[:, None, :]          # (N, L, L)
    relpos_idx = jnp.clip(res_nb[:, :, None] - res_nb[:, None, :],
                          -MAX_RELPOS, MAX_RELPOS) + MAX_RELPOS           # (N, L, L)

    # pre-reduced pairwise squared distances (angstrom^2) and atom-pair mask
    diff = pos_atoms[:, :, None, :, None, :] - pos_atoms[:, None, :, None, :, :]
    d2 = jnp.sum(diff * diff, axis=-1).reshape(N, L, L, A2)               # (N, L, L, 16)
    mask_ap = (mask_atoms[:, :, None, :, None] *
               mask_atoms[:, None, :, None, :]).reshape(N, L, L, A2)      # (N, L, L, 16)

    # TODO(synk): the dihedral extraction (cross/arccos/sign) stays in plain JAX;
    # the sin/cos angular encoding itself runs in-kernel on the pre-scaled angles.
    dihed = pairwise_dihedrals(pos_atoms)                                 # (N, L, L, 2)
    freq = jnp.asarray(FREQ_BANDS, jnp.float32)
    xf = (dihed[..., None] * freq).reshape(N, L, L, 2 * NF2)              # (N, L, L, 12)

    P = N * L * L
    rows = jnp.concatenate(
        [aa_pair_idx[..., None].astype(jnp.float32),
         relpos_idx[..., None].astype(jnp.float32),
         d2, mask_ap, dihed, xf, psm[..., None], mask_pair[..., None]],
        axis=-1).reshape(P, ROW_COLS).astype(jnp.float32)                 # (P, 50)

    # --- tile selection: multiples of 128, even grid (>1) for v7x megacore ---
    max_tile = max(128, (max_tile // 128) * 128)
    TP = min(max_tile, _round_up(P, 128))
    num_tiles = -(-P // TP)
    if num_tiles > 1 and num_tiles % 2 == 1:
        num_tiles += 1                                # keep both TensorCores busy on v7x
    P_pad = num_tiles * TP
    if P_pad != P:
        rows = jnp.pad(rows, ((0, P_pad - P), (0, 0)))   # padded rows carry mpair = 0

    # --- weight preparation (softplus hoisted, bf16 slabs, fused/permuted wo1) ---
    tab_aa = jnp.concatenate([params["w_aa"], _softplus(params["w_coef"])],
                             axis=1).astype(jnp.bfloat16)                 # (484, 48)
    tab_rel = params["w_rel"].astype(jnp.bfloat16)                        # (65, 32)

    # reorder wo1's 26 dihedral rows to [x0, x1, sin(x0 f), sin(x1 f), cos(x0 f), cos(x1 f)]
    wo1 = params["wo1"]                                                   # (122, 32)
    perm = ([0, 1 + 2 * NF2]
            + list(range(1, 1 + NF2)) + list(range(2 + 2 * NF2, 2 + 3 * NF2))
            + list(range(1 + NF2, 1 + 2 * NF2)) + list(range(2 + 3 * NF2, 2 + 4 * NF2)))
    wo1_dihed = wo1[3 * F:][jnp.asarray(perm, jnp.int32)]
    wo1_re = jnp.concatenate(
        [wo1[:3 * F], wo1_dihed, jnp.zeros((WO1_K - INFEAT, F), jnp.float32)], axis=0)  # (128, 32)

    w_slab = jnp.concatenate(
        [params["wd1"], params["wd2"], wo1_re, params["wo2"], params["wo3"]],
        axis=0).astype(jnp.bfloat16)                                      # (240, 32)
    b_slab = jnp.concatenate(
        [params["bd1"], params["bd2"], params["bo1"], params["bo2"], params["bo3"]],
        axis=0).astype(jnp.float32)                                       # (5, 32)

    def full_spec(arr):
        return pl.BlockSpec(arr.shape, lambda r: (0,) * arr.ndim)

    Q = TP // 4
    out = pl.pallas_call(
        pair_embed_kernel,
        out_shape=jax.ShapeDtypeStruct((P_pad // 4, 128), jnp.float32),
        grid_spec=pltpu.PrefetchScalarGridSpec(
            num_scalar_prefetch=0,
            grid=(num_tiles,),
            in_specs=[pl.BlockSpec((TP, ROW_COLS), lambda r: (r, 0)),
                      full_spec(tab_aa), full_spec(tab_rel),
                      full_spec(w_slab), full_spec(b_slab)],
            out_specs=pl.BlockSpec((Q, 128), lambda r: (r, 0))),
        compiler_params=pltpu.CompilerParams(dimension_semantics=("parallel",)),
    )(rows, tab_aa, tab_rel, w_slab, b_slab)

    # undo the lane-dense packing: (num_tiles*Q, 128) -> (P_pad, 32)
    out = out.reshape(num_tiles, Q, 4, F).transpose(0, 2, 1, 3).reshape(P_pad, F)
    return out[:P].reshape(N, L, L, F)


# --------------------------- pure-JAX reference (check) ---------------------------
def pair_embedding_reference(params, aa, res_nb, pos_atoms, mask_atoms,
                             structure_mask, sequence_mask):
    N, L = aa.shape
    A = MAX_NUM_ATOMS
    pos_atoms = pos_atoms[:, :, :A].astype(jnp.float32)
    mask_atoms = mask_atoms[:, :, :A].astype(jnp.float32)
    mask_residue = mask_atoms[:, :, CA_IDX]
    mask_pair = mask_residue[:, :, None] * mask_residue[:, None, :]
    sm = structure_mask.astype(jnp.float32)
    psm = sm[:, :, None] * sm[:, None, :]
    aa = jnp.where(sequence_mask, aa, jnp.full_like(aa, AA_UNK)).astype(jnp.int32)
    aa_pair = aa[:, :, None] * MAX_AA_TYPES + aa[:, None, :]
    feat_aapair = params["w_aa"][aa_pair]
    relpos = jnp.clip(res_nb[:, :, None] - res_nb[:, None, :], -MAX_RELPOS, MAX_RELPOS)
    feat_relpos = params["w_rel"][relpos + MAX_RELPOS]
    d = jnp.linalg.norm(pos_atoms[:, :, None, :, None] - pos_atoms[:, None, :, None, :],
                        axis=-1) / 10.0
    d = d.reshape(N, L, L, -1)
    c = _softplus(params["w_coef"][aa_pair])
    d_gauss = jnp.exp(-c * d ** 2)
    mask_ap = (mask_atoms[:, :, None, :, None] * mask_atoms[:, None, :, None, :]).reshape(N, L, L, -1)
    x = d_gauss * mask_ap
    h = jnp.maximum(x @ params["wd1"] + params["bd1"], 0.0)
    feat_dist = jnp.maximum(h @ params["wd2"] + params["bd2"], 0.0) * psm[..., None]
    dihed = pairwise_dihedrals(pos_atoms)
    feat_dihed = _angular_encoding(dihed) * psm[..., None]
    feat_all = jnp.concatenate([feat_aapair, feat_relpos, feat_dist, feat_dihed], axis=-1)
    h = jnp.maximum(feat_all @ params["wo1"] + params["bo1"], 0.0)
    h = jnp.maximum(h @ params["wo2"] + params["bo2"], 0.0)
    h = h @ params["wo3"] + params["bo3"]
    return h * mask_pair[..., None]


# ------------------------------- parameter init -------------------------------
def init_params(key, feat_dim=FEAT_DIM, A=MAX_NUM_ATOMS):
    ks = jax.random.split(key, 7)

    def linear(k, fan_in, fan_out):
        kw, kb = jax.random.split(k)
        s = 1.0 / jnp.sqrt(fan_in)
        w = jax.random.uniform(kw, (fan_in, fan_out), jnp.float32, -s, s)
        b = jax.random.uniform(kb, (1, fan_out), jnp.float32, -s, s)
        return w, b

    w_aa = jax.random.normal(ks[0], (MAX_AA_TYPES * MAX_AA_TYPES, feat_dim), jnp.float32)
    w_rel = jax.random.normal(ks[1], (2 * MAX_RELPOS + 1, feat_dim), jnp.float32)
    w_coef = jnp.zeros((MAX_AA_TYPES * MAX_AA_TYPES, A * A), jnp.float32)  # nn.init.zeros_
    wd1, bd1 = linear(ks[2], A * A, feat_dim)
    wd2, bd2 = linear(ks[3], feat_dim, feat_dim)
    wo1, bo1 = linear(ks[4], INFEAT, feat_dim)
    wo2, bo2 = linear(ks[5], feat_dim, feat_dim)
    wo3, bo3 = linear(ks[6], feat_dim, feat_dim)
    return dict(w_aa=w_aa, w_rel=w_rel, w_coef=w_coef,
                wd1=wd1, bd1=bd1, wd2=wd2, bd2=bd2,
                wo1=wo1, bo1=bo1, wo2=wo2, bo2=bo2, wo3=wo3, bo3=bo3)


# ------------------------------------ main ------------------------------------
if __name__ == "__main__":
    key = jax.random.PRNGKey(0)
    kp, ka, kx, km, ksq = jax.random.split(key, 5)

    N, L, A = 2, 8, MAX_NUM_ATOMS
    params = init_params(kp)

    aa = jax.random.randint(ka, (N, L), 0, 20)                       # (N, L)
    res_nb = jnp.broadcast_to(jnp.arange(1, L + 1, dtype=jnp.int32), (N, L))
    pos_atoms = jax.random.normal(kx, (N, L, A, 3), jnp.float32) * 3.0
    mask_atoms = jax.random.bernoulli(km, 0.9, (N, L, A))
    structure_mask = jnp.ones((N, L), jnp.bool_)
    sequence_mask = jax.random.bernoulli(ksq, 0.8, (N, L))

    out = pair_embedding_forward(params, aa, res_nb, pos_atoms, mask_atoms,
                                 structure_mask, sequence_mask)
    jax.block_until_ready(out)

    ref = pair_embedding_reference(params, aa, res_nb, pos_atoms, mask_atoms,
                                   structure_mask, sequence_mask)
    assert out.shape == (N, L, L, FEAT_DIM)
    assert bool(jnp.allclose(out, ref, atol=5e-2, rtol=5e-2))

    print("KERNEL_OK")
</pallas_src>

<mosaic_0001>
module attributes {stable_mosaic.version = 11 : i64} {
  func.func @pair_embed_kernel(%arg0: i32, %arg1: memref<128x50xf32, #tpu.memory_space<vmem>>, %arg2: memref<484x48xbf16, #tpu.memory_space<vmem>>, %arg3: memref<65x32xbf16, #tpu.memory_space<vmem>>, %arg4: memref<240x32xbf16, #tpu.memory_space<vmem>>, %arg5: memref<5x32xf32, #tpu.memory_space<vmem>>, %arg6: memref<32x128xf32, #tpu.memory_space<vmem>>) attributes {dimension_semantics = [#tpu.dimension_semantics<parallel>], iteration_bounds = array<i64: 1>, scalar_prefetch = 0 : i64, scratch_operands = 0 : i64, tpu.core_type = #tpu.core_type<tc>, window_params = [{transform_indices = @transform_0, window_bounds = array<i64: 128, 50>}, {pipeline_mode = #tpu.pipeline_mode<synchronous>, transform_indices = @transform_1, window_bounds = array<i64: 484, 48>}, {pipeline_mode = #tpu.pipeline_mode<synchronous>, transform_indices = @transform_2, window_bounds = array<i64: 65, 32>}, {pipeline_mode = #tpu.pipeline_mode<synchronous>, transform_indices = @transform_3, window_bounds = array<i64: 240, 32>}, {pipeline_mode = #tpu.pipeline_mode<synchronous>, transform_indices = @transform_4, window_bounds = array<i64: 5, 32>}, {transform_indices = @transform_5, window_bounds = array<i64: 32, 128>}]} {
    %c0 = arith.constant 0 : index
    %c0_0 = arith.constant 0 : index
    %0 = vector.load %arg1[%c0, %c0_0] : memref<128x50xf32, #tpu.memory_space<vmem>>, vector<128x50xf32>
    %1 = vector.extract_strided_slice %0 {offsets = [0, 0], sizes = [128, 1], strides = [1, 1]} : vector<128x50xf32> to vector<128x1xf32>
    %2 = vector.extract_strided_slice %0 {offsets = [0, 1], sizes = [128, 1], strides = [1, 1]} : vector<128x50xf32> to vector<128x1xf32>
    %3 = vector.extract_strided_slice %0 {offsets = [0, 2], sizes = [128, 16], strides = [1, 1]} : vector<128x50xf32> to vector<128x16xf32>
    %4 = vector.extract_strided_slice %0 {offsets = [0, 18], sizes = [128, 16], strides = [1, 1]} : vector<128x50xf32> to vector<128x16xf32>
    %5 = vector.extract_strided_slice %0 {offsets = [0, 34], sizes = [128, 2], strides = [1, 1]} : vector<128x50xf32> to vector<128x2xf32>
    %6 = vector.extract_strided_slice %0 {offsets = [0, 36], sizes = [128, 12], strides = [1, 1]} : vector<128x50xf32> to vector<128x12xf32>
    %7 = vector.extract_strided_slice %0 {offsets = [0, 48], sizes = [128, 1], strides = [1, 1]} : vector<128x50xf32> to vector<128x1xf32>
    %8 = vector.extract_strided_slice %0 {offsets = [0, 49], sizes = [128, 1], strides = [1, 1]} : vector<128x50xf32> to vector<128x1xf32>
    %9 = tpu.iota {dimensions = array<i32: 1>} : vector<1x484xi32>
    %10 = arith.sitofp %9 : vector<1x484xi32> to vector<1x484xf32>
    %11 = vector.broadcast %1 : vector<128x1xf32> to vector<128x484xf32>
    %12 = vector.broadcast %10 : vector<1x484xf32> to vector<128x484xf32>
    %13 = arith.cmpf oeq, %11, %12 : vector<128x484xf32>
    %14 = arith.extui %13 : vector<128x484xi1> to vector<128x484xi32>
    %15 = arith.sitofp %14 : vector<128x484xi32> to vector<128x484xf32>
    %16 = arith.truncf %15 : vector<128x484xf32> to vector<128x484xbf16>
    %c0_1 = arith.constant 0 : index
    %c0_2 = arith.constant 0 : index
    %17 = vector.load %arg2[%c0_1, %c0_2] : memref<484x48xbf16, #tpu.memory_space<vmem>>, vector<484x48xbf16>
    %cst = arith.constant dense<0.000000e+00> : vector<128x48xf32>
    %18 = tpu.matmul %16, %17, %cst {dimension_numbers = #tpu.dot_dimension_numbers<[1], [0], [0], [1], [0, 0, 1, 1], [], []>} : vector<128x484xbf16>, vector<484x48xbf16>, vector<128x48xf32> -> vector<128x48xf32>
    %19 = vector.extract_strided_slice %18 {offsets = [0, 0], sizes = [128, 32], strides = [1, 1]} : vector<128x48xf32> to vector<128x32xf32>
    %20 = vector.extract_strided_slice %18 {offsets = [0, 32], sizes = [128, 16], strides = [1, 1]} : vector<128x48xf32> to vector<128x16xf32>
    %21 = tpu.iota {dimensions = array<i32: 1>} : vector<1x65xi32>
    %22 = arith.sitofp %21 : vector<1x65xi32> to vector<1x65xf32>
    %23 = vector.broadcast %2 : vector<128x1xf32> to vector<128x65xf32>
    %24 = vector.broadcast %22 : vector<1x65xf32> to vector<128x65xf32>
    %25 = arith.cmpf oeq, %23, %24 : vector<128x65xf32>
    %26 = arith.extui %25 : vector<128x65xi1> to vector<128x65xi32>
    %27 = arith.sitofp %26 : vector<128x65xi32> to vector<128x65xf32>
    %28 = arith.truncf %27 : vector<128x65xf32> to vector<128x65xbf16>
    %c0_3 = arith.constant 0 : index
    %c0_4 = arith.constant 0 : index
    %29 = vector.load %arg3[%c0_3, %c0_4] : memref<65x32xbf16, #tpu.memory_space<vmem>>, vector<65x32xbf16>
    %cst_5 = arith.constant dense<0.000000e+00> : vector<128x32xf32>
    %30 = tpu.matmul %28, %29, %cst_5 {dimension_numbers = #tpu.dot_dimension_numbers<[1], [0], [0], [1], [0, 0, 1, 1], [], []>} : vector<128x65xbf16>, vector<65x32xbf16>, vector<128x32xf32> -> vector<128x32xf32>
    %c0_6 = arith.constant 0 : index
    %c0_7 = arith.constant 0 : index
    %31 = vector.load %arg4[%c0_6, %c0_7] : memref<240x32xbf16, #tpu.memory_space<vmem>>, vector<240x32xbf16>
    %32 = vector.extract_strided_slice %31 {offsets = [0, 0], sizes = [16, 32], strides = [1, 1]} : vector<240x32xbf16> to vector<16x32xbf16>
    %33 = vector.extract_strided_slice %31 {offsets = [16, 0], sizes = [32, 32], strides = [1, 1]} : vector<240x32xbf16> to vector<32x32xbf16>
    %34 = vector.extract_strided_slice %31 {offsets = [48, 0], sizes = [128, 32], strides = [1, 1]} : vector<240x32xbf16> to vector<128x32xbf16>
    %35 = vector.extract_strided_slice %31 {offsets = [176, 0], sizes = [32, 32], strides = [1, 1]} : vector<240x32xbf16> to vector<32x32xbf16>
    %36 = vector.extract_strided_slice %31 {offsets = [208, 0], sizes = [32, 32], strides = [1, 1]} : vector<240x32xbf16> to vector<32x32xbf16>
    %c0_8 = arith.constant 0 : index
    %c0_9 = arith.constant 0 : index
    %37 = vector.load %arg5[%c0_8, %c0_9] : memref<5x32xf32, #tpu.memory_space<vmem>>, vector<5x32xf32>
    %38 = vector.extract_strided_slice %37 {offsets = [0, 0], sizes = [1, 32], strides = [1, 1]} : vector<5x32xf32> to vector<1x32xf32>
    %39 = vector.extract_strided_slice %37 {offsets = [1, 0], sizes = [1, 32], strides = [1, 1]} : vector<5x32xf32> to vector<1x32xf32>
    %40 = vector.extract_strided_slice %37 {offsets = [2, 0], sizes = [1, 32], strides = [1, 1]} : vector<5x32xf32> to vector<1x32xf32>
    %41 = vector.extract_strided_slice %37 {offsets = [3, 0], sizes = [1, 32], strides = [1, 1]} : vector<5x32xf32> to vector<1x32xf32>
    %42 = vector.extract_strided_slice %37 {offsets = [4, 0], sizes = [1, 32], strides = [1, 1]} : vector<5x32xf32> to vector<1x32xf32>
    %cst_10 = arith.constant 0.000000e+00 : f32
    %43 = vector.broadcast %cst_10 : f32 to vector<128x16xf32>
    %44 = arith.subf %43, %20 : vector<128x16xf32>
    %45 = arith.mulf %44, %3 : vector<128x16xf32>
    %cst_11 = arith.constant 0.00999999977 : f32
    %46 = vector.broadcast %cst_11 : f32 to vector<128x16xf32>
    %47 = arith.mulf %45, %46 : vector<128x16xf32>
    %48 = math.exp %47 : vector<128x16xf32>
    %49 = arith.mulf %48, %4 : vector<128x16xf32>
    %50 = arith.truncf %49 : vector<128x16xf32> to vector<128x16xbf16>
    %cst_12 = arith.constant dense<0.000000e+00> : vector<128x32xf32>
    %51 = tpu.matmul %50, %32, %cst_12 {dimension_numbers = #tpu.dot_dimension_numbers<[1], [0], [0], [1], [0, 0, 1, 1], [], []>} : vector<128x16xbf16>, vector<16x32xbf16>, vector<128x32xf32> -> vector<128x32xf32>
    %52 = vector.broadcast %38 : vector<1x32xf32> to vector<128x32xf32>
    %53 = arith.addf %51, %52 : vector<128x32xf32>
    %cst_13 = arith.constant 0.000000e+00 : f32
    %54 = vector.broadcast %cst_13 : f32 to vector<128x32xf32>
    %55 = arith.maximumf %53, %54 : vector<128x32xf32>
    %56 = arith.truncf %55 : vector<128x32xf32> to vector<128x32xbf16>
    %cst_14 = arith.constant dense<0.000000e+00> : vector<128x32xf32>
    %57 = tpu.matmul %56, %33, %cst_14 {dimension_numbers = #tpu.dot_dimension_numbers<[1], [0], [0], [1], [0, 0, 1, 1], [], []>} : vector<128x32xbf16>, vector<32x32xbf16>, vector<128x32xf32> -> vector<128x32xf32>
    %58 = vector.broadcast %39 : vector<1x32xf32> to vector<128x32xf32>
    %59 = arith.addf %57, %58 : vector<128x32xf32>
    %cst_15 = arith.constant 0.000000e+00 : f32
    %60 = vector.broadcast %cst_15 : f32 to vector<128x32xf32>
    %61 = arith.maximumf %59, %60 : vector<128x32xf32>
    %62 = vector.broadcast %7 : vector<128x1xf32> to vector<128x32xf32>
    %63 = arith.mulf %61, %62 : vector<128x32xf32>
    %cst_16 = arith.constant 1.57079637 : f32
    %64 = vector.broadcast %cst_16 : f32 to vector<128x12xf32>
    %65 = arith.addf %6, %64 : vector<128x12xf32>
    %66 = tpu.concatenate %6, %65 in 1 : vector<128x12xf32>, vector<128x12xf32> -> vector<128x24xf32>
    %67 = math.sin %66 : vector<128x24xf32>
    %68 = vector.extract_strided_slice %67 {offsets = [0, 0], sizes = [128, 12], strides = [1, 1]} : vector<128x24xf32> to vector<128x12xf32>
    %69 = vector.extract_strided_slice %67 {offsets = [0, 12], sizes = [128, 12], strides = [1, 1]} : vector<128x24xf32> to vector<128x12xf32>
    %70 = arith.truncf %19 : vector<128x32xf32> to vector<128x32xbf16>
    %71 = arith.truncf %30 : vector<128x32xf32> to vector<128x32xbf16>
    %72 = arith.truncf %63 : vector<128x32xf32> to vector<128x32xbf16>
    %73 = vector.broadcast %7 : vector<128x1xf32> to vector<128x2xf32>
    %74 = arith.mulf %5, %73 : vector<128x2xf32>
    %75 = arith.truncf %74 : vector<128x2xf32> to vector<128x2xbf16>
    %76 = vector.broadcast %7 : vector<128x1xf32> to vector<128x12xf32>
    %77 = arith.mulf %68, %76 : vector<128x12xf32>
    %78 = arith.truncf %77 : vector<128x12xf32> to vector<128x12xbf16>
    %79 = vector.broadcast %7 : vector<128x1xf32> to vector<128x12xf32>
    %80 = arith.mulf %69, %79 : vector<128x12xf32>
    %81 = arith.truncf %80 : vector<128x12xf32> to vector<128x12xbf16>
    %cst_17 = arith.constant 0.000000e+00 : bf16
    %82 = vector.broadcast %cst_17 : bf16 to vector<128x6xbf16>
    %83 = tpu.concatenate %70, %71, %72, %75, %78, %81, %82 in 1 : vector<128x32xbf16>, vector<128x32xbf16>, vector<128x32xbf16>, vector<128x2xbf16>, vector<128x12xbf16>, vector<128x12xbf16>, vector<128x6xbf16> -> vector<128x128xbf16>
    %cst_18 = arith.constant dense<0.000000e+00> : vector<128x32xf32>
    %84 = tpu.matmul %83, %34, %cst_18 {dimension_numbers = #tpu.dot_dimension_numbers<[1], [0], [0], [1], [0, 0, 1, 1], [], []>} : vector<128x128xbf16>, vector<128x32xbf16>, vector<128x32xf32> -> vector<128x32xf32>
    %85 = vector.broadcast %40 : vector<1x32xf32> to vector<128x32xf32>
    %86 = arith.addf %84, %85 : vector<128x32xf32>
    %cst_19 = arith.constant 0.000000e+00 : f32
    %87 = vector.broadcast %cst_19 : f32 to vector<128x32xf32>
    %88 = arith.maximumf %86, %87 : vector<128x32xf32>
    %89 = arith.truncf %88 : vector<128x32xf32> to vector<128x32xbf16>
    %cst_20 = arith.constant dense<0.000000e+00> : vector<128x32xf32>
    %90 = tpu.matmul %89, %35, %cst_20 {dimension_numbers = #tpu.dot_dimension_numbers<[1], [0], [0], [1], [0, 0, 1, 1], [], []>} : vector<128x32xbf16>, vector<32x32xbf16>, vector<128x32xf32> -> vector<128x32xf32>
    %91 = vector.broadcast %41 : vector<1x32xf32> to vector<128x32xf32>
    %92 = arith.addf %90, %91 : vector<128x32xf32>
    %cst_21 = arith.constant 0.000000e+00 : f32
    %93 = vector.broadcast %cst_21 : f32 to vector<128x32xf32>
    %94 = arith.maximumf %92, %93 : vector<128x32xf32>
    %95 = arith.truncf %94 : vector<128x32xf32> to vector<128x32xbf16>
    %cst_22 = arith.constant dense<0.000000e+00> : vector<128x32xf32>
    %96 = tpu.matmul %95, %36, %cst_22 {dimension_numbers = #tpu.dot_dimension_numbers<[1], [0], [0], [1], [0, 0, 1, 1], [], []>} : vector<128x32xbf16>, vector<32x32xbf16>, vector<128x32xf32> -> vector<128x32xf32>
    %97 = vector.broadcast %42 : vector<1x32xf32> to vector<128x32xf32>
    %98 = arith.addf %96, %97 : vector<128x32xf32>
    %99 = vector.broadcast %8 : vector<128x1xf32> to vector<128x32xf32>
    %100 = arith.mulf %98, %99 : vector<128x32xf32>
    %101 = vector.extract_strided_slice %100 {offsets = [0, 0], sizes = [32, 32], strides = [1, 1]} : vector<128x32xf32> to vector<32x32xf32>
    %102 = vector.extract_strided_slice %100 {offsets = [32, 0], sizes = [32, 32], strides = [1, 1]} : vector<128x32xf32> to vector<32x32xf32>
    %103 = vector.extract_strided_slice %100 {offsets = [64, 0], sizes = [32, 32], strides = [1, 1]} : vector<128x32xf32> to vector<32x32xf32>
    %104 = vector.extract_strided_slice %100 {offsets = [96, 0], sizes = [32, 32], strides = [1, 1]} : vector<128x32xf32> to vector<32x32xf32>
    %105 = tpu.concatenate %101, %102, %103, %104 in 1 : vector<32x32xf32>, vector<32x32xf32>, vector<32x32xf32>, vector<32x32xf32> -> vector<32x128xf32>
    %c0_23 = arith.constant 0 : index
    %c0_24 = arith.constant 0 : index
    %106 = vector.load %arg6[%c0_23, %c0_24] : memref<32x128xf32, #tpu.memory_space<vmem>>, vector<32x128xf32>
    tpu.vector_store %arg6[%c0_23, %c0_24], %105 {strides = array<i32>} : memref<32x128xf32, #tpu.memory_space<vmem>>, vector<32x128xf32>,
    return
  }
  func.func @transform_0(%arg0: i32) -> (i32, i32) {
    %c0_i32 = arith.constant 0 : i32
    %c0_i32_0 = arith.constant 0 : i32
    return %arg0, %c0_i32 : i32, i32
  }
  func.func @transform_1(%arg0: i32) -> (i32, i32) {
    %c0_i32 = arith.constant 0 : i32
    %c0_i32_0 = arith.constant 0 : i32
    %c0_i32_1 = arith.constant 0 : i32
    return %c0_i32, %c0_i32_0 : i32, i32
  }
  func.func @transform_2(%arg0: i32) -> (i32, i32) {
    %c0_i32 = arith.constant 0 : i32
    %c0_i32_0 = arith.constant 0 : i32
    %c0_i32_1 = arith.constant 0 : i32
    return %c0_i32, %c0_i32_0 : i32, i32
  }
  func.func @transform_3(%arg0: i32) -> (i32, i32) {
    %c0_i32 = arith.constant 0 : i32
    %c0_i32_0 = arith.constant 0 : i32
    %c0_i32_1 = arith.constant 0 : i32
    return %c0_i32, %c0_i32_0 : i32, i32
  }
  func.func @transform_4(%arg0: i32) -> (i32, i32) {
    %c0_i32 = arith.constant 0 : i32
    %c0_i32_0 = arith.constant 0 : i32
    %c0_i32_1 = arith.constant 0 : i32
    return %c0_i32, %c0_i32_0 : i32, i32
  }
  func.func @transform_5(%arg0: i32) -> (i32, i32) {
    %c0_i32 = arith.constant 0 : i32
    %c0_i32_0 = arith.constant 0 : i32
    return %arg0, %c0_i32 : i32, i32
  }
}

</mosaic_0001>

<llo_original>
// kernel: tpu_custom_call.1
$region0: #{tpu_custom_call.1}
  #allocation0 [shape = 'u32[]', space=smem, size = 0x4, offset = 0x4, fixed_abs, tag = 'smem constant byte address 0x4 - core index']
  #allocation1 [shape = 'u32[72,128]{1,0:T(1,128)}', space=vmem, size = 0x9000, scoped, tag = 'internal scratch']
  %s0 = inlined_call_operand.vmem [shape: f32[128,50], index: 0, kind: input, shape index: {}]
  %s1 = inlined_call_operand.vmem [shape: bf16[484,48], index: 1, kind: input, shape index: {}]
  %s2 = inlined_call_operand.vmem [shape: bf16[65,32], index: 2, kind: input, shape index: {}]
  %s3 = inlined_call_operand.vmem [shape: bf16[240,32], index: 3, kind: input, shape index: {}]
  %s4 = inlined_call_operand.vmem [shape: f32[5,32], index: 4, kind: input, shape index: {}]
  %s5 = inlined_call_operand.hbm [shape: f32[32,128], index: 5, kind: output, shape index: {}]
  %s6 = sld [smem:[#allocation0]]
  $region30: #{tpu_custom_call.1} parent=0
    _
  %s8 = ssub.s32 1, %s6
  %s9 = scalar_select 0, %s8, %s6
  $region1: #{tpu_custom_call.1} parent=0
    #allocation2 [shape = 'u8[16384]{0}', space=vmem, size = 0x4000, scoped, tag = 'output window, operand 0, single buffered']
    #allocation3 [shape = 's32[1]{0}', space=sflag, size = 0x4, scoped, tag = 'scoped memory for tpu_custom_call.1']
    %10 = vsyncpa [#allocation3], 0
    // Predicated region
    $region2: #{tpu_custom_call.1} parent=1 // pred_check
      _
    $region3: #{tpu_custom_call.1} parent=1 // pred_check_branch
      %12 = sbr.rel (0) target = $region5
    $region4: #{tpu_custom_call.1} parent=1 // pred_region
      _
    $region5: #{tpu_custom_call.1} parent=1 // pred_fallthru
      _
    // Predicated region
    $region6: #{tpu_custom_call.1} parent=1 // pred_check
      _
    $region7: #{tpu_custom_call.1} parent=1 // pred_check_branch
      %14 = sbr.rel (0) target = $region9
    $region8: #{tpu_custom_call.1} parent=1 // pred_region
      _
    $region9: #{tpu_custom_call.1} parent=1 // pred_fallthru
      _
    // Predicated region
    $region10: #{tpu_custom_call.1} parent=1 // pred_check
      _
    $region11: #{tpu_custom_call.1} parent=1 // pred_check_branch
      %16 = sbr.rel (0) target = $region13
    $region12: #{tpu_custom_call.1} parent=1 // pred_region
      _
    $region13: #{tpu_custom_call.1} parent=1 // pred_fallthru
      _
    // Predicated region
    $region14: #{tpu_custom_call.1} parent=1 // pred_check
      _
    $region15: #{tpu_custom_call.1} parent=1 // pred_check_branch
      %18 = sbr.rel (0) target = $region17
    $region16: #{tpu_custom_call.1} parent=1 // pred_region
      _
    $region17: #{tpu_custom_call.1} parent=1 // pred_fallthru
      _
    // Predicated region
    $region18: #{tpu_custom_call.1} parent=1 // pred_check
      _
    $region19: #{tpu_custom_call.1} parent=1 // pred_check_branch
      %20 = sbr.rel (0) target = $region21
    $region20: #{tpu_custom_call.1} parent=1 // pred_region
      _
    $region21: #{tpu_custom_call.1} parent=1 // pred_fallthru
      _
    %v22 = vld [vmem:[%s0] sm:$0xff]
    %v23 = vld [vmem:[%s0 + $0x8] sm:$0xff]
    %v24 = vld [vmem:[%s0 + $0x10] sm:$0xff]
    %v25 = vld [vmem:[%s0 + $0x18] sm:$0xff]
    %v26 = vld [vmem:[%s0 + $0x20] sm:$0xff]
    %v27 = vld [vmem:[%s0 + $0x28] sm:$0xff]
    %v28 = vld [vmem:[%s0 + $0x30] sm:$0xff]
    %v29 = vld [vmem:[%s0 + $0x38] sm:$0xff]
    %v30 = vld [vmem:[%s0 + $0x40] sm:$0xff]
    %v31 = vld [vmem:[%s0 + $0x48] sm:$0xff]
    %v32 = vld [vmem:[%s0 + $0x50] sm:$0xff]
    %v33 = vld [vmem:[%s0 + $0x58] sm:$0xff]
    %v34 = vld [vmem:[%s0 + $0x60] sm:$0xff]
    %v35 = vld [vmem:[%s0 + $0x68] sm:$0xff]
    %v36 = vld [vmem:[%s0 + $0x70] sm:$0xff]
    %v37 = vld [vmem:[%s0 + $0x78] sm:$0xff]
    %v38 = vlaneseq
    %v39 = vand.u32 %v38, 127
    %v40 = vadd.s32 %v39, 128
    %v41 = vadd.s32 %v39, 256
    %v42 = vadd.s32 %v39, 384
    %v43 = vcvt.s32.f32 %v39
    %v44 = vcvt.s32.f32 %v40
    %v45 = vcvt.s32.f32 %v41
    %v46 = vcvt.s32.f32 %v42
    %48 = vset.pattern.permute.xlu0 0
    %49 = vperm.xlu0 %48, %v22
    %v50 = vpop.permute.xlu0 %49
    %53 = vset.pattern.permute.xlu0 0
    %54 = vperm.xlu0 %53, %v23
    %v55 = vpop.permute.xlu0 %54
    %58 = vset.pattern.permute.xlu0 0
    %59 = vperm.xlu0 %58, %v24
    %v60 = vpop.permute.xlu0 %59
    %63 = vset.pattern.permute.xlu0 0
    %64 = vperm.xlu0 %63, %v25
    %v65 = vpop.permute.xlu0 %64
    %68 = vset.pattern.permute.xlu0 0
    %69 = vperm.xlu0 %68, %v26
    %v70 = vpop.permute.xlu0 %69
    %73 = vset.pattern.permute.xlu0 0
    %74 = vperm.xlu0 %73, %v27
    %v75 = vpop.permute.xlu0 %74
    %78 = vset.pattern.permute.xlu0 0
    %79 = vperm.xlu0 %78, %v28
    %v80 = vpop.permute.xlu0 %79
    %83 = vset.pattern.permute.xlu0 0
    %84 = vperm.xlu0 %83, %v29
    %v85 = vpop.permute.xlu0 %84
    %88 = vset.pattern.permute.xlu0 0
    %89 = vperm.xlu0 %88, %v30
    %v90 = vpop.permute.xlu0 %89
    %93 = vset.pattern.permute.xlu0 0
    %94 = vperm.xlu0 %93, %v31
    %v95 = vpop.permute.xlu0 %94
    %98 = vset.pattern.permute.xlu0 0
    %99 = vperm.xlu0 %98, %v32
    %v100 = vpop.permute.xlu0 %99
    %103 = vset.pattern.permute.xlu0 0
    %104 = vperm.xlu0 %103, %v33
    %v105 = vpop.permute.xlu0 %104
    %108 = vset.pattern.permute.xlu0 0
    %109 = vperm.xlu0 %108, %v34
    %v110 = vpop.permute.xlu0 %109
    %113 = vset.pattern.permute.xlu0 0
    %114 = vperm.xlu0 %113, %v35
    %v115 = vpop.permute.xlu0 %114
    %118 = vset.pattern.permute.xlu0 0
    %119 = vperm.xlu0 %118, %v36
    %v120 = vpop.permute.xlu0 %119
    %123 = vset.pattern.permute.xlu0 0
    %124 = vperm.xlu0 %123, %v37
    %v125 = vpop.permute.xlu0 %124
    %vm127 = vcmp.eq.f32.partialorder %v50, %v43
    %vm128 = vcmp.eq.f32.partialorder %v50, %v44
    %vm129 = vcmp.eq.f32.partialorder %v50, %v45
    %vm130 = vcmp.eq.f32.partialorder %v50, %v46
    %vm131 = vcmp.eq.f32.partialorder %v55, %v43
    %vm132 = vcmp.eq.f32.partialorder %v55, %v44
    %vm133 = vcmp.eq.f32.partialorder %v55, %v45
    %vm134 = vcmp.eq.f32.partialorder %v55, %v46
    %vm135 = vcmp.eq.f32.partialorder %v60, %v43
    %vm136 = vcmp.eq.f32.partialorder %v60, %v44
    %vm137 = vcmp.eq.f32.partialorder %v60, %v45
    %vm138 = vcmp.eq.f32.partialorder %v60, %v46
    %vm139 = vcmp.eq.f32.partialorder %v65, %v43
    %vm140 = vcmp.eq.f32.partialorder %v65, %v44
    %vm141 = vcmp.eq.f32.partialorder %v65, %v45
    %vm142 = vcmp.eq.f32.partialorder %v65, %v46
    %vm143 = vcmp.eq.f32.partialorder %v70, %v43
    %vm144 = vcmp.eq.f32.partialorder %v70, %v44
    %vm145 = vcmp.eq.f32.partialorder %v70, %v45
    %vm146 = vcmp.eq.f32.partialorder %v70, %v46
    %vm147 = vcmp.eq.f32.partialorder %v75, %v43
    %vm148 = vcmp.eq.f32.partialorder %v75, %v44
    %vm149 = vcmp.eq.f32.partialorder %v75, %v45
    %vm150 = vcmp.eq.f32.partialorder %v75, %v46
    %vm151 = vcmp.eq.f32.partialorder %v80, %v43
    %vm152 = vcmp.eq.f32.partialorder %v80, %v44
    %vm153 = vcmp.eq.f32.partialorder %v80, %v45
    %vm154 = vcmp.eq.f32.partialorder %v80, %v46
    %vm155 = vcmp.eq.f32.partialorder %v85, %v43
    %vm156 = vcmp.eq.f32.partialorder %v85, %v44
    %vm157 = vcmp.eq.f32.partialorder %v85, %v45
    %vm158 = vcmp.eq.f32.partialorder %v85, %v46
    %vm159 = vcmp.eq.f32.partialorder %v90, %v43
    %vm160 = vcmp.eq.f32.partialorder %v90, %v44
    %vm161 = vcmp.eq.f32.partialorder %v90, %v45
    %vm162 = vcmp.eq.f32.partialorder %v90, %v46
    %vm163 = vcmp.eq.f32.partialorder %v95, %v43
    %vm164 = vcmp.eq.f32.partialorder %v95, %v44
    %vm165 = vcmp.eq.f32.partialorder %v95, %v45
    %vm166 = vcmp.eq.f32.partialorder %v95, %v46
    %vm167 = vcmp.eq.f32.partialorder %v100, %v43
    %vm168 = vcmp.eq.f32.partialorder %v100, %v44
    %vm169 = vcmp.eq.f32.partialorder %v100, %v45
    %vm170 = vcmp.eq.f32.partialorder %v100, %v46
    %vm171 = vcmp.eq.f32.partialorder %v105, %v43
    %vm172 = vcmp.eq.f32.partialorder %v105, %v44
    %vm173 = vcmp.eq.f32.partialorder %v105, %v45
    %vm174 = vcmp.eq.f32.partialorder %v105, %v46
    %vm175 = vcmp.eq.f32.partialorder %v110, %v43
    %vm176 = vcmp.eq.f32.partialorder %v110, %v44
    %vm177 = vcmp.eq.f32.partialorder %v110, %v45
    %vm178 = vcmp.eq.f32.partialorder %v110, %v46
    %vm179 = vcmp.eq.f32.partialorder %v115, %v43
    %vm180 = vcmp.eq.f32.partialorder %v115, %v44
    %vm181 = vcmp.eq.f32.partialorder %v115, %v45
    %vm182 = vcmp.eq.f32.partialorder %v115, %v46
    %vm183 = vcmp.eq.f32.partialorder %v120, %v43
    %vm184 = vcmp.eq.f32.partialorder %v120, %v44
    %vm185 = vcmp.eq.f32.partialorder %v120, %v45
    %vm186 = vcmp.eq.f32.partialorder %v120, %v46
    %vm187 = vcmp.eq.f32.partialorder %v125, %v43
    %vm188 = vcmp.eq.f32.partialorder %v125, %v44
    %vm189 = vcmp.eq.f32.partialorder %v125, %v45
    %vm190 = vcmp.eq.f32.partialorder %v125, %v46
    %v191 = vsel %vm127, 1, 0
    %v192 = vsel %vm128, 1, 0
    %v193 = vsel %vm129, 1, 0
    %v194 = vsel %vm130, 1, 0
    %v195 = vsel %vm131, 1, 0
    %v196 = vsel %vm132, 1, 0
    %v197 = vsel %vm133, 1, 0
    %v198 = vsel %vm134, 1, 0
    %v199 = vsel %vm135, 1, 0
    %v200 = vsel %vm136, 1, 0
    %v201 = vsel %vm137, 1, 0
    %v202 = vsel %vm138, 1, 0
    %v203 = vsel %vm139, 1, 0
    %v204 = vsel %vm140, 1, 0
    %v205 = vsel %vm141, 1, 0
    %v206 = vsel %vm142, 1, 0
    %v207 = vsel %vm143, 1, 0
    %v208 = vsel %vm144, 1, 0
    %v209 = vsel %vm145, 1, 0
    %v210 = vsel %vm146, 1, 0
    %v211 = vsel %vm147, 1, 0
    %v212 = vsel %vm148, 1, 0
    %v213 = vsel %vm149, 1, 0
    %v214 = vsel %vm150, 1, 0
    %v215 = vsel %vm151, 1, 0
    %v216 = vsel %vm152, 1, 0
    %v217 = vsel %vm153, 1, 0
    %v218 = vsel %vm154, 1, 0
    %v219 = vsel %vm155, 1, 0
    %v220 = vsel %vm156, 1, 0
    %v221 = vsel %vm157, 1, 0
    %v222 = vsel %vm158, 1, 0
    %v223 = vsel %vm159, 1, 0
    %v224 = vsel %vm160, 1, 0
    %v225 = vsel %vm161, 1, 0
    %v226 = vsel %vm162, 1, 0
    %v227 = vsel %vm163, 1, 0
    %v228 = vsel %vm164, 1, 0
    %v229 = vsel %vm165, 1, 0
    %v230 = vsel %vm166, 1, 0
    %v231 = vsel %vm167, 1, 0
    %v232 = vsel %vm168, 1, 0
    %v233 = vsel %vm169, 1, 0
    %v234 = vsel %vm170, 1, 0
    %v235 = vsel %vm171, 1, 0
    %v236 = vsel %vm172, 1, 0
    %v237 = vsel %vm173, 1, 0
    %v238 = vsel %vm174, 1, 0
    %v239 = vsel %vm175, 1, 0
    %v240 = vsel %vm176, 1, 0
    %v241 = vsel %vm177, 1, 0
    %v242 = vsel %vm178, 1, 0
    %v243 = vsel %vm179, 1, 0
    %v244 = vsel %vm180, 1, 0
    %v245 = vsel %vm181, 1, 0
    %v246 = vsel %vm182, 1, 0
    %v247 = vsel %vm183, 1, 0
    %v248 = vsel %vm184, 1, 0
    %v249 = vsel %vm185, 1, 0
    %v250 = vsel %vm186, 1, 0
    %v251 = vsel %vm187, 1, 0
    %v252 = vsel %vm188, 1, 0
    %v253 = vsel %vm189, 1, 0
    %v254 = vsel %vm190, 1, 0
    %v255 = vcvt.s32.f32 %v191
    %v256 = vcvt.s32.f32 %v192
    %v257 = vcvt.s32.f32 %v193
    %v258 = vcvt.s32.f32 %v194
    %v259 = vcvt.s32.f32 %v195
    %v260 = vcvt.s32.f32 %v196
    %v261 = vcvt.s32.f32 %v197
    %v262 = vcvt.s32.f32 %v198
    %v263 = vcvt.s32.f32 %v199
    %v264 = vcvt.s32.f32 %v200
    %v265 = vcvt.s32.f32 %v201
    %v266 = vcvt.s32.f32 %v202
    %v267 = vcvt.s32.f32 %v203
    %v268 = vcvt.s32.f32 %v204
    %v269 = vcvt.s32.f32 %v205
    %v270 = vcvt.s32.f32 %v206
    %v271 = vcvt.s32.f32 %v207
    %v272 = vcvt.s32.f32 %v208
    %v273 = vcvt.s32.f32 %v209
    %v274 = vcvt.s32.f32 %v210
    %v275 = vcvt.s32.f32 %v211
    %v276 = vcvt.s32.f32 %v212
    %v277 = vcvt.s32.f32 %v213
    %v278 = vcvt.s32.f32 %v214
    %v279 = vcvt.s32.f32 %v215
    %v280 = vcvt.s32.f32 %v216
    %v281 = vcvt.s32.f32 %v217
    %v282 = vcvt.s32.f32 %v218
    %v283 = vcvt.s32.f32 %v219
    %v284 = vcvt.s32.f32 %v220
    %v285 = vcvt.s32.f32 %v221
    %v286 = vcvt.s32.f32 %v222
    %v287 = vcvt.s32.f32 %v223
    %v288 = vcvt.s32.f32 %v224
    %v289 = vcvt.s32.f32 %v225
    %v290 = vcvt.s32.f32 %v226
    %v291 = vcvt.s32.f32 %v227
    %v292 = vcvt.s32.f32 %v228
    %v293 = vcvt.s32.f32 %v229
    %v294 = vcvt.s32.f32 %v230
    %v295 = vcvt.s32.f32 %v231
    %v296 = vcvt.s32.f32 %v232
    %v297 = vcvt.s32.f32 %v233
    %v298 = vcvt.s32.f32 %v234
    %v299 = vcvt.s32.f32 %v235
    %v300 = vcvt.s32.f32 %v236
    %v301 = vcvt.s32.f32 %v237
    %v302 = vcvt.s32.f32 %v238
    %v303 = vcvt.s32.f32 %v239
    %v304 = vcvt.s32.f32 %v240
    %v305 = vcvt.s32.f32 %v241
    %v306 = vcvt.s32.f32 %v242
    %v307 = vcvt.s32.f32 %v243
    %v308 = vcvt.s32.f32 %v244
    %v309 = vcvt.s32.f32 %v245
    %v310 = vcvt.s32.f32 %v246
    %v311 = vcvt.s32.f32 %v247
    %v312 = vcvt.s32.f32 %v248
    %v313 = vcvt.s32.f32 %v249
    %v314 = vcvt.s32.f32 %v250
    %v315 = vcvt.s32.f32 %v251
    %v316 = vcvt.s32.f32 %v252
    %v317 = vcvt.s32.f32 %v253
    %v318 = vcvt.s32.f32 %v254
    %v319 = vpack.c.bf16 %v259, %v255
    %v320 = vpack.c.bf16 %v260, %v256
    %v321 = vpack.c.bf16 %v261, %v257
    %v322 = vpack.c.bf16 %v262, %v258
    %v323 = vpack.c.bf16 %v267, %v263
    %v324 = vpack.c.bf16 %v268, %v264
    %v325 = vpack.c.bf16 %v269, %v265
    %v326 = vpack.c.bf16 %v270, %v266
    %v327 = vpack.c.bf16 %v275, %v271
    %v328 = vpack.c.bf16 %v276, %v272
    %v329 = vpack.c.bf16 %v277, %v273
    %v330 = vpack.c.bf16 %v278, %v274
    %v331 = vpack.c.bf16 %v283, %v279
    %v332 = vpack.c.bf16 %v284, %v280
    %v333 = vpack.c.bf16 %v285, %v281
    %v334 = vpack.c.bf16 %v286, %v282
    %v335 = vpack.c.bf16 %v291, %v287
    %v336 = vpack.c.bf16 %v292, %v288
    %v337 = vpack.c.bf16 %v293, %v289
    %v338 = vpack.c.bf16 %v294, %v290
    %v339 = vpack.c.bf16 %v299, %v295
    %v340 = vpack.c.bf16 %v300, %v296
    %v341 = vpack.c.bf16 %v301, %v297
    %v342 = vpack.c.bf16 %v302, %v298
    %v343 = vpack.c.bf16 %v307, %v303
    %v344 = vpack.c.bf16 %v308, %v304
    %v345 = vpack.c.bf16 %v309, %v305
    %v346 = vpack.c.bf16 %v310, %v306
    %v347 = vpack.c.bf16 %v315, %v311
    %v348 = vpack.c.bf16 %v316, %v312
    %v349 = vpack.c.bf16 %v317, %v313
    %v350 = vpack.c.bf16 %v318, %v314
    %v351 = vld [vmem:[%s1] sm:$0xf]
    %v352 = vld [vmem:[%s1 + $0x4] sm:$0xf]
    %v353 = vld [vmem:[%s1 + $0x8] sm:$0xf]
    %v354 = vld [vmem:[%s1 + $0xc] sm:$0xf]
    %v355 = vld [vmem:[%s1 + $0x10] sm:$0xf]
    %v356 = vld [vmem:[%s1 + $0x14] sm:$0xf]
    %v357 = vld [vmem:[%s1 + $0x18] sm:$0xf]
    %v358 = vld [vmem:[%s1 + $0x1c] sm:$0xf]
    %v359 = vld [vmem:[%s1 + $0x20] sm:$0xf]
    %v360 = vld [vmem:[%s1 + $0x24] sm:$0xf]
    %v361 = vld [vmem:[%s1 + $0x28] sm:$0xf]
    %v362 = vld [vmem:[%s1 + $0x2c] sm:$0xf]
    %v363 = vld [vmem:[%s1 + $0x30] sm:$0xf]
    %v364 = vld [vmem:[%s1 + $0x34] sm:$0xf]
    %v365 = vld [vmem:[%s1 + $0x38] sm:$0xf]
    %v366 = vld [vmem:[%s1 + $0x3c] sm:$0xf]
    %v367 = vld [vmem:[%s1 + $0x40] sm:$0xf]
    %v368 = vld [vmem:[%s1 + $0x44] sm:$0xf]
    %v369 = vld [vmem:[%s1 + $0x48] sm:$0xf]
    %v370 = vld [vmem:[%s1 + $0x4c] sm:$0xf]
    %v371 = vld [vmem:[%s1 + $0x50] sm:$0xf]
    %v372 = vld [vmem:[%s1 + $0x54] sm:$0xf]
    %v373 = vld [vmem:[%s1 + $0x58] sm:$0xf]
    %v374 = vld [vmem:[%s1 + $0x5c] sm:$0xf]
    %v375 = vld [vmem:[%s1 + $0x60] sm:$0xf]
    %v376 = vld [vmem:[%s1 + $0x64] sm:$0xf]
    %v377 = vld [vmem:[%s1 + $0x68] sm:$0xf]
    %v378 = vld [vmem:[%s1 + $0x6c] sm:$0xf]
    %v379 = vld [vmem:[%s1 + $0x70] sm:$0xf]
    %v380 = vld [vmem:[%s1 + $0x74] sm:$0xf]
    %v381 = vld [vmem:[%s1 + $0x78] sm:$0xf]
    %v382 = vld [vmem:[%s1 + $0x7c] sm:$0xf]
    %v383 = vld [vmem:[%s1 + $0x80] sm:$0xf]
    %v384 = vld [vmem:[%s1 + $0x84] sm:$0xf]
    %v385 = vld [vmem:[%s1 + $0x88] sm:$0xf]
    %v386 = vld [vmem:[%s1 + $0x8c] sm:$0xf]
    %v387 = vld [vmem:[%s1 + $0x90] sm:$0xf]
    %v388 = vld [vmem:[%s1 + $0x94] sm:$0xf]
    %v389 = vld [vmem:[%s1 + $0x98] sm:$0xf]
    %v390 = vld [vmem:[%s1 + $0x9c] sm:$0xf]
    %v391 = vld [vmem:[%s1 + $0xa0] sm:$0xf]
    %v392 = vld [vmem:[%s1 + $0xa4] sm:$0xf]
    %v393 = vld [vmem:[%s1 + $0xa8] sm:$0xf]
    %v394 = vld [vmem:[%s1 + $0xac] sm:$0xf]
    %v395 = vld [vmem:[%s1 + $0xb0] sm:$0xf]
    %v396 = vld [vmem:[%s1 + $0xb4] sm:$0xf]
    %v397 = vld [vmem:[%s1 + $0xb8] sm:$0xf]
    %v398 = vld [vmem:[%s1 + $0xbc] sm:$0xf]
    %v399 = vld [vmem:[%s1 + $0xc0] sm:$0xf]
    %v400 = vld [vmem:[%s1 + $0xc4] sm:$0xf]
    %v401 = vld [vmem:[%s1 + $0xc8] sm:$0xf]
    %v402 = vld [vmem:[%s1 + $0xcc] sm:$0xf]
    %v403 = vld [vmem:[%s1 + $0xd0] sm:$0xf]
    %v404 = vld [vmem:[%s1 + $0xd4] sm:$0xf]
    %v405 = vld [vmem:[%s1 + $0xd8] sm:$0xf]
    %v406 = vld [vmem:[%s1 + $0xdc] sm:$0xf]
    %v407 = vld [vmem:[%s1 + $0xe0] sm:$0xf]
    %v408 = vld [vmem:[%s1 + $0xe4] sm:$0xf]
    %v409 = vld [vmem:[%s1 + $0xe8] sm:$0xf]
    %v410 = vld [vmem:[%s1 + $0xec] sm:$0xf]
    %v411 = vld [vmem:[%s1 + $0xf0] sm:$0x3]
    %v473 = vunpack.c.l.b16 %v351
    %v474 = vunpack.c.l.b16 %v352
    %v475 = vunpack.c.l.b16 %v353
    %v476 = vunpack.c.l.b16 %v354
    %v477 = vunpack.c.l.b16 %v355
    %v478 = vunpack.c.l.b16 %v356
    %v479 = vunpack.c.l.b16 %v357
    %v480 = vunpack.c.l.b16 %v358
    %v481 = vunpack.c.l.b16 %v359
    %v482 = vunpack.c.l.b16 %v360
    %v483 = vunpack.c.l.b16 %v361
    %v484 = vunpack.c.l.b16 %v362
    %v485 = vunpack.c.l.b16 %v363
    %v486 = vunpack.c.l.b16 %v364
    %v487 = vunpack.c.l.b16 %v365
    %v488 = vunpack.c.l.b16 %v366
    %v489 = vunpack.c.l.b16 %v367
    %v490 = vunpack.c.l.b16 %v368
    %v491 = vunpack.c.l.b16 %v369
    %v492 = vunpack.c.l.b16 %v370
    %v493 = vunpack.c.l.b16 %v371
    %v494 = vunpack.c.l.b16 %v372
    %v495 = vunpack.c.l.b16 %v373
    %v496 = vunpack.c.l.b16 %v374
    %v497 = vunpack.c.l.b16 %v375
    %v498 = vunpack.c.l.b16 %v376
    %v499 = vunpack.c.l.b16 %v377
    %v500 = vunpack.c.l.b16 %v378
    %v501 = vunpack.c.l.b16 %v379
    %v502 = vunpack.c.l.b16 %v380
    %v503 = vunpack.c.l.b16 %v381
    %v504 = vunpack.c.l.b16 %v382
    %v505 = vunpack.c.l.b16 %v383
    %v506 = vunpack.c.l.b16 %v384
    %v507 = vunpack.c.l.b16 %v385
    %v508 = vunpack.c.l.b16 %v386
    %v509 = vunpack.c.l.b16 %v387
    %v510 = vunpack.c.l.b16 %v388
    %v511 = vunpack.c.l.b16 %v389
    %v512 = vunpack.c.l.b16 %v390
    %v513 = vunpack.c.l.b16 %v391
    %v514 = vunpack.c.l.b16 %v392
    %v515 = vunpack.c.l.b16 %v393
    %v516 = vunpack.c.l.b16 %v394
    %v517 = vunpack.c.l.b16 %v395
    %v518 = vunpack.c.l.b16 %v396
    %v519 = vunpack.c.l.b16 %v397
    %v520 = vunpack.c.l.b16 %v398
    %v521 = vunpack.c.l.b16 %v399
    %v522 = vunpack.c.l.b16 %v400
    %v523 = vunpack.c.l.b16 %v401
    %v524 = vunpack.c.l.b16 %v402
    %v525 = vunpack.c.l.b16 %v403
    %v526 = vunpack.c.l.b16 %v404
    %v527 = vunpack.c.l.b16 %v405
    %v528 = vunpack.c.l.b16 %v406
    %v529 = vunpack.c.l.b16 %v407
    %v530 = vunpack.c.l.b16 %v408
    %v531 = vunpack.c.l.b16 %v409
    %v532 = vunpack.c.l.b16 %v410
    %v533 = vunpack.c.l.b16 %v411
    %v534 = vpack.c.b16 %v474, %v473
    %v535 = vpack.c.b16 %v476, %v475
    %v536 = vpack.c.b16 %v478, %v477
    %v537 = vpack.c.b16 %v480, %v479
    %v538 = vpack.c.b16 %v482, %v481
    %v539 = vpack.c.b16 %v484, %v483
    %v540 = vpack.c.b16 %v486, %v485
    %v541 = vpack.c.b16 %v488, %v487
    %v542 = vpack.c.b16 %v490, %v489
    %v543 = vpack.c.b16 %v492, %v491
    %v544 = vpack.c.b16 %v494, %v493
    %v545 = vpack.c.b16 %v496, %v495
    %v546 = vpack.c.b16 %v498, %v497
    %v547 = vpack.c.b16 %v500, %v499
    %v548 = vpack.c.b16 %v502, %v501
    %v549 = vpack.c.b16 %v504, %v503
    %v550 = vpack.c.b16 %v506, %v505
    %v551 = vpack.c.b16 %v508, %v507
    %v552 = vpack.c.b16 %v510, %v509
    %v553 = vpack.c.b16 %v512, %v511
    %v554 = vpack.c.b16 %v514, %v513
    %v555 = vpack.c.b16 %v516, %v515
    %v556 = vpack.c.b16 %v518, %v517
    %v557 = vpack.c.b16 %v520, %v519
    %v558 = vpack.c.b16 %v522, %v521
    %v559 = vpack.c.b16 %v524, %v523
    %v560 = vpack.c.b16 %v526, %v525
    %v561 = vpack.c.b16 %v528, %v527
    %v562 = vpack.c.b16 %v530, %v529
    %v563 = vpack.c.b16 %v532, %v531
    %v564 = vpack.c.b16 %v533, %v533
    %vm595 = vcmask 818176
    %v597 = vsel %vm595, %v322, 0
    %v600 = vsel %vm595, %v326, 0
    %v603 = vsel %vm595, %v330, 0
    %v606 = vsel %vm595, %v334, 0
    %v609 = vsel %vm595, %v338, 0
    %v612 = vsel %vm595, %v342, 0
    %v615 = vsel %vm595, %v346, 0
    %v618 = vsel %vm595, %v350, 0
    %vm620 = vcmask 1041408
    %v622 = vsel %vm620, %v564, 0
    %624 = vmatpush.bf16.msra.mxu0 %v541
    %625 = vmatpush.bf16.msra.mxu0 %v540
    %626 = vmatpush.bf16.msra.mxu0 %v539
    %627 = vmatpush.bf16.msra.mxu0 %v538
    %628 = vmatpush.bf16.msra.mxu0 %v537
    %629 = vmatpush.bf16.msra.mxu0 %v536
    %630 = vmatpush.bf16.msra.mxu0 %v535
    %631 = vmatpush.bf16.msra.mxu0 %v534
    %632 = vmatmul.bf16.gmra.mxu0 %v319
    %v633 = vpop.f32.mrf.mxu0
    %v634 = vadd.f32 0.0, %v633
    %v635 = vpop.f32.mrf.mxu0
    %v636 = vadd.f32 0.0, %v635
    %637 = vmatmul.bf16.gmra.mxu0 %v323
    %v638 = vpop.f32.mrf.mxu0
    %v639 = vadd.f32 0.0, %v638
    %v640 = vpop.f32.mrf.mxu0
    %v641 = vadd.f32 0.0, %v640
    %642 = vmatmul.bf16.gmra.mxu0 %v327
    %v643 = vpop.f32.mrf.mxu0
    %v644 = vadd.f32 0.0, %v643
    %v645 = vpop.f32.mrf.mxu0
    %v646 = vadd.f32 0.0, %v645
    %647 = vmatmul.bf16.gmra.mxu0 %v331
    %v648 = vpop.f32.mrf.mxu0
    %v649 = vadd.f32 0.0, %v648
    %v650 = vpop.f32.mrf.mxu0
    %v651 = vadd.f32 0.0, %v650
    %652 = vmatmul.bf16.gmra.mxu0 %v335
    %v653 = vpop.f32.mrf.mxu0
    %v654 = vadd.f32 0.0, %v653
    %v655 = vpop.f32.mrf.mxu0
    %v656 = vadd.f32 0.0, %v655
    %657 = vmatmul.bf16.gmra.mxu0 %v339
    %v658 = vpop.f32.mrf.mxu0
    %v659 = vadd.f32 0.0, %v658
    %v660 = vpop.f32.mrf.mxu0
    %v661 = vadd.f32 0.0, %v660
    %662 = vmatmul.bf16.gmra.mxu0 %v343
    %v663 = vpop.f32.mrf.mxu0
    %v664 = vadd.f32 0.0, %v663
    %v665 = vpop.f32.mrf.mxu0
    %v666 = vadd.f32 0.0, %v665
    %667 = vmatmul.bf16.gmra.mxu0 %v347
    %v668 = vpop.f32.mrf.mxu0
    %v669 = vadd.f32 0.0, %v668
    %v670 = vpop.f32.mrf.mxu0
    %v671 = vadd.f32 0.0, %v670
    %672 = vdwg.mxu0
    %673 = vmatpush.bf16.msra.mxu0 %v549
    %674 = vmatpush.bf16.msra.mxu0 %v548
    %675 = vmatpush.bf16.msra.mxu0 %v547
    %676 = vmatpush.bf16.msra.mxu0 %v546
    %677 = vmatpush.bf16.msra.mxu0 %v545
    %678 = vmatpush.bf16.msra.mxu0 %v544
    %679 = vmatpush.bf16.msra.mxu0 %v543
    %680 = vmatpush.bf16.msra.mxu0 %v542
    %681 = vmatmul.bf16.gmra.mxu0 %v320
    %v682 = vpop.f32.mrf.mxu0
    %v683 = vadd.f32 %v634, %v682
    %v684 = vpop.f32.mrf.mxu0
    %v685 = vadd.f32 %v636, %v684
    %686 = vmatmul.bf16.gmra.mxu0 %v324
    %v687 = vpop.f32.mrf.mxu0
    %v688 = vadd.f32 %v639, %v687
    %v689 = vpop.f32.mrf.mxu0
    %v690 = vadd.f32 %v641, %v689
    %691 = vmatmul.bf16.gmra.mxu0 %v328
    %v692 = vpop.f32.mrf.mxu0
    %v693 = vadd.f32 %v644, %v692
    %v694 = vpop.f32.mrf.mxu0
    %v695 = vadd.f32 %v646, %v694
    %696 = vmatmul.bf16.gmra.mxu0 %v332
    %v697 = vpop.f32.mrf.mxu0
    %v698 = vadd.f32 %v649, %v697
    %v699 = vpop.f32.mrf.mxu0
    %v700 = vadd.f32 %v651, %v699
    %701 = vmatmul.bf16.gmra.mxu0 %v336
    %v702 = vpop.f32.mrf.mxu0
    %v703 = vadd.f32 %v654, %v702
    %v704 = vpop.f32.mrf.mxu0
    %v705 = vadd.f32 %v656, %v704
    %706 = vmatmul.bf16.gmra.mxu0 %v340
    %v707 = vpop.f32.mrf.mxu0
    %v708 = vadd.f32 %v659, %v707
    %v709 = vpop.f32.mrf.mxu0
    %v710 = vadd.f32 %v661, %v709
    %711 = vmatmul.bf16.gmra.mxu0 %v344
    %v712 = vpop.f32.mrf.mxu0
    %v713 = vadd.f32 %v664, %v712
    %v714 = vpop.f32.mrf.mxu0
    %v715 = vadd.f32 %v666, %v714
    %716 = vmatmul.bf16.gmra.mxu0 %v348
    %v717 = vpop.f32.mrf.mxu0
    %v718 = vadd.f32 %v669, %v717
    %v719 = vpop.f32.mrf.mxu0
    %v720 = vadd.f32 %v671, %v719
    %721 = vdwg.mxu0
    %722 = vmatpush.bf16.msra.mxu0 %v557
    %723 = vmatpush.bf16.msra.mxu0 %v556
    %724 = vmatpush.bf16.msra.mxu0 %v555
    %725 = vmatpush.bf16.msra.mxu0 %v554
    %726 = vmatpush.bf16.msra.mxu0 %v553
    %727 = vmatpush.bf16.msra.mxu0 %v552
    %728 = vmatpush.bf16.msra.mxu0 %v551
    %729 = vmatpush.bf16.msra.mxu0 %v550
    %730 = vmatmul.bf16.gmra.mxu0 %v321
    %v731 = vpop.f32.mrf.mxu0
    %v732 = vadd.f32 %v683, %v731
    %v733 = vpop.f32.mrf.mxu0
    %v734 = vadd.f32 %v685, %v733
    %735 = vmatmul.bf16.gmra.mxu0 %v325
    %v736 = vpop.f32.mrf.mxu0
    %v737 = vadd.f32 %v688, %v736
    %v738 = vpop.f32.mrf.mxu0
    %v739 = vadd.f32 %v690, %v738
    %740 = vmatmul.bf16.gmra.mxu0 %v329
    %v741 = vpop.f32.mrf.mxu0
    %v742 = vadd.f32 %v693, %v741
    %v743 = vpop.f32.mrf.mxu0
    %v744 = vadd.f32 %v695, %v743
    %745 = vmatmul.bf16.gmra.mxu0 %v333
    %v746 = vpop.f32.mrf.mxu0
    %v747 = vadd.f32 %v698, %v746
    %v748 = vpop.f32.mrf.mxu0
    %v749 = vadd.f32 %v700, %v748
    %750 = vmatmul.bf16.gmra.mxu0 %v337
    %v751 = vpop.f32.mrf.mxu0
    %v752 = vadd.f32 %v703, %v751
    %v753 = vpop.f32.mrf.mxu0
    %v754 = vadd.f32 %v705, %v753
    %755 = vmatmul.bf16.gmra.mxu0 %v341
    %v756 = vpop.f32.mrf.mxu0
    %v757 = vadd.f32 %v708, %v756
    %v758 = vpop.f32.mrf.mxu0
    %v759 = vadd.f32 %v710, %v758
    %760 = vmatmul.bf16.gmra.mxu0 %v345
    %v761 = vpop.f32.mrf.mxu0
    %v762 = vadd.f32 %v713, %v761
    %v763 = vpop.f32.mrf.mxu0
    %v764 = vadd.f32 %v715, %v763
    %765 = vmatmul.bf16.gmra.mxu0 %v349
    %v766 = vpop.f32.mrf.mxu0
    %v767 = vadd.f32 %v718, %v766
    %v768 = vpop.f32.mrf.mxu0
    %v769 = vadd.f32 %v720, %v768
    %770 = vdwg.mxu0
    %771 = vmatpush.bf16.msra.mxu0 0
    %772 = vmatpush.bf16.msra.mxu0 %v622
    %773 = vmatpush.bf16.msra.mxu0 %v563
    %774 = vmatpush.bf16.msra.mxu0 %v562
    %775 = vmatpush.bf16.msra.mxu0 %v561
    %776 = vmatpush.bf16.msra.mxu0 %v560
    %777 = vmatpush.bf16.msra.mxu0 %v559
    %778 = vmatpush.bf16.msra.mxu0 %v558
    %779 = vmatmul.bf16.gmra.mxu0 %v597
    %v780 = vpop.f32.mrf.mxu0
    %v781 = vadd.f32 %v732, %v780
    %v782 = vpop.f32.mrf.mxu0
    %v783 = vadd.f32 %v734, %v782
    %784 = vmatmul.bf16.gmra.mxu0 %v600
    %v785 = vpop.f32.mrf.mxu0
    %v786 = vadd.f32 %v737, %v785
    %v787 = vpop.f32.mrf.mxu0
    %v788 = vadd.f32 %v739, %v787
    %789 = vmatmul.bf16.gmra.mxu0 %v603
    %v790 = vpop.f32.mrf.mxu0
    %v791 = vadd.f32 %v742, %v790
    %v792 = vpop.f32.mrf.mxu0
    %v793 = vadd.f32 %v744, %v792
    %794 = vmatmul.bf16.gmra.mxu0 %v606
    %v795 = vpop.f32.mrf.mxu0
    %v796 = vadd.f32 %v747, %v795
    %v797 = vpop.f32.mrf.mxu0
    %v798 = vadd.f32 %v749, %v797
    %799 = vmatmul.bf16.gmra.mxu0 %v609
    %v800 = vpop.f32.mrf.mxu0
    %v801 = vadd.f32 %v752, %v800
    %v802 = vpop.f32.mrf.mxu0
    %v803 = vadd.f32 %v754, %v802
    %804 = vmatmul.bf16.gmra.mxu0 %v612
    %v805 = vpop.f32.mrf.mxu0
    %v806 = vadd.f32 %v757, %v805
    %v807 = vpop.f32.mrf.mxu0
    %v808 = vadd.f32 %v759, %v807
    %809 = vmatmul.bf16.gmra.mxu0 %v615
    %v810 = vpop.f32.mrf.mxu0
    %v811 = vadd.f32 %v762, %v810
    %v812 = vpop.f32.mrf.mxu0
    %v813 = vadd.f32 %v764, %v812
    %814 = vmatmul.bf16.gmra.mxu0 %v618
    %v815 = vpop.f32.mrf.mxu0
    %v816 = vadd.f32 %v767, %v815
    %v817 = vpop.f32.mrf.mxu0
    %v818 = vadd.f32 %v769, %v817
    %819 = vdwg.mxu0
    %820 = vset.pattern.permute.xlu0 1
    %821 = vperm.xlu0 %820, %v22
    %v822 = vpop.permute.xlu0 %821
    %824 = vset.pattern.permute.xlu0 1
    %825 = vperm.xlu0 %824, %v23
    %v826 = vpop.permute.xlu0 %825
    %828 = vset.pattern.permute.xlu0 1
    %829 = vperm.xlu0 %828, %v24
    %v830 = vpop.permute.xlu0 %829
    %832 = vset.pattern.permute.xlu0 1
    %833 = vperm.xlu0 %832, %v25
    %v834 = vpop.permute.xlu0 %833
    %836 = vset.pattern.permute.xlu0 1
    %837 = vperm.xlu0 %836, %v26
    %v838 = vpop.permute.xlu0 %837
    %840 = vset.pattern.permute.xlu0 1
    %841 = vperm.xlu0 %840, %v27
    %v842 = vpop.permute.xlu0 %841
    %844 = vset.pattern.permute.xlu0 1
    %845 = vperm.xlu0 %844, %v28
    %v846 = vpop.permute.xlu0 %845
    %848 = vset.pattern.permute.xlu0 1
    %849 = vperm.xlu0 %848, %v29
    %v850 = vpop.permute.xlu0 %849
    %852 = vset.pattern.permute.xlu0 1
    %853 = vperm.xlu0 %852, %v30
    %v854 = vpop.permute.xlu0 %853
    %856 = vset.pattern.permute.xlu0 1
    %857 = vperm.xlu0 %856, %v31
    %v858 = vpop.permute.xlu0 %857
    %860 = vset.pattern.permute.xlu0 1
    %861 = vperm.xlu0 %860, %v32
    %v862 = vpop.permute.xlu0 %861
    %864 = vset.pattern.permute.xlu0 1
    %865 = vperm.xlu0 %864, %v33
    %v866 = vpop.permute.xlu0 %865
    %868 = vset.pattern.permute.xlu0 1
    %869 = vperm.xlu0 %868, %v34
    %v870 = vpop.permute.xlu0 %869
    %872 = vset.pattern.permute.xlu0 1
    %873 = vperm.xlu0 %872, %v35
    %v874 = vpop.permute.xlu0 %873
    %876 = vset.pattern.permute.xlu0 1
    %877 = vperm.xlu0 %876, %v36
    %v878 = vpop.permute.xlu0 %877
    %880 = vset.pattern.permute.xlu0 1
    %881 = vperm.xlu0 %880, %v37
    %v882 = vpop.permute.xlu0 %881
    %vm884 = vcmp.eq.f32.partialorder %v822, %v43
    %vm885 = vcmp.eq.f32.partialorder %v826, %v43
    %vm886 = vcmp.eq.f32.partialorder %v830, %v43
    %vm887 = vcmp.eq.f32.partialorder %v834, %v43
    %vm888 = vcmp.eq.f32.partialorder %v838, %v43
    %vm889 = vcmp.eq.f32.partialorder %v842, %v43
    %vm890 = vcmp.eq.f32.partialorder %v846, %v43
    %vm891 = vcmp.eq.f32.partialorder %v850, %v43
    %vm892 = vcmp.eq.f32.partialorder %v854, %v43
    %vm893 = vcmp.eq.f32.partialorder %v858, %v43
    %vm894 = vcmp.eq.f32.partialorder %v862, %v43
    %vm895 = vcmp.eq.f32.partialorder %v866, %v43
    %vm896 = vcmp.eq.f32.partialorder %v870, %v43
    %vm897 = vcmp.eq.f32.partialorder %v874, %v43
    %vm898 = vcmp.eq.f32.partialorder %v878, %v43
    %vm899 = vcmp.eq.f32.partialorder %v882, %v43
    %v900 = vsel %vm884, 1, 0
    %v901 = vsel %vm885, 1, 0
    %v902 = vsel %vm886, 1, 0
    %v903 = vsel %vm887, 1, 0
    %v904 = vsel %vm888, 1, 0
    %v905 = vsel %vm889, 1, 0
    %v906 = vsel %vm890, 1, 0
    %v907 = vsel %vm891, 1, 0
    %v908 = vsel %vm892, 1, 0
    %v909 = vsel %vm893, 1, 0
    %v910 = vsel %vm894, 1, 0
    %v911 = vsel %vm895, 1, 0
    %v912 = vsel %vm896, 1, 0
    %v913 = vsel %vm897, 1, 0
    %v914 = vsel %vm898, 1, 0
    %v915 = vsel %vm899, 1, 0
    %v916 = vcvt.s32.f32 %v900
    %v917 = vcvt.s32.f32 %v901
    %v918 = vcvt.s32.f32 %v902
    %v919 = vcvt.s32.f32 %v903
    %v920 = vcvt.s32.f32 %v904
    %v921 = vcvt.s32.f32 %v905
    %v922 = vcvt.s32.f32 %v906
    %v923 = vcvt.s32.f32 %v907
    %v924 = vcvt.s32.f32 %v908
    %v925 = vcvt.s32.f32 %v909
    %v926 = vcvt.s32.f32 %v910
    %v927 = vcvt.s32.f32 %v911
    %v928 = vcvt.s32.f32 %v912
    %v929 = vcvt.s32.f32 %v913
    %v930 = vcvt.s32.f32 %v914
    %v931 = vcvt.s32.f32 %v915
    %v932 = vpack.c.bf16 %v917, %v916
    %v933 = vpack.c.bf16 %v919, %v918
    %v934 = vpack.c.bf16 %v921, %v920
    %v935 = vpack.c.bf16 %v923, %v922
    %v936 = vpack.c.bf16 %v925, %v924
    %v937 = vpack.c.bf16 %v927, %v926
    %v938 = vpack.c.bf16 %v929, %v928
    %v939 = vpack.c.bf16 %v931, %v930
    %v940 = vld [vmem:[%s2] sm:$0xf]
    %v941 = vld [vmem:[%s2 + $0x4] sm:$0xf]
    %v942 = vld [vmem:[%s2 + $0x8] sm:$0xf]
    %v943 = vld [vmem:[%s2 + $0xc] sm:$0xf]
    %v944 = vld [vmem:[%s2 + $0x10] sm:$0xf]
    %v945 = vld [vmem:[%s2 + $0x14] sm:$0xf]
    %v946 = vld [vmem:[%s2 + $0x18] sm:$0xf]
    %v947 = vld [vmem:[%s2 + $0x1c] sm:$0xf]
    %v948 = vld [vmem:[%s2 + $0x20] sm:$0x1]
    %v958 = vunpack.c.l.b16 %v940
    %v959 = vunpack.c.l.b16 %v941
    %v960 = vunpack.c.l.b16 %v942
    %v961 = vunpack.c.l.b16 %v943
    %v962 = vunpack.c.l.b16 %v944
    %v963 = vunpack.c.l.b16 %v945
    %v964 = vunpack.c.l.b16 %v946
    %v965 = vunpack.c.l.b16 %v947
    %v966 = vunpack.c.l.b16 %v948
    %v967 = vpack.c.b16 %v959, %v958
    %v968 = vpack.c.b16 %v961, %v960
    %v969 = vpack.c.b16 %v963, %v962
    %v970 = vpack.c.b16 %v965, %v964
    %v971 = vpack.c.b16 %v966, %v966
    %vm976 = vcmask 531456
    %v978 = vsel %vm976, %v932, 0
    %v981 = vsel %vm976, %v933, 0
    %v984 = vsel %vm976, %v934, 0
    %v987 = vsel %vm976, %v935, 0
    %v990 = vsel %vm976, %v936, 0
    %v993 = vsel %vm976, %v937, 0
    %v996 = vsel %vm976, %v938, 0
    %v999 = vsel %vm976, %v939, 0
    %vm1001 = vcmask 1040384
    %v1002 = vsel 0, 4294967295, 65535
    %v1003 = vsel %vm1001, %v1002, 0
    %v1005 = vand.u32 %v971, %v1003
    %1007 = vmatpush.bf16.msra.mxu0 0
    %1008 = vmatpush.bf16.msra.mxu0 0
    %1009 = vmatpush.bf16.msra.mxu0 0
    %1010 = vmatpush.bf16.msra.mxu0 %v1005
    %1011 = vmatpush.bf16.msra.mxu0 %v970
    %1012 = vmatpush.bf16.msra.mxu0 %v969
    %1013 = vmatpush.bf16.msra.mxu0 %v968
    %1014 = vmatpush.bf16.msra.mxu0 %v967
    %1015 = vmatmul.bf16.gmra.mxu0 %v978
    %v1016 = vpop.f32.mrf.mxu0
    %v1017 = vadd.f32 0.0, %v1016
    %v1018 = vpop.f32.mrf.mxu0
    %v1019 = vadd.f32 0.0, %v1018
    %1020 = vmatmul.bf16.gmra.mxu0 %v981
    %v1021 = vpop.f32.mrf.mxu0
    %v1022 = vadd.f32 0.0, %v1021
    %v1023 = vpop.f32.mrf.mxu0
    %v1024 = vadd.f32 0.0, %v1023
    %1025 = vmatmul.bf16.gmra.mxu0 %v984
    %v1026 = vpop.f32.mrf.mxu0
    %v1027 = vadd.f32 0.0, %v1026
    %v1028 = vpop.f32.mrf.mxu0
    %v1029 = vadd.f32 0.0, %v1028
    %1030 = vmatmul.bf16.gmra.mxu0 %v987
    %v1031 = vpop.f32.mrf.mxu0
    %v1032 = vadd.f32 0.0, %v1031
    %v1033 = vpop.f32.mrf.mxu0
    %v1034 = vadd.f32 0.0, %v1033
    %1035 = vmatmul.bf16.gmra.mxu0 %v990
    %v1036 = vpop.f32.mrf.mxu0
    %v1037 = vadd.f32 0.0, %v1036
    %v1038 = vpop.f32.mrf.mxu0
    %v1039 = vadd.f32 0.0, %v1038
    %1040 = vmatmul.bf16.gmra.mxu0 %v993
    %v1041 = vpop.f32.mrf.mxu0
    %v1042 = vadd.f32 0.0, %v1041
    %v1043 = vpop.f32.mrf.mxu0
    %v1044 = vadd.f32 0.0, %v1043
    %1045 = vmatmul.bf16.gmra.mxu0 %v996
    %v1046 = vpop.f32.mrf.mxu0
    %v1047 = vadd.f32 0.0, %v1046
    %v1048 = vpop.f32.mrf.mxu0
    %v1049 = vadd.f32 0.0, %v1048
    %1050 = vmatmul.bf16.gmra.mxu0 %v999
    %v1051 = vpop.f32.mrf.mxu0
    %v1052 = vadd.f32 0.0, %v1051
    %v1053 = vpop.f32.mrf.mxu0
    %v1054 = vadd.f32 0.0, %v1053
    %1055 = vdwg.mxu0
    %v1056 = vld [vmem:[%s3] sm:$0xf]
    %v1057 = vld [vmem:[%s3 + $0x4] sm:$0xf]
    %v1058 = vld [vmem:[%s3 + $0x8] sm:$0xf]
    %v1059 = vld [vmem:[%s3 + $0xc] sm:$0xf]
    %v1060 = vld [vmem:[%s3 + $0x10] sm:$0xf]
    %v1061 = vld [vmem:[%s3 + $0x14] sm:$0xf]
    %v1062 = vld [vmem:[%s3 + $0x18] sm:$0xf]
    %v1063 = vld [vmem:[%s3 + $0x1c] sm:$0xf]
    %v1064 = vld [vmem:[%s3 + $0x20] sm:$0xf]
    %v1065 = vld [vmem:[%s3 + $0x24] sm:$0xf]
    %v1066 = vld [vmem:[%s3 + $0x28] sm:$0xf]
    %v1067 = vld [vmem:[%s3 + $0x2c] sm:$0xf]
    %v1068 = vld [vmem:[%s3 + $0x30] sm:$0xf]
    %v1069 = vld [vmem:[%s3 + $0x34] sm:$0xf]
    %v1070 = vld [vmem:[%s3 + $0x38] sm:$0xf]
    %v1071 = vld [vmem:[%s3 + $0x3c] sm:$0xf]
    %v1072 = vld [vmem:[%s3 + $0x40] sm:$0xf]
    %v1073 = vld [vmem:[%s3 + $0x44] sm:$0xf]
    %v1074 = vld [vmem:[%s3 + $0x48] sm:$0xf]
    %v1075 = vld [vmem:[%s3 + $0x4c] sm:$0xf]
    %v1076 = vld [vmem:[%s3 + $0x50] sm:$0xf]
    %v1077 = vld [vmem:[%s3 + $0x54] sm:$0xf]
    %v1078 = vld [vmem:[%s3 + $0x58] sm:$0xf]
    %v1079 = vld [vmem:[%s3 + $0x5c] sm:$0xf]
    %v1080 = vld [vmem:[%s3 + $0x60] sm:$0xf]
    %v1081 = vld [vmem:[%s3 + $0x64] sm:$0xf]
    %v1082 = vld [vmem:[%s3 + $0x68] sm:$0xf]
    %v1083 = vld [vmem:[%s3 + $0x6c] sm:$0xf]
    %v1084 = vld [vmem:[%s3 + $0x70] sm:$0xf]
    %v1085 = vld [vmem:[%s3 + $0x74] sm:$0xf]
    %v1086 = vld [vmem:[%s4] sm:$0x1f]
    %v1087 = vsub.f32 0.0, %v781
    %v1088 = vsub.f32 0.0, %v783
    %v1089 = vsub.f32 0.0, %v786
    %v1090 = vsub.f32 0.0, %v788
    %v1091 = vsub.f32 0.0, %v791
    %v1092 = vsub.f32 0.0, %v793
    %v1093 = vsub.f32 0.0, %v796
    %v1094 = vsub.f32 0.0, %v798
    %v1095 = vsub.f32 0.0, %v801
    %v1096 = vsub.f32 0.0, %v803
    %v1097 = vsub.f32 0.0, %v806
    %v1098 = vsub.f32 0.0, %v808
    %v1099 = vsub.f32 0.0, %v811
    %v1100 = vsub.f32 0.0, %v813
    %v1101 = vsub.f32 0.0, %v816
    %v1102 = vsub.f32 0.0, %v818
    %1103 = vrot.lane.b32.xlu0 %v22, 30
    %v1104 = vpop.permute.xlu0 %1103
    %1105 = vrot.lane.b32.xlu0 %v23, 30
    %v1106 = vpop.permute.xlu0 %1105
    %1107 = vrot.lane.b32.xlu0 %v24, 30
    %v1108 = vpop.permute.xlu0 %1107
    %1109 = vrot.lane.b32.xlu0 %v25, 30
    %v1110 = vpop.permute.xlu0 %1109
    %1111 = vrot.lane.b32.xlu0 %v26, 30
    %v1112 = vpop.permute.xlu0 %1111
    %1113 = vrot.lane.b32.xlu0 %v27, 30
    %v1114 = vpop.permute.xlu0 %1113
    %1115 = vrot.lane.b32.xlu0 %v28, 30
    %v1116 = vpop.permute.xlu0 %1115
    %1117 = vrot.lane.b32.xlu0 %v29, 30
    %v1118 = vpop.permute.xlu0 %1117
    %1119 = vrot.lane.b32.xlu0 %v30, 30
    %v1120 = vpop.permute.xlu0 %1119
    %1121 = vrot.lane.b32.xlu0 %v31, 30
    %v1122 = vpop.permute.xlu0 %1121
    %1123 = vrot.lane.b32.xlu0 %v32, 30
    %v1124 = vpop.permute.xlu0 %1123
    %1125 = vrot.lane.b32.xlu0 %v33, 30
    %v1126 = vpop.permute.xlu0 %1125
    %1127 = vrot.lane.b32.xlu0 %v34, 30
    %v1128 = vpop.permute.xlu0 %1127
    %1129 = vrot.lane.b32.xlu0 %v35, 30
    %v1130 = vpop.permute.xlu0 %1129
    %1131 = vrot.lane.b32.xlu0 %v36, 30
    %v1132 = vpop.permute.xlu0 %1131
    %1133 = vrot.lane.b32.xlu0 %v37, 30
    %v1134 = vpop.permute.xlu0 %1133
    %v1151 = vmul.f32 %v1087, %v1104
    %v1152 = vmul.f32 %v1088, %v1106
    %v1153 = vmul.f32 %v1089, %v1108
    %v1154 = vmul.f32 %v1090, %v1110
    %v1155 = vmul.f32 %v1091, %v1112
    %v1156 = vmul.f32 %v1092, %v1114
    %v1157 = vmul.f32 %v1093, %v1116
    %v1158 = vmul.f32 %v1094, %v1118
    %v1159 = vmul.f32 %v1095, %v1120
    %v1160 = vmul.f32 %v1096, %v1122
    %v1161 = vmul.f32 %v1097, %v1124
    %v1162 = vmul.f32 %v1098, %v1126
    %v1163 = vmul.f32 %v1099, %v1128
    %v1164 = vmul.f32 %v1100, %v1130
    %v1165 = vmul.f32 %v1101, %v1132
    %v1166 = vmul.f32 %v1102, %v1134
    %v1167 = vmul.f32 %v1151, 0.01
    %v1168 = vmul.f32 %v1152, 0.01
    %v1169 = vmul.f32 %v1153, 0.01
    %v1170 = vmul.f32 %v1154, 0.01
    %v1171 = vmul.f32 %v1155, 0.01
    %v1172 = vmul.f32 %v1156, 0.01
    %v1173 = vmul.f32 %v1157, 0.01
    %v1174 = vmul.f32 %v1158, 0.01
    %v1175 = vmul.f32 %v1159, 0.01
    %v1176 = vmul.f32 %v1160, 0.01
    %v1177 = vmul.f32 %v1161, 0.01
    %v1178 = vmul.f32 %v1162, 0.01
    %v1179 = vmul.f32 %v1163, 0.01
    %v1180 = vmul.f32 %v1164, 0.01
    %v1181 = vmul.f32 %v1165, 0.01
    %v1182 = vmul.f32 %v1166, 0.01
    %v1183 = vmul.f32 %v1167, 1.442695
    %v1184 = vpow.pop %v1183
    %v1185 = vmul.f32 %v1168, 1.442695
    %v1186 = vpow.pop %v1185
    %v1187 = vmul.f32 %v1169, 1.442695
    %v1188 = vpow.pop %v1187
    %v1189 = vmul.f32 %v1170, 1.442695
    %v1190 = vpow.pop %v1189
    %v1191 = vmul.f32 %v1171, 1.442695
    %v1192 = vpow.pop %v1191
    %v1193 = vmul.f32 %v1172, 1.442695
    %v1194 = vpow.pop %v1193
    %v1195 = vmul.f32 %v1173, 1.442695
    %v1196 = vpow.pop %v1195
    %v1197 = vmul.f32 %v1174, 1.442695
    %v1198 = vpow.pop %v1197
    %v1199 = vmul.f32 %v1175, 1.442695
    %v1200 = vpow.pop %v1199
    %v1201 = vmul.f32 %v1176, 1.442695
    %v1202 = vpow.pop %v1201
    %v1203 = vmul.f32 %v1177, 1.442695
    %v1204 = vpow.pop %v1203
    %v1205 = vmul.f32 %v1178, 1.442695
    %v1206 = vpow.pop %v1205
    %v1207 = vmul.f32 %v1179, 1.442695
    %v1208 = vpow.pop %v1207
    %v1209 = vmul.f32 %v1180, 1.442695
    %v1210 = vpow.pop %v1209
    %v1211 = vmul.f32 %v1181, 1.442695
    %v1212 = vpow.pop %v1211
    %v1213 = vmul.f32 %v1182, 1.442695
    %v1214 = vpow.pop %v1213
    %1215 = vrot.lane.b32.xlu0 %v22, 14
    %v1216 = vpop.permute.xlu0 %1215
    %1217 = vrot.lane.b32.xlu0 %v23, 14
    %v1218 = vpop.permute.xlu0 %1217
    %1219 = vrot.lane.b32.xlu0 %v24, 14
    %v1220 = vpop.permute.xlu0 %1219
    %1221 = vrot.lane.b32.xlu0 %v25, 14
    %v1222 = vpop.permute.xlu0 %1221
    %1223 = vrot.lane.b32.xlu0 %v26, 14
    %v1224 = vpop.permute.xlu0 %1223
    %1225 = vrot.lane.b32.xlu0 %v27, 14
    %v1226 = vpop.permute.xlu0 %1225
    %1227 = vrot.lane.b32.xlu0 %v28, 14
    %v1228 = vpop.permute.xlu0 %1227
    %1229 = vrot.lane.b32.xlu0 %v29, 14
    %v1230 = vpop.permute.xlu0 %1229
    %1231 = vrot.lane.b32.xlu0 %v30, 14
    %v1232 = vpop.permute.xlu0 %1231
    %1233 = vrot.lane.b32.xlu0 %v31, 14
    %v1234 = vpop.permute.xlu0 %1233
    %1235 = vrot.lane.b32.xlu0 %v32, 14
    %v1236 = vpop.permute.xlu0 %1235
    %1237 = vrot.lane.b32.xlu0 %v33, 14
    %v1238 = vpop.permute.xlu0 %1237
    %1239 = vrot.lane.b32.xlu0 %v34, 14
    %v1240 = vpop.permute.xlu0 %1239
    %1241 = vrot.lane.b32.xlu0 %v35, 14
    %v1242 = vpop.permute.xlu0 %1241
    %1243 = vrot.lane.b32.xlu0 %v36, 14
    %v1244 = vpop.permute.xlu0 %1243
    %1245 = vrot.lane.b32.xlu0 %v37, 14
    %v1246 = vpop.permute.xlu0 %1245
    %v1263 = vmul.f32 %v1184, %v1216
    %v1264 = vmul.f32 %v1186, %v1218
    %v1265 = vmul.f32 %v1188, %v1220
    %v1266 = vmul.f32 %v1190, %v1222
    %v1267 = vmul.f32 %v1192, %v1224
    %v1268 = vmul.f32 %v1194, %v1226
    %v1269 = vmul.f32 %v1196, %v1228
    %v1270 = vmul.f32 %v1198, %v1230
    %v1271 = vmul.f32 %v1200, %v1232
    %v1272 = vmul.f32 %v1202, %v1234
    %v1273 = vmul.f32 %v1204, %v1236
    %v1274 = vmul.f32 %v1206, %v1238
    %v1275 = vmul.f32 %v1208, %v1240
    %v1276 = vmul.f32 %v1210, %v1242
    %v1277 = vmul.f32 %v1212, %v1244
    %v1278 = vmul.f32 %v1214, %v1246
    %v1279 = vpack.c.bf16 %v1264, %v1263
    %v1280 = vpack.c.bf16 %v1266, %v1265
    %v1281 = vpack.c.bf16 %v1268, %v1267
    %v1282 = vpack.c.bf16 %v1270, %v1269
    %v1283 = vpack.c.bf16 %v1272, %v1271
    %v1284 = vpack.c.bf16 %v1274, %v1273
    %v1285 = vpack.c.bf16 %v1276, %v1275
    %v1286 = vpack.c.bf16 %v1278, %v1277
    %v1287 = vperm.slane %v1086, 0
    %1296 = vrot.lane.b32.xlu0 %v1279, 96
    %v1297 = vpop.permute.xlu0 %1296
    %1298 = vrot.lane.b32.xlu0 %v1280, 96
    %v1299 = vpop.permute.xlu0 %1298
    %1300 = vrot.lane.b32.xlu0 %v1281, 96
    %v1301 = vpop.permute.xlu0 %1300
    %1302 = vrot.lane.b32.xlu0 %v1282, 96
    %v1303 = vpop.permute.xlu0 %1302
    %1304 = vrot.lane.b32.xlu0 %v1283, 96
    %v1305 = vpop.permute.xlu0 %1304
    %1306 = vrot.lane.b32.xlu0 %v1284, 96
    %v1307 = vpop.permute.xlu0 %1306
    %1308 = vrot.lane.b32.xlu0 %v1285, 96
    %v1309 = vpop.permute.xlu0 %1308
    %1310 = vrot.lane.b32.xlu0 %v1286, 96
    %v1311 = vpop.permute.xlu0 %1310
    %v1314 = vunpack.c.l.b16 %v1056
    %v1315 = vunpack.c.l.b16 %v1057
    %v1316 = vpack.c.b16 %v1315, %v1314
    %vm1318 = vcmask 130048
    %v1320 = vsel %vm1318, %v1297, 0
    %v1323 = vsel %vm1318, %v1299, 0
    %v1326 = vsel %vm1318, %v1301, 0
    %v1329 = vsel %vm1318, %v1303, 0
    %v1332 = vsel %vm1318, %v1305, 0
    %v1335 = vsel %vm1318, %v1307, 0
    %v1338 = vsel %vm1318, %v1309, 0
    %v1341 = vsel %vm1318, %v1311, 0
    %1343 = vmatpush.bf16.msra.mxu0 0
    %1344 = vmatpush.bf16.msra.mxu0 0
    %1345 = vmatpush.bf16.msra.mxu0 0
    %1346 = vmatpush.bf16.msra.mxu0 0
    %1347 = vmatpush.bf16.msra.mxu0 0
    %1348 = vmatpush.bf16.msra.mxu0 0
    %1349 = vmatpush.bf16.msra.mxu0 0
    %1350 = vmatpush.bf16.msra.mxu0 %v1316
    %1351 = vmatmul.bf16.gmra.mxu0 %v1320
    %v1352 = vpop.f32.mrf.mxu0
    %v1353 = vadd.f32 %v1287, %v1352
    %v1354 = vpop.f32.mrf.mxu0
    %v1355 = vadd.f32 %v1287, %v1354
    %1356 = vmatmul.bf16.gmra.mxu0 %v1323
    %v1357 = vpop.f32.mrf.mxu0
    %v1358 = vadd.f32 %v1287, %v1357
    %v1359 = vpop.f32.mrf.mxu0
    %v1360 = vadd.f32 %v1287, %v1359
    %1361 = vmatmul.bf16.gmra.mxu0 %v1326
    %v1362 = vpop.f32.mrf.mxu0
    %v1363 = vadd.f32 %v1287, %v1362
    %v1364 = vpop.f32.mrf.mxu0
    %v1365 = vadd.f32 %v1287, %v1364
    %1366 = vmatmul.bf16.gmra.mxu0 %v1329
    %v1367 = vpop.f32.mrf.mxu0
    %v1368 = vadd.f32 %v1287, %v1367
    %v1369 = vpop.f32.mrf.mxu0
    %v1370 = vadd.f32 %v1287, %v1369
    %1371 = vmatmul.bf16.gmra.mxu0 %v1332
    %v1372 = vpop.f32.mrf.mxu0
    %v1373 = vadd.f32 %v1287, %v1372
    %v1374 = vpop.f32.mrf.mxu0
    %v1375 = vadd.f32 %v1287, %v1374
    %1376 = vmatmul.bf16.gmra.mxu0 %v1335
    %v1377 = vpop.f32.mrf.mxu0
    %v1378 = vadd.f32 %v1287, %v1377
    %v1379 = vpop.f32.mrf.mxu0
    %v1380 = vadd.f32 %v1287, %v1379
    %1381 = vmatmul.bf16.gmra.mxu0 %v1338
    %v1382 = vpop.f32.mrf.mxu0
    %v1383 = vadd.f32 %v1287, %v1382
    %v1384 = vpop.f32.mrf.mxu0
    %v1385 = vadd.f32 %v1287, %v1384
    %1386 = vmatmul.bf16.gmra.mxu0 %v1341
    %v1387 = vpop.f32.mrf.mxu0
    %v1388 = vadd.f32 %v1287, %v1387
    %v1389 = vpop.f32.mrf.mxu0
    %v1390 = vadd.f32 %v1287, %v1389
    %1391 = vdwg.mxu0
    %v1392 = vmax.f32 %v1353, 0.0
    %v1393 = vmax.f32 %v1355, 0.0
    %v1394 = vmax.f32 %v1358, 0.0
    %v1395 = vmax.f32 %v1360, 0.0
    %v1396 = vmax.f32 %v1363, 0.0
    %v1397 = vmax.f32 %v1365, 0.0
    %v1398 = vmax.f32 %v1368, 0.0
    %v1399 = vmax.f32 %v1370, 0.0
    %v1400 = vmax.f32 %v1373, 0.0
    %v1401 = vmax.f32 %v1375, 0.0
    %v1402 = vmax.f32 %v1378, 0.0
    %v1403 = vmax.f32 %v1380, 0.0
    %v1404 = vmax.f32 %v1383, 0.0
    %v1405 = vmax.f32 %v1385, 0.0
    %v1406 = vmax.f32 %v1388, 0.0
    %v1407 = vmax.f32 %v1390, 0.0
    %v1408 = vpack.c.bf16 %v1393, %v1392
    %v1409 = vpack.c.bf16 %v1395, %v1394
    %v1410 = vpack.c.bf16 %v1397, %v1396
    %v1411 = vpack.c.bf16 %v1399, %v1398
    %v1412 = vpack.c.bf16 %v1401, %v1400
    %v1413 = vpack.c.bf16 %v1403, %v1402
    %v1414 = vpack.c.bf16 %v1405, %v1404
    %v1415 = vpack.c.bf16 %v1407, %v1406
    %v1416 = vperm.slane %v1086, 1
    %v1421 = vunpack.c.l.b16 %v1058
    %v1422 = vunpack.c.l.b16 %v1059
    %v1423 = vunpack.c.l.b16 %v1060
    %v1424 = vunpack.c.l.b16 %v1061
    %v1425 = vpack.c.b16 %v1422, %v1421
    %v1426 = vpack.c.b16 %v1424, %v1423
    %vm1429 = vcmask 261120
    %v1431 = vsel %vm1429, %v1408, 0
    %v1434 = vsel %vm1429, %v1409, 0
    %v1437 = vsel %vm1429, %v1410, 0
    %v1440 = vsel %vm1429, %v1411, 0
    %v1443 = vsel %vm1429, %v1412, 0
    %v1446 = vsel %vm1429, %v1413, 0
    %v1449 = vsel %vm1429, %v1414, 0
    %v1452 = vsel %vm1429, %v1415, 0
    %1454 = vmatpush.bf16.msra.mxu0 0
    %1455 = vmatpush.bf16.msra.mxu0 0
    %1456 = vmatpush.bf16.msra.mxu0 0
    %1457 = vmatpush.bf16.msra.mxu0 0
    %1458 = vmatpush.bf16.msra.mxu0 0
    %1459 = vmatpush.bf16.msra.mxu0 0
    %1460 = vmatpush.bf16.msra.mxu0 %v1426
    %1461 = vmatpush.bf16.msra.mxu0 %v1425
    %1462 = vmatmul.bf16.gmra.mxu0 %v1431
    %v1463 = vpop.f32.mrf.mxu0
    %v1464 = vadd.f32 %v1416, %v1463
    %v1465 = vpop.f32.mrf.mxu0
    %v1466 = vadd.f32 %v1416, %v1465
    %1467 = vmatmul.bf16.gmra.mxu0 %v1434
    %v1468 = vpop.f32.mrf.mxu0
    %v1469 = vadd.f32 %v1416, %v1468
    %v1470 = vpop.f32.mrf.mxu0
    %v1471 = vadd.f32 %v1416, %v1470
    %1472 = vmatmul.bf16.gmra.mxu0 %v1437
    %v1473 = vpop.f32.mrf.mxu0
    %v1474 = vadd.f32 %v1416, %v1473
    %v1475 = vpop.f32.mrf.mxu0
    %v1476 = vadd.f32 %v1416, %v1475
    %1477 = vmatmul.bf16.gmra.mxu0 %v1440
    %v1478 = vpop.f32.mrf.mxu0
    %v1479 = vadd.f32 %v1416, %v1478
    %v1480 = vpop.f32.mrf.mxu0
    %v1481 = vadd.f32 %v1416, %v1480
    %1482 = vmatmul.bf16.gmra.mxu0 %v1443
    %v1483 = vpop.f32.mrf.mxu0
    %v1484 = vadd.f32 %v1416, %v1483
    %v1485 = vpop.f32.mrf.mxu0
    %v1486 = vadd.f32 %v1416, %v1485
    %1487 = vmatmul.bf16.gmra.mxu0 %v1446
    %v1488 = vpop.f32.mrf.mxu0
    %v1489 = vadd.f32 %v1416, %v1488
    %v1490 = vpop.f32.mrf.mxu0
    %v1491 = vadd.f32 %v1416, %v1490
    %1492 = vmatmul.bf16.gmra.mxu0 %v1449
    %v1493 = vpop.f32.mrf.mxu0
    %v1494 = vadd.f32 %v1416, %v1493
    %v1495 = vpop.f32.mrf.mxu0
    %v1496 = vadd.f32 %v1416, %v1495
    %1497 = vmatmul.bf16.gmra.mxu0 %v1452
    %v1498 = vpop.f32.mrf.mxu0
    %v1499 = vadd.f32 %v1416, %v1498
    %v1500 = vpop.f32.mrf.mxu0
    %v1501 = vadd.f32 %v1416, %v1500
    %1502 = vdwg.mxu0
    %v1503 = vmax.f32 %v1464, 0.0
    %v1504 = vmax.f32 %v1466, 0.0
    %v1505 = vmax.f32 %v1469, 0.0
    %v1506 = vmax.f32 %v1471, 0.0
    %v1507 = vmax.f32 %v1474, 0.0
    %v1508 = vmax.f32 %v1476, 0.0
    %v1509 = vmax.f32 %v1479, 0.0
    %v1510 = vmax.f32 %v1481, 0.0
    %v1511 = vmax.f32 %v1484, 0.0
    %v1512 = vmax.f32 %v1486, 0.0
    %v1513 = vmax.f32 %v1489, 0.0
    %v1514 = vmax.f32 %v1491, 0.0
    %v1515 = vmax.f32 %v1494, 0.0
    %v1516 = vmax.f32 %v1496, 0.0
    %v1517 = vmax.f32 %v1499, 0.0
    %v1518 = vmax.f32 %v1501, 0.0
    %1519 = vset.pattern.permute.xlu0 48
    %1520 = vperm.xlu0 %1519, %v22
    %v1521 = vpop.permute.xlu0 %1520
    %1523 = vset.pattern.permute.xlu0 48
    %1524 = vperm.xlu0 %1523, %v23
    %v1525 = vpop.permute.xlu0 %1524
    %1527 = vset.pattern.permute.xlu0 48
    %1528 = vperm.xlu0 %1527, %v24
    %v1529 = vpop.permute.xlu0 %1528
    %1531 = vset.pattern.permute.xlu0 48
    %1532 = vperm.xlu0 %1531, %v25
    %v1533 = vpop.permute.xlu0 %1532
    %1535 = vset.pattern.permute.xlu0 48
    %1536 = vperm.xlu0 %1535, %v26
    %v1537 = vpop.permute.xlu0 %1536
    %1539 = vset.pattern.permute.xlu0 48
    %1540 = vperm.xlu0 %1539, %v27
    %v1541 = vpop.permute.xlu0 %1540
    %1543 = vset.pattern.permute.xlu0 48
    %1544 = vperm.xlu0 %1543, %v28
    %v1545 = vpop.permute.xlu0 %1544
    %1547 = vset.pattern.permute.xlu0 48
    %1548 = vperm.xlu0 %1547, %v29
    %v1549 = vpop.permute.xlu0 %1548
    %1551 = vset.pattern.permute.xlu0 48
    %1552 = vperm.xlu0 %1551, %v30
    %v1553 = vpop.permute.xlu0 %1552
    %1555 = vset.pattern.permute.xlu0 48
    %1556 = vperm.xlu0 %1555, %v31
    %v1557 = vpop.permute.xlu0 %1556
    %1559 = vset.pattern.permute.xlu0 48
    %1560 = vperm.xlu0 %1559, %v32
    %v1561 = vpop.permute.xlu0 %1560
    %1563 = vset.pattern.permute.xlu0 48
    %1564 = vperm.xlu0 %1563, %v33
    %v1565 = vpop.permute.xlu0 %1564
    %1567 = vset.pattern.permute.xlu0 48
    %1568 = vperm.xlu0 %1567, %v34
    %v1569 = vpop.permute.xlu0 %1568
    %1571 = vset.pattern.permute.xlu0 48
    %1572 = vperm.xlu0 %1571, %v35
    %v1573 = vpop.permute.xlu0 %1572
    %1575 = vset.pattern.permute.xlu0 48
    %1576 = vperm.xlu0 %1575, %v36
    %v1577 = vpop.permute.xlu0 %1576
    %1579 = vset.pattern.permute.xlu0 48
    %1580 = vperm.xlu0 %1579, %v37
    %v1581 = vpop.permute.xlu0 %1580
    %v1583 = vmul.f32 %v1503, %v1521
    %v1584 = vmul.f32 %v1504, %v1525
    %v1585 = vmul.f32 %v1505, %v1529
    %v1586 = vmul.f32 %v1506, %v1533
    %v1587 = vmul.f32 %v1507, %v1537
    %v1588 = vmul.f32 %v1508, %v1541
    %v1589 = vmul.f32 %v1509, %v1545
    %v1590 = vmul.f32 %v1510, %v1549
    %v1591 = vmul.f32 %v1511, %v1553
    %v1592 = vmul.f32 %v1512, %v1557
    %v1593 = vmul.f32 %v1513, %v1561
    %v1594 = vmul.f32 %v1514, %v1565
    %v1595 = vmul.f32 %v1515, %v1569
    %v1596 = vmul.f32 %v1516, %v1573
    %v1597 = vmul.f32 %v1517, %v1577
    %v1598 = vmul.f32 %v1518, %v1581
    %v1599 = vadd.f32 %v22, 1.5707964
    %v1600 = vadd.f32 %v23, 1.5707964
    %v1601 = vadd.f32 %v24, 1.5707964
    %v1602 = vadd.f32 %v25, 1.5707964
    %v1603 = vadd.f32 %v26, 1.5707964
    %v1604 = vadd.f32 %v27, 1.5707964
    %v1605 = vadd.f32 %v28, 1.5707964
    %v1606 = vadd.f32 %v29, 1.5707964
    %v1607 = vadd.f32 %v30, 1.5707964
    %v1608 = vadd.f32 %v31, 1.5707964
    %v1609 = vadd.f32 %v32, 1.5707964
    %v1610 = vadd.f32 %v33, 1.5707964
    %v1611 = vadd.f32 %v34, 1.5707964
    %v1612 = vadd.f32 %v35, 1.5707964
    %v1613 = vadd.f32 %v36, 1.5707964
    %v1614 = vadd.f32 %v37, 1.5707964
    %1615 = vrot.lane.b32.xlu0 %v22, 92
    %v1616 = vpop.permute.xlu0 %1615
    %1617 = vrot.lane.b32.xlu0 %v23, 92
    %v1618 = vpop.permute.xlu0 %1617
    %1619 = vrot.lane.b32.xlu0 %v24, 92
    %v1620 = vpop.permute.xlu0 %1619
    %1621 = vrot.lane.b32.xlu0 %v25, 92
    %v1622 = vpop.permute.xlu0 %1621
    %1623 = vrot.lane.b32.xlu0 %v26, 92
    %v1624 = vpop.permute.xlu0 %1623
    %1625 = vrot.lane.b32.xlu0 %v27, 92
    %v1626 = vpop.permute.xlu0 %1625
    %1627 = vrot.lane.b32.xlu0 %v28, 92
    %v1628 = vpop.permute.xlu0 %1627
    %1629 = vrot.lane.b32.xlu0 %v29, 92
    %v1630 = vpop.permute.xlu0 %1629
    %1631 = vrot.lane.b32.xlu0 %v30, 92
    %v1632 = vpop.permute.xlu0 %1631
    %1633 = vrot.lane.b32.xlu0 %v31, 92
    %v1634 = vpop.permute.xlu0 %1633
    %1635 = vrot.lane.b32.xlu0 %v32, 92
    %v1636 = vpop.permute.xlu0 %1635
    %1637 = vrot.lane.b32.xlu0 %v33, 92
    %v1638 = vpop.permute.xlu0 %1637
    %1639 = vrot.lane.b32.xlu0 %v34, 92
    %v1640 = vpop.permute.xlu0 %1639
    %1641 = vrot.lane.b32.xlu0 %v35, 92
    %v1642 = vpop.permute.xlu0 %1641
    %1643 = vrot.lane.b32.xlu0 %v36, 92
    %v1644 = vpop.permute.xlu0 %1643
    %1645 = vrot.lane.b32.xlu0 %v37, 92
    %v1646 = vpop.permute.xlu0 %1645
    %1679 = vrot.lane.b32.xlu0 %v1599, 104
    %v1680 = vpop.permute.xlu0 %1679
    %1681 = vrot.lane.b32.xlu0 %v1600, 104
    %v1682 = vpop.permute.xlu0 %1681
    %1683 = vrot.lane.b32.xlu0 %v1601, 104
    %v1684 = vpop.permute.xlu0 %1683
    %1685 = vrot.lane.b32.xlu0 %v1602, 104
    %v1686 = vpop.permute.xlu0 %1685
    %1687 = vrot.lane.b32.xlu0 %v1603, 104
    %v1688 = vpop.permute.xlu0 %1687
    %1689 = vrot.lane.b32.xlu0 %v1604, 104
    %v1690 = vpop.permute.xlu0 %1689
    %1691 = vrot.lane.b32.xlu0 %v1605, 104
    %v1692 = vpop.permute.xlu0 %1691
    %1693 = vrot.lane.b32.xlu0 %v1606, 104
    %v1694 = vpop.permute.xlu0 %1693
    %1695 = vrot.lane.b32.xlu0 %v1607, 104
    %v1696 = vpop.permute.xlu0 %1695
    %1697 = vrot.lane.b32.xlu0 %v1608, 104
    %v1698 = vpop.permute.xlu0 %1697
    %1699 = vrot.lane.b32.xlu0 %v1609, 104
    %v1700 = vpop.permute.xlu0 %1699
    %1701 = vrot.lane.b32.xlu0 %v1610, 104
    %v1702 = vpop.permute.xlu0 %1701
    %1703 = vrot.lane.b32.xlu0 %v1611, 104
    %v1704 = vpop.permute.xlu0 %1703
    %1705 = vrot.lane.b32.xlu0 %v1612, 104
    %v1706 = vpop.permute.xlu0 %1705
    %1707 = vrot.lane.b32.xlu0 %v1613, 104
    %v1708 = vpop.permute.xlu0 %1707
    %1709 = vrot.lane.b32.xlu0 %v1614, 104
    %v1710 = vpop.permute.xlu0 %1709
    %vm1727 = vcmask 97280
    %v1728 = vsel %vm1727, %v1616, %v1680
    %v1729 = vsel %vm1727, %v1618, %v1682
    %v1730 = vsel %vm1727, %v1620, %v1684
    %v1731 = vsel %vm1727, %v1622, %v1686
    %v1732 = vsel %vm1727, %v1624, %v1688
    %v1733 = vsel %vm1727, %v1626, %v1690
    %v1734 = vsel %vm1727, %v1628, %v1692
    %v1735 = vsel %vm1727, %v1630, %v1694
    %v1736 = vsel %vm1727, %v1632, %v1696
    %v1737 = vsel %vm1727, %v1634, %v1698
    %v1738 = vsel %vm1727, %v1636, %v1700
    %v1739 = vsel %vm1727, %v1638, %v1702
    %v1740 = vsel %vm1727, %v1640, %v1704
    %v1741 = vsel %vm1727, %v1642, %v1706
    %v1742 = vsel %vm1727, %v1644, %v1708
    %v1743 = vsel %vm1727, %v1646, %v1710
    %v1744 = vand.u32 2147483647, %v1728
    %vm1745 = vcmp.le.f32.partialorder %v1744, 0.7853982
    %vm1746 = vcmp.lt.s32.totalorder %v1728, 0
    %v1747 = vand.u32 %v1728, 2139095040
    %v1748 = vshrl.u32 %v1747, 23
    %v1749 = vsub.s32 %v1748, 127
    %v1750 = vand.u32 2147483647, %v1728
    %v1751 = vand.u32 %v1750, 8388607
    %v1752 = vor.u32 %v1751, 8388608
    %v1753 = vsub.s32 0, %v1752
    %v1754 = vadd.s32 %v1749, 1
    %vm1755 = vcmp.gt.s32.totalorder %v1754, 0
    %v1756 = vsel %vm1755, %v1754, 0
    %v1757 = vshrl.u32 %v1756, 5
    %v1758 = vand.u32 %v1756, 31
    %v1759 = vsub.s32 32, %v1758
    %v1760 = vshrl.u32 683565275, %v1759
    %v1761 = vshll.u32 683565275, %v1758
    %v1762 = vshrl.u32 2475754826, %v1759
    %v1763 = vor.u32 %v1761, %v1762
    %v1764 = vshll.u32 2475754826, %v1758
    %v1765 = vshrl.u32 2131351028, %v1759
    %v1766 = vor.u32 %v1764, %v1765
    %v1767 = vshll.u32 2131351028, %v1758
    %v1768 = vshrl.u32 2102212464, %v1759
    %v1769 = vor.u32 %v1767, %v1768
    %v1770 = vshll.u32 2102212464, %v1758
    %v1771 = vshrl.u32 920167782, %v1759
    %v1772 = vor.u32 %v1770, %v1771
    %v1773 = vshll.u32 920167782, %v1758
    %v1774 = vshrl.u32 1326507024, %v1759
    %v1775 = vor.u32 %v1773, %v1774
    %vm1776 = vcmp.lt.s32.totalorder %v1757, 1
    %vm1777 = vcmp.lt.s32.totalorder %v1757, 2
    %vm1778 = vcmp.lt.s32.totalorder %v1757, 3
    %vm1779 = vcmp.lt.s32.totalorder %v1757, 4
    %v1780 = vsel %vm1776, %v1760, %v1763
    %v1781 = vsel %vm1779, %v1769, 2102212464
    %v1782 = vsel %vm1778, %v1766, %v1781
    %v1783 = vsel %vm1777, %v1780, %v1782
    %v1784 = vsel %vm1776, %v1763, %v1766
    %v1785 = vsel %vm1779, %v1772, 920167782
    %v1786 = vsel %vm1778, %v1769, %v1785
    %v1787 = vsel %vm1777, %v1784, %v1786
    %v1788 = vsel %vm1776, %v1766, %v1769
    %v1789 = vsel %vm1779, %v1775, 1326507024
    %v1790 = vsel %vm1778, %v1772, %v1789
    %v1791 = vsel %vm1777, %v1788, %v1790
    %v1792 = vshll.u32 %v1752, 8
    %v1793 = vand.u32 %v1792, 65535
    %v1794 = vshrl.u32 %v1792, 16
    %v1795 = vand.u32 %v1791, 65535
    %v1796 = vshrl.u32 %v1791, 16
    %v1797 = vmul.u32 %v1793, %v1795
    %v1798 = vmul.u32 %v1793, %v1796
    %v1799 = vmul.u32 %v1794, %v1795
    %v1800 = vmul.u32 %v1794, %v1796
    %v1801 = vshll.u32 %v1798, 16
    %v1802 = vshrl.u32 %v1798, 16
    %v1803 = vshll.u32 %v1799, 16
    %v1804 = vshrl.u32 %v1799, 16
    %vm1805 = vc.u32 %v1797, %v1801
    %v1806 = vsel %vm1805, 1, 0
    %v1807 = vadd.s32 %v1797, %v1801
    %v1808 = vadd.s32 %v1800, %v1806
    %vm1809 = vc.u32 %v1807, %v1803
    %v1810 = vsel %vm1809, 1, 0
    %v1811 = vadd.s32 %v1807, %v1803
    %v1812 = vadd.s32 %v1808, %v1810
    %v1813 = vadd.s32 %v1812, %v1802
    %v1814 = vadd.s32 %v1813, %v1804
    %v1815 = vand.u32 %v1792, 65535
    %v1816 = vshrl.u32 %v1792, 16
    %v1817 = vand.u32 %v1787, 65535
    %v1818 = vshrl.u32 %v1787, 16
    %v1819 = vmul.u32 %v1815, %v1817
    %v1820 = vmul.u32 %v1815, %v1818
    %v1821 = vmul.u32 %v1816, %v1817
    %v1822 = vmul.u32 %v1816, %v1818
    %v1823 = vshll.u32 %v1820, 16
    %v1824 = vshrl.u32 %v1820, 16
    %v1825 = vshll.u32 %v1821, 16
    %v1826 = vshrl.u32 %v1821, 16
    %vm1827 = vc.u32 %v1819, %v1823
    %v1828 = vsel %vm1827, 1, 0
    %v1829 = vadd.s32 %v1819, %v1823
    %v1830 = vadd.s32 %v1822, %v1828
    %vm1831 = vc.u32 %v1829, %v1825
    %v1832 = vsel %vm1831, 1, 0
    %v1833 = vadd.s32 %v1829, %v1825
    %v1834 = vadd.s32 %v1830, %v1832
    %v1835 = vadd.s32 %v1834, %v1824
    %v1836 = vadd.s32 %v1835, %v1826
    %v1837 = vmul.u32 %v1792, %v1783
    %v1838 = vadd.s32 %v1814, %v1833
    %vm1839 = vc.u32 %v1814, %v1833
    %v1840 = vadd.s32 %v1836, 1
    %v1841 = vsel %vm1839, %v1840, %v1836
    %v1842 = vadd.s32 %v1837, %v1841
    %v1843 = vadd.s32 %v1842, 536870912
    %v1844 = vshrl.u32 %v1843, 30
    %v1845 = vshll.u32 %v1844, 30
    %v1846 = vsub.s32 %v1842, %v1845
    %vm1847 = vcmp.lt.s32.totalorder %v1846, 0
    %v1848 = vsub.s32 0, %v1846
    %v1849 = vsel %vm1847, %v1848, %v1846
    %v1850 = vclz %v1849
    %v1851 = vsub.s32 %v1850, 2
    %vm1852 = vcmp.gt.s32.totalorder 0, %v1851
    %v1853 = vsel %vm1852, 0, %v1851
    %v1854 = vsub.s32 32, %v1853
    %v1855 = vshll.u32 %v1846, %v1853
    %v1856 = vshrl.u32 %v1838, %v1854
    %v1857 = vor.u32 %v1855, %v1856
    %v1858 = vsub.s32 4294967266, %v1853
    %v1859 = vadd.s32 %v1858, 127
    %v1860 = vshll.u32 %v1859, 23
    %v1861 = vor.u32 4788187, %v1860
    %v1862 = vand.u32 2147483647, %v1861
    %v1864 = vcvt.s32.f32 %v1857
    %v1865 = vmul.f32 %v1864, %v1862
    %v1866 = vxor.u32 %v1865, 2147483648
    %v1867 = vsel %vm1746, %v1866, %v1865
    %v1868 = vsub.s32 4, %v1844
    %v1869 = vsel %vm1746, %v1868, %v1844
    %v1870 = vsel %vm1745, %v1728, %v1867
    %v1871 = vsel %vm1745, 0, %v1869
    %v1872 = vmul.f32 %v1870, %v1870
    %v1873 = vmul.f32 %v1872, -0.001358992
    %v1874 = vadd.f32 %v1873, 0.041655596
    %v1875 = vmul.f32 %v1872, %v1874
    %v1876 = vadd.f32 %v1875, -0.4999988
    %v1877 = vmul.f32 %v1872, %v1876
    %v1878 = vadd.f32 1.0, %v1877
    %v1879 = vmul.f32 %v1870, %v1870
    %v1880 = vmul.f32 %v1879, -0.00019511016
    %v1881 = vadd.f32 %v1880, 0.008332121
    %v1882 = vmul.f32 %v1879, %v1881
    %v1883 = vadd.f32 %v1882, -0.16666654
    %v1884 = vmul.f32 %v1879, %v1883
    %v1885 = vadd.f32 %v1884, 1.0
    %v1886 = vmul.f32 %v1885, %v1870
    %vm1887 = vweird.f32 %v1728
    %v1888 = vadd.s32 %v1871, 3
    %v1889 = vand.u32 %v1888, 3
    %vm1890 = vcmp.lt.s32.totalorder %v1889, 2
    %vm1891 = vcmp.eq.s32.totalorder %v1889, 0
    %v1892 = vxor.u32 %v1886, 2147483648
    %v1893 = vsel %vm1891, %v1878, %v1892
    %vm1894 = vcmp.eq.s32.totalorder %v1889, 2
    %v1895 = vxor.u32 %v1878, 2147483648
    %v1896 = vsel %vm1894, %v1895, %v1886
    %v1897 = vsel %vm1890, %v1893, %v1896
    %v1898 = vsel %vm1887, nan, %v1897
    %v1899 = vand.u32 2147483647, %v1729
    %vm1900 = vcmp.le.f32.partialorder %v1899, 0.7853982
    %vm1901 = vcmp.lt.s32.totalorder %v1729, 0
    %v1902 = vand.u32 %v1729, 2139095040
    %v1903 = vshrl.u32 %v1902, 23
    %v1904 = vsub.s32 %v1903, 127
    %v1905 = vand.u32 2147483647, %v1729
    %v1906 = vand.u32 %v1905, 8388607
    %v1907 = vor.u32 %v1906, 8388608
    %v1908 = vsub.s32 0, %v1907
    %v1909 = vadd.s32 %v1904, 1
    %vm1910 = vcmp.gt.s32.totalorder %v1909, 0
    %v1911 = vsel %vm1910, %v1909, 0
    %v1912 = vshrl.u32 %v1911, 5
    %v1913 = vand.u32 %v1911, 31
    %v1914 = vsub.s32 32, %v1913
    %v1915 = vshrl.u32 683565275, %v1914
    %v1916 = vshll.u32 683565275, %v1913
    %v1917 = vshrl.u32 2475754826, %v1914
    %v1918 = vor.u32 %v1916, %v1917
    %v1919 = vshll.u32 2475754826, %v1913
    %v1920 = vshrl.u32 2131351028, %v1914
    %v1921 = vor.u32 %v1919, %v1920
    %v1922 = vshll.u32 2131351028, %v1913
    %v1923 = vshrl.u32 2102212464, %v1914
    %v1924 = vor.u32 %v1922, %v1923
    %v1925 = vshll.u32 2102212464, %v1913
    %v1926 = vshrl.u32 920167782, %v1914
    %v1927 = vor.u32 %v1925, %v1926
    %v1928 = vshll.u32 920167782, %v1913
    %v1929 = vshrl.u32 1326507024, %v1914
    %v1930 = vor.u32 %v1928, %v1929
    %vm1931 = vcmp.lt.s32.totalorder %v1912, 1
    %vm1932 = vcmp.lt.s32.totalorder %v1912, 2
    %vm1933 = vcmp.lt.s32.totalorder %v1912, 3
    %vm1934 = vcmp.lt.s32.totalorder %v1912, 4
    %v1935 = vsel %vm1931, %v1915, %v1918
    %v1936 = vsel %vm1934, %v1924, 2102212464
    %v1937 = vsel %vm1933, %v1921, %v1936
    %v1938 = vsel %vm1932, %v1935, %v1937
    %v1939 = vsel %vm1931, %v1918, %v1921
    %v1940 = vsel %vm1934, %v1927, 920167782
    %v1941 = vsel %vm1933, %v1924, %v1940
    %v1942 = vsel %vm1932, %v1939, %v1941
    %v1943 = vsel %vm1931, %v1921, %v1924
    %v1944 = vsel %vm1934, %v1930, 1326507024
    %v1945 = vsel %vm1933, %v1927, %v1944
    %v1946 = vsel %vm1932, %v1943, %v1945
    %v1947 = vshll.u32 %v1907, 8
    %v1948 = vand.u32 %v1947, 65535
    %v1949 = vshrl.u32 %v1947, 16
    %v1950 = vand.u32 %v1946, 65535
    %v1951 = vshrl.u32 %v1946, 16
    %v1952 = vmul.u32 %v1948, %v1950
    %v1953 = vmul.u32 %v1948, %v1951
    %v1954 = vmul.u32 %v1949, %v1950
    %v1955 = vmul.u32 %v1949, %v1951
    %v1956 = vshll.u32 %v1953, 16
    %v1957 = vshrl.u32 %v1953, 16
    %v1958 = vshll.u32 %v1954, 16
    %v1959 = vshrl.u32 %v1954, 16
    %vm1960 = vc.u32 %v1952, %v1956
    %v1961 = vsel %vm1960, 1, 0
    %v1962 = vadd.s32 %v1952, %v1956
    %v1963 = vadd.s32 %v1955, %v1961
    %vm1964 = vc.u32 %v1962, %v1958
    %v1965 = vsel %vm1964, 1, 0
    %v1966 = vadd.s32 %v1962, %v1958
    %v1967 = vadd.s32 %v1963, %v1965
    %v1968 = vadd.s32 %v1967, %v1957
    %v1969 = vadd.s32 %v1968, %v1959
    %v1970 = vand.u32 %v1947, 65535
    %v1971 = vshrl.u32 %v1947, 16
    %v1972 = vand.u32 %v1942, 65535
    %v1973 = vshrl.u32 %v1942, 16
    %v1974 = vmul.u32 %v1970, %v1972
    %v1975 = vmul.u32 %v1970, %v1973
    %v1976 = vmul.u32 %v1971, %v1972
    %v1977 = vmul.u32 %v1971, %v1973
    %v1978 = vshll.u32 %v1975, 16
    %v1979 = vshrl.u32 %v1975, 16
    %v1980 = vshll.u32 %v1976, 16
    %v1981 = vshrl.u32 %v1976, 16
    %vm1982 = vc.u32 %v1974, %v1978
    %v1983 = vsel %vm1982, 1, 0
    %v1984 = vadd.s32 %v1974, %v1978
    %v1985 = vadd.s32 %v1977, %v1983
    %vm1986 = vc.u32 %v1984, %v1980
    %v1987 = vsel %vm1986, 1, 0
    %v1988 = vadd.s32 %v1984, %v1980
    %v1989 = vadd.s32 %v1985, %v1987
    %v1990 = vadd.s32 %v1989, %v1979
    %v1991 = vadd.s32 %v1990, %v1981
    %v1992 = vmul.u32 %v1947, %v1938
    %v1993 = vadd.s32 %v1969, %v1988
    %vm1994 = vc.u32 %v1969, %v1988
    %v1995 = vadd.s32 %v1991, 1
    %v1996 = vsel %vm1994, %v1995, %v1991
    %v1997 = vadd.s32 %v1992, %v1996
    %v1998 = vadd.s32 %v1997, 536870912
    %v1999 = vshrl.u32 %v1998, 30
    %v2000 = vshll.u32 %v1999, 30
    %v2001 = vsub.s32 %v1997, %v2000
    %vm2002 = vcmp.lt.s32.totalorder %v2001, 0
    %v2003 = vsub.s32 0, %v2001
    %v2004 = vsel %vm2002, %v2003, %v2001
    %v2005 = vclz %v2004
    %v2006 = vsub.s32 %v2005, 2
    %vm2007 = vcmp.gt.s32.totalorder 0, %v2006
    %v2008 = vsel %vm2007, 0, %v2006
    %v2009 = vsub.s32 32, %v2008
    %v2010 = vshll.u32 %v2001, %v2008
    %v2011 = vshrl.u32 %v1993, %v2009
    %v2012 = vor.u32 %v2010, %v2011
    %v2013 = vsub.s32 4294967266, %v2008
    %v2014 = vadd.s32 %v2013, 127
    %v2015 = vshll.u32 %v2014, 23
    %v2016 = vor.u32 4788187, %v2015
    %v2017 = vand.u32 2147483647, %v2016
    %v2019 = vcvt.s32.f32 %v2012
    %v2020 = vmul.f32 %v2019, %v2017
    %v2021 = vxor.u32 %v2020, 2147483648
    %v2022 = vsel %vm1901, %v2021, %v2020
    %v2023 = vsub.s32 4, %v1999
    %v2024 = vsel %vm1901, %v2023, %v1999
    %v2025 = vsel %vm1900, %v1729, %v2022
    %v2026 = vsel %vm1900, 0, %v2024
    %v2027 = vmul.f32 %v2025, %v2025
    %v2028 = vmul.f32 %v2027, -0.001358992
    %v2029 = vadd.f32 %v2028, 0.041655596
    %v2030 = vmul.f32 %v2027, %v2029
    %v2031 = vadd.f32 %v2030, -0.4999988
    %v2032 = vmul.f32 %v2027, %v2031
    %v2033 = vadd.f32 1.0, %v2032
    %v2034 = vmul.f32 %v2025, %v2025
    %v2035 = vmul.f32 %v2034, -0.00019511016
    %v2036 = vadd.f32 %v2035, 0.008332121
    %v2037 = vmul.f32 %v2034, %v2036
    %v2038 = vadd.f32 %v2037, -0.16666654
    %v2039 = vmul.f32 %v2034, %v2038
    %v2040 = vadd.f32 %v2039, 1.0
    %v2041 = vmul.f32 %v2040, %v2025
    %vm2042 = vweird.f32 %v1729
    %v2043 = vadd.s32 %v2026, 3
    %v2044 = vand.u32 %v2043, 3
    %vm2045 = vcmp.lt.s32.totalorder %v2044, 2
    %vm2046 = vcmp.eq.s32.totalorder %v2044, 0
    %v2047 = vxor.u32 %v2041, 2147483648
    %v2048 = vsel %vm2046, %v2033, %v2047
    %vm2049 = vcmp.eq.s32.totalorder %v2044, 2
    %v2050 = vxor.u32 %v2033, 2147483648
    %v2051 = vsel %vm2049, %v2050, %v2041
    %v2052 = vsel %vm2045, %v2048, %v2051
    %v2053 = vsel %vm2042, nan, %v2052
    %v2054 = vand.u32 2147483647, %v1730
    %vm2055 = vcmp.le.f32.partialorder %v2054, 0.7853982
    %vm2056 = vcmp.lt.s32.totalorder %v1730, 0
    %v2057 = vand.u32 %v1730, 2139095040
    %v2058 = vshrl.u32 %v2057, 23
    %v2059 = vsub.s32 %v2058, 127
    %v2060 = vand.u32 2147483647, %v1730
    %v2061 = vand.u32 %v2060, 8388607
    %v2062 = vor.u32 %v2061, 8388608
    %v2063 = vsub.s32 0, %v2062
    %v2064 = vadd.s32 %v2059, 1
    %vm2065 = vcmp.gt.s32.totalorder %v2064, 0
    %v2066 = vsel %vm2065, %v2064, 0
    %v2067 = vshrl.u32 %v2066, 5
    %v2068 = vand.u32 %v2066, 31
    %v2069 = vsub.s32 32, %v2068
    %v2070 = vshrl.u32 683565275, %v2069
    %v2071 = vshll.u32 683565275, %v2068
    %v2072 = vshrl.u32 2475754826, %v2069
    %v2073 = vor.u32 %v2071, %v2072
    %v2074 = vshll.u32 2475754826, %v2068
    %v2075 = vshrl.u32 2131351028, %v2069
    %v2076 = vor.u32 %v2074, %v2075
    %v2077 = vshll.u32 2131351028, %v2068
    %v2078 = vshrl.u32 2102212464, %v2069
    %v2079 = vor.u32 %v2077, %v2078
    %v2080 = vshll.u32 2102212464, %v2068
    %v2081 = vshrl.u32 920167782, %v2069
    %v2082 = vor.u32 %v2080, %v2081
    %v2083 = vshll.u32 920167782, %v2068
    %v2084 = vshrl.u32 1326507024, %v2069
    %v2085 = vor.u32 %v2083, %v2084
    %vm2086 = vcmp.lt.s32.totalorder %v2067, 1
    %vm2087 = vcmp.lt.s32.totalorder %v2067, 2
    %vm2088 = vcmp.lt.s32.totalorder %v2067, 3
    %vm2089 = vcmp.lt.s32.totalorder %v2067, 4
    %v2090 = vsel %vm2086, %v2070, %v2073
    %v2091 = vsel %vm2089, %v2079, 2102212464
    %v2092 = vsel %vm2088, %v2076, %v2091
    %v2093 = vsel %vm2087, %v2090, %v2092
    %v2094 = vsel %vm2086, %v2073, %v2076
    %v2095 = vsel %vm2089, %v2082, 920167782
    %v2096 = vsel %vm2088, %v2079, %v2095
    %v2097 = vsel %vm2087, %v2094, %v2096
    %v2098 = vsel %vm2086, %v2076, %v2079
    %v2099 = vsel %vm2089, %v2085, 1326507024
    %v2100 = vsel %vm2088, %v2082, %v2099
    %v2101 = vsel %vm2087, %v2098, %v2100
    %v2102 = vshll.u32 %v2062, 8
    %v2103 = vand.u32 %v2102, 65535
    %v2104 = vshrl.u32 %v2102, 16
    %v2105 = vand.u32 %v2101, 65535
    %v2106 = vshrl.u32 %v2101, 16
    %v2107 = vmul.u32 %v2103, %v2105
    %v2108 = vmul.u32 %v2103, %v2106
    %v2109 = vmul.u32 %v2104, %v2105
    %v2110 = vmul.u32 %v2104, %v2106
    %v2111 = vshll.u32 %v2108, 16
    %v2112 = vshrl.u32 %v2108, 16
    %v2113 = vshll.u32 %v2109, 16
    %v2114 = vshrl.u32 %v2109, 16
    %vm2115 = vc.u32 %v2107, %v2111
    %v2116 = vsel %vm2115, 1, 0
    %v2117 = vadd.s32 %v2107, %v2111
    %v2118 = vadd.s32 %v2110, %v2116
    %vm2119 = vc.u32 %v2117, %v2113
    %v2120 = vsel %vm2119, 1, 0
    %v2121 = vadd.s32 %v2117, %v2113
    %v2122 = vadd.s32 %v2118, %v2120
    %v2123 = vadd.s32 %v2122, %v2112
    %v2124 = vadd.s32 %v2123, %v2114
    %v2125 = vand.u32 %v2102, 65535
    %v2126 = vshrl.u32 %v2102, 16
    %v2127 = vand.u32 %v2097, 65535
    %v2128 = vshrl.u32 %v2097, 16
    %v2129 = vmul.u32 %v2125, %v2127
    %v2130 = vmul.u32 %v2125, %v2128
    %v2131 = vmul.u32 %v2126, %v2127
    %v2132 = vmul.u32 %v2126, %v2128
    %v2133 = vshll.u32 %v2130, 16
    %v2134 = vshrl.u32 %v2130, 16
    %v2135 = vshll.u32 %v2131, 16
    %v2136 = vshrl.u32 %v2131, 16
    %vm2137 = vc.u32 %v2129, %v2133
    %v2138 = vsel %vm2137, 1, 0
    %v2139 = vadd.s32 %v2129, %v2133
    %v2140 = vadd.s32 %v2132, %v2138
    %vm2141 = vc.u32 %v2139, %v2135
    %v2142 = vsel %vm2141, 1, 0
    %v2143 = vadd.s32 %v2139, %v2135
    %v2144 = vadd.s32 %v2140, %v2142
    %v2145 = vadd.s32 %v2144, %v2134
    %v2146 = vadd.s32 %v2145, %v2136
    %v2147 = vmul.u32 %v2102, %v2093
    %v2148 = vadd.s32 %v2124, %v2143
    %vm2149 = vc.u32 %v2124, %v2143
    %v2150 = vadd.s32 %v2146, 1
    %v2151 = vsel %vm2149, %v2150, %v2146
    %v2152 = vadd.s32 %v2147, %v2151
    %v2153 = vadd.s32 %v2152, 536870912
    %v2154 = vshrl.u32 %v2153, 30
    %v2155 = vshll.u32 %v2154, 30
    %v2156 = vsub.s32 %v2152, %v2155
    %vm2157 = vcmp.lt.s32.totalorder %v2156, 0
    %v2158 = vsub.s32 0, %v2156
    %v2159 = vsel %vm2157, %v2158, %v2156
    %v2160 = vclz %v2159
    %v2161 = vsub.s32 %v2160, 2
    %vm2162 = vcmp.gt.s32.totalorder 0, %v2161
    %v2163 = vsel %vm2162, 0, %v2161
    %v2164 = vsub.s32 32, %v2163
    %v2165 = vshll.u32 %v2156, %v2163
    %v2166 = vshrl.u32 %v2148, %v2164
    %v2167 = vor.u32 %v2165, %v2166
    %v2168 = vsub.s32 4294967266, %v2163
    %v2169 = vadd.s32 %v2168, 127
    %v2170 = vshll.u32 %v2169, 23
    %v2171 = vor.u32 4788187, %v2170
    %v2172 = vand.u32 2147483647, %v2171
    %v2174 = vcvt.s32.f32 %v2167
    %v2175 = vmul.f32 %v2174, %v2172
    %v2176 = vxor.u32 %v2175, 2147483648
    %v2177 = vsel %vm2056, %v2176, %v2175
    %v2178 = vsub.s32 4, %v2154
    %v2179 = vsel %vm2056, %v2178, %v2154
    %v2180 = vsel %vm2055, %v1730, %v2177
    %v2181 = vsel %vm2055, 0, %v2179
    %v2182 = vmul.f32 %v2180, %v2180
    %v2183 = vmul.f32 %v2182, -0.001358992
    %v2184 = vadd.f32 %v2183, 0.041655596
    %v2185 = vmul.f32 %v2182, %v2184
    %v2186 = vadd.f32 %v2185, -0.4999988
    %v2187 = vmul.f32 %v2182, %v2186
    %v2188 = vadd.f32 1.0, %v2187
    %v2189 = vmul.f32 %v2180, %v2180
    %v2190 = vmul.f32 %v2189, -0.00019511016
    %v2191 = vadd.f32 %v2190, 0.008332121
    %v2192 = vmul.f32 %v2189, %v2191
    %v2193 = vadd.f32 %v2192, -0.16666654
    %v2194 = vmul.f32 %v2189, %v2193
    %v2195 = vadd.f32 %v2194, 1.0
    %v2196 = vmul.f32 %v2195, %v2180
    %vm2197 = vweird.f32 %v1730
    %v2198 = vadd.s32 %v2181, 3
    %v2199 = vand.u32 %v2198, 3
    %vm2200 = vcmp.lt.s32.totalorder %v2199, 2
    %vm2201 = vcmp.eq.s32.totalorder %v2199, 0
    %v2202 = vxor.u32 %v2196, 2147483648
    %v2203 = vsel %vm2201, %v2188, %v2202
    %vm2204 = vcmp.eq.s32.totalorder %v2199, 2
    %v2205 = vxor.u32 %v2188, 2147483648
    %v2206 = vsel %vm2204, %v2205, %v2196
    %v2207 = vsel %vm2200, %v2203, %v2206
    %v2208 = vsel %vm2197, nan, %v2207
    %v2209 = vand.u32 2147483647, %v1731
    %vm2210 = vcmp.le.f32.partialorder %v2209, 0.7853982
    %vm2211 = vcmp.lt.s32.totalorder %v1731, 0
    %v2212 = vand.u32 %v1731, 2139095040
    %v2213 = vshrl.u32 %v2212, 23
    %v2214 = vsub.s32 %v2213, 127
    %v2215 = vand.u32 2147483647, %v1731
    %v2216 = vand.u32 %v2215, 8388607
    %v2217 = vor.u32 %v2216, 8388608
    %v2218 = vsub.s32 0, %v2217
    %v2219 = vadd.s32 %v2214, 1
    %vm2220 = vcmp.gt.s32.totalorder %v2219, 0
    %v2221 = vsel %vm2220, %v2219, 0
    %v2222 = vshrl.u32 %v2221, 5
    %v2223 = vand.u32 %v2221, 31
    %v2224 = vsub.s32 32, %v2223
    %v2225 = vshrl.u32 683565275, %v2224
    %v2226 = vshll.u32 683565275, %v2223
    %v2227 = vshrl.u32 2475754826, %v2224
    %v2228 = vor.u32 %v2226, %v2227
    %v2229 = vshll.u32 2475754826, %v2223
    %v2230 = vshrl.u32 2131351028, %v2224
    %v2231 = vor.u32 %v2229, %v2230
    %v2232 = vshll.u32 2131351028, %v2223
    %v2233 = vshrl.u32 2102212464, %v2224
    %v2234 = vor.u32 %v2232, %v2233
    %v2235 = vshll.u32 2102212464, %v2223
    %v2236 = vshrl.u32 920167782, %v2224
    %v2237 = vor.u32 %v2235, %v2236
    %v2238 = vshll.u32 920167782, %v2223
    %v2239 = vshrl.u32 1326507024, %v2224
    %v2240 = vor.u32 %v2238, %v2239
    %vm2241 = vcmp.lt.s32.totalorder %v2222, 1
    %vm2242 = vcmp.lt.s32.totalorder %v2222, 2
    %vm2243 = vcmp.lt.s32.totalorder %v2222, 3
    %vm2244 = vcmp.lt.s32.totalorder %v2222, 4
    %v2245 = vsel %vm2241, %v2225, %v2228
    %v2246 = vsel %vm2244, %v2234, 2102212464
    %v2247 = vsel %vm2243, %v2231, %v2246
    %v2248 = vsel %vm2242, %v2245, %v2247
    %v2249 = vsel %vm2241, %v2228, %v2231
    %v2250 = vsel %vm2244, %v2237, 920167782
    %v2251 = vsel %vm2243, %v2234, %v2250
    %v2252 = vsel %vm2242, %v2249, %v2251
    %v2253 = vsel %vm2241, %v2231, %v2234
    %v2254 = vsel %vm2244, %v2240, 1326507024
    %v2255 = vsel %vm2243, %v2237, %v2254
    %v2256 = vsel %vm2242, %v2253, %v2255
    %v2257 = vshll.u32 %v2217, 8
    %v2258 = vand.u32 %v2257, 65535
    %v2259 = vshrl.u32 %v2257, 16
    %v2260 = vand.u32 %v2256, 65535
    %v2261 = vshrl.u32 %v2256, 16
    %v2262 = vmul.u32 %v2258, %v2260
    %v2263 = vmul.u32 %v2258, %v2261
    %v2264 = vmul.u32 %v2259, %v2260
    %v2265 = vmul.u32 %v2259, %v2261
    %v2266 = vshll.u32 %v2263, 16
    %v2267 = vshrl.u32 %v2263, 16
    %v2268 = vshll.u32 %v2264, 16
    %v2269 = vshrl.u32 %v2264, 16
    %vm2270 = vc.u32 %v2262, %v2266
    %v2271 = vsel %vm2270, 1, 0
    %v2272 = vadd.s32 %v2262, %v2266
    %v2273 = vadd.s32 %v2265, %v2271
    %vm2274 = vc.u32 %v2272, %v2268
    %v2275 = vsel %vm2274, 1, 0
    %v2276 = vadd.s32 %v2272, %v2268
    %v2277 = vadd.s32 %v2273, %v2275
    %v2278 = vadd.s32 %v2277, %v2267
    %v2279 = vadd.s32 %v2278, %v2269
    %v2280 = vand.u32 %v2257, 65535
    %v2281 = vshrl.u32 %v2257, 16
    %v2282 = vand.u32 %v2252, 65535
    %v2283 = vshrl.u32 %v2252, 16
    %v2284 = vmul.u32 %v2280, %v2282
    %v2285 = vmul.u32 %v2280, %v2283
    %v2286 = vmul.u32 %v2281, %v2282
    %v2287 = vmul.u32 %v2281, %v2283
    %v2288 = vshll.u32 %v2285, 16
    %v2289 = vshrl.u32 %v2285, 16
    %v2290 = vshll.u32 %v2286, 16
    %v2291 = vshrl.u32 %v2286, 16
    %vm2292 = vc.u32 %v2284, %v2288
    %v2293 = vsel %vm2292, 1, 0
    %v2294 = vadd.s32 %v2284, %v2288
    %v2295 = vadd.s32 %v2287, %v2293
    %vm2296 = vc.u32 %v2294, %v2290
    %v2297 = vsel %vm2296, 1, 0
    %v2298 = vadd.s32 %v2294, %v2290
    %v2299 = vadd.s32 %v2295, %v2297
    %v2300 = vadd.s32 %v2299, %v2289
    %v2301 = vadd.s32 %v2300, %v2291
    %v2302 = vmul.u32 %v2257, %v2248
    %v2303 = vadd.s32 %v2279, %v2298
    %vm2304 = vc.u32 %v2279, %v2298
    %v2305 = vadd.s32 %v2301, 1
    %v2306 = vsel %vm2304, %v2305, %v2301
    %v2307 = vadd.s32 %v2302, %v2306
    %v2308 = vadd.s32 %v2307, 536870912
    %v2309 = vshrl.u32 %v2308, 30
    %v2310 = vshll.u32 %v2309, 30
    %v2311 = vsub.s32 %v2307, %v2310
    %vm2312 = vcmp.lt.s32.totalorder %v2311, 0
    %v2313 = vsub.s32 0, %v2311
    %v2314 = vsel %vm2312, %v2313, %v2311
    %v2315 = vclz %v2314
    %v2316 = vsub.s32 %v2315, 2
    %vm2317 = vcmp.gt.s32.totalorder 0, %v2316
    %v2318 = vsel %vm2317, 0, %v2316
    %v2319 = vsub.s32 32, %v2318
    %v2320 = vshll.u32 %v2311, %v2318
    %v2321 = vshrl.u32 %v2303, %v2319
    %v2322 = vor.u32 %v2320, %v2321
    %v2323 = vsub.s32 4294967266, %v2318
    %v2324 = vadd.s32 %v2323, 127
    %v2325 = vshll.u32 %v2324, 23
    %v2326 = vor.u32 4788187, %v2325
    %v2327 = vand.u32 2147483647, %v2326
    %v2329 = vcvt.s32.f32 %v2322
    %v2330 = vmul.f32 %v2329, %v2327
    %v2331 = vxor.u32 %v2330, 2147483648
    %v2332 = vsel %vm2211, %v2331, %v2330
    %v2333 = vsub.s32 4, %v2309
    %v2334 = vsel %vm2211, %v2333, %v2309
    %v2335 = vsel %vm2210, %v1731, %v2332
    %v2336 = vsel %vm2210, 0, %v2334
    %v2337 = vmul.f32 %v2335, %v2335
    %v2338 = vmul.f32 %v2337, -0.001358992
    %v2339 = vadd.f32 %v2338, 0.041655596
    %v2340 = vmul.f32 %v2337, %v2339
    %v2341 = vadd.f32 %v2340, -0.4999988
    %v2342 = vmul.f32 %v2337, %v2341
    %v2343 = vadd.f32 1.0, %v2342
    %v2344 = vmul.f32 %v2335, %v2335
    %v2345 = vmul.f32 %v2344, -0.00019511016
    %v2346 = vadd.f32 %v2345, 0.008332121
    %v2347 = vmul.f32 %v2344, %v2346
    %v2348 = vadd.f32 %v2347, -0.16666654
    %v2349 = vmul.f32 %v2344, %v2348
    %v2350 = vadd.f32 %v2349, 1.0
    %v2351 = vmul.f32 %v2350, %v2335
    %vm2352 = vweird.f32 %v1731
    %v2353 = vadd.s32 %v2336, 3
    %v2354 = vand.u32 %v2353, 3
    %vm2355 = vcmp.lt.s32.totalorder %v2354, 2
    %vm2356 = vcmp.eq.s32.totalorder %v2354, 0
    %v2357 = vxor.u32 %v2351, 2147483648
    %v2358 = vsel %vm2356, %v2343, %v2357
    %vm2359 = vcmp.eq.s32.totalorder %v2354, 2
    %v2360 = vxor.u32 %v2343, 2147483648
    %v2361 = vsel %vm2359, %v2360, %v2351
    %v2362 = vsel %vm2355, %v2358, %v2361
    %v2363 = vsel %vm2352, nan, %v2362
    %v2364 = vand.u32 2147483647, %v1732
    %vm2365 = vcmp.le.f32.partialorder %v2364, 0.7853982
    %vm2366 = vcmp.lt.s32.totalorder %v1732, 0
    %v2367 = vand.u32 %v1732, 2139095040
    %v2368 = vshrl.u32 %v2367, 23
    %v2369 = vsub.s32 %v2368, 127
    %v2370 = vand.u32 2147483647, %v1732
    %v2371 = vand.u32 %v2370, 8388607
    %v2372 = vor.u32 %v2371, 8388608
    %v2373 = vsub.s32 0, %v2372
    %v2374 = vadd.s32 %v2369, 1
    %vm2375 = vcmp.gt.s32.totalorder %v2374, 0
    %v2376 = vsel %vm2375, %v2374, 0
    %v2377 = vshrl.u32 %v2376, 5
    %v2378 = vand.u32 %v2376, 31
    %v2379 = vsub.s32 32, %v2378
    %v2380 = vshrl.u32 683565275, %v2379
    %v2381 = vshll.u32 683565275, %v2378
    %v2382 = vshrl.u32 2475754826, %v2379
    %v2383 = vor.u32 %v2381, %v2382
    %v2384 = vshll.u32 2475754826, %v2378
    %v2385 = vshrl.u32 2131351028, %v2379
    %v2386 = vor.u32 %v2384, %v2385
    %v2387 = vshll.u32 2131351028, %v2378
    %v2388 = vshrl.u32 2102212464, %v2379
    %v2389 = vor.u32 %v2387, %v2388
    %v2390 = vshll.u32 2102212464, %v2378
    %v2391 = vshrl.u32 920167782, %v2379
    %v2392 = vor.u32 %v2390, %v2391
    %v2393 = vshll.u32 920167782, %v2378
    %v2394 = vshrl.u32 1326507024, %v2379
    %v2395 = vor.u32 %v2393, %v2394
    %vm2396 = vcmp.lt.s32.totalorder %v2377, 1
    %vm2397 = vcmp.lt.s32.totalorder %v2377, 2
    %vm2398 = vcmp.lt.s32.totalorder %v2377, 3
    %vm2399 = vcmp.lt.s32.totalorder %v2377, 4
    %v2400 = vsel %vm2396, %v2380, %v2383
    %v2401 = vsel %vm2399, %v2389, 2102212464
    %v2402 = vsel %vm2398, %v2386, %v2401
    %v2403 = vsel %vm2397, %v2400, %v2402
    %v2404 = vsel %vm2396, %v2383, %v2386
    %v2405 = vsel %vm2399, %v2392, 920167782
    %v2406 = vsel %vm2398, %v2389, %v2405
    %v2407 = vsel %vm2397, %v2404, %v2406
    %v2408 = vsel %vm2396, %v2386, %v2389
    %v2409 = vsel %vm2399, %v2395, 1326507024
    %v2410 = vsel %vm2398, %v2392, %v2409
    %v2411 = vsel %vm2397, %v2408, %v2410
    %v2412 = vshll.u32 %v2372, 8
    %v2413 = vand.u32 %v2412, 65535
    %v2414 = vshrl.u32 %v2412, 16
    %v2415 = vand.u32 %v2411, 65535
    %v2416 = vshrl.u32 %v2411, 16
    %v2417 = vmul.u32 %v2413, %v2415
    %v2418 = vmul.u32 %v2413, %v2416
    %v2419 = vmul.u32 %v2414, %v2415
    %v2420 = vmul.u32 %v2414, %v2416
    %v2421 = vshll.u32 %v2418, 16
    %v2422 = vshrl.u32 %v2418, 16
    %v2423 = vshll.u32 %v2419, 16
    %v2424 = vshrl.u32 %v2419, 16
    %vm2425 = vc.u32 %v2417, %v2421
    %v2426 = vsel %vm2425, 1, 0
    %v2427 = vadd.s32 %v2417, %v2421
    %v2428 = vadd.s32 %v2420, %v2426
    %vm2429 = vc.u32 %v2427, %v2423
    %v2430 = vsel %vm2429, 1, 0
    %v2431 = vadd.s32 %v2427, %v2423
    %v2432 = vadd.s32 %v2428, %v2430
    %v2433 = vadd.s32 %v2432, %v2422
    %v2434 = vadd.s32 %v2433, %v2424
    %v2435 = vand.u32 %v2412, 65535
    %v2436 = vshrl.u32 %v2412, 16
    %v2437 = vand.u32 %v2407, 65535
    %v2438 = vshrl.u32 %v2407, 16
    %v2439 = vmul.u32 %v2435, %v2437
    %v2440 = vmul.u32 %v2435, %v2438
    %v2441 = vmul.u32 %v2436, %v2437
    %v2442 = vmul.u32 %v2436, %v2438
    %v2443 = vshll.u32 %v2440, 16
    %v2444 = vshrl.u32 %v2440, 16
    %v2445 = vshll.u32 %v2441, 16
    %v2446 = vshrl.u32 %v2441, 16
    %vm2447 = vc.u32 %v2439, %v2443
    %v2448 = vsel %vm2447, 1, 0
    %v2449 = vadd.s32 %v2439, %v2443
    %v2450 = vadd.s32 %v2442, %v2448
    %vm2451 = vc.u32 %v2449, %v2445
    %v2452 = vsel %vm2451, 1, 0
    %v2453 = vadd.s32 %v2449, %v2445
    %v2454 = vadd.s32 %v2450, %v2452
    %v2455 = vadd.s32 %v2454, %v2444
    %v2456 = vadd.s32 %v2455, %v2446
    %v2457 = vmul.u32 %v2412, %v2403
    %v2458 = vadd.s32 %v2434, %v2453
    %vm2459 = vc.u32 %v2434, %v2453
    %v2460 = vadd.s32 %v2456, 1
    %v2461 = vsel %vm2459, %v2460, %v2456
    %v2462 = vadd.s32 %v2457, %v2461
    %v2463 = vadd.s32 %v2462, 536870912
    %v2464 = vshrl.u32 %v2463, 30
    %v2465 = vshll.u32 %v2464, 30
    %v2466 = vsub.s32 %v2462, %v2465
    %vm2467 = vcmp.lt.s32.totalorder %v2466, 0
    %v2468 = vsub.s32 0, %v2466
    %v2469 = vsel %vm2467, %v2468, %v2466
    %v2470 = vclz %v2469
    %v2471 = vsub.s32 %v2470, 2
    %vm2472 = vcmp.gt.s32.totalorder 0, %v2471
    %v2473 = vsel %vm2472, 0, %v2471
    %v2474 = vsub.s32 32, %v2473
    %v2475 = vshll.u32 %v2466, %v2473
    %v2476 = vshrl.u32 %v2458, %v2474
    %v2477 = vor.u32 %v2475, %v2476
    %v2478 = vsub.s32 4294967266, %v2473
    %v2479 = vadd.s32 %v2478, 127
    %v2480 = vshll.u32 %v2479, 23
    %v2481 = vor.u32 4788187, %v2480
    %v2482 = vand.u32 2147483647, %v2481
    %v2484 = vcvt.s32.f32 %v2477
    %v2485 = vmul.f32 %v2484, %v2482
    %v2486 = vxor.u32 %v2485, 2147483648
    %v2487 = vsel %vm2366, %v2486, %v2485
    %v2488 = vsub.s32 4, %v2464
    %v2489 = vsel %vm2366, %v2488, %v2464
    %v2490 = vsel %vm2365, %v1732, %v2487
    %v2491 = vsel %vm2365, 0, %v2489
    %v2492 = vmul.f32 %v2490, %v2490
    %v2493 = vmul.f32 %v2492, -0.001358992
    %v2494 = vadd.f32 %v2493, 0.041655596
    %v2495 = vmul.f32 %v2492, %v2494
    %v2496 = vadd.f32 %v2495, -0.4999988
    %v2497 = vmul.f32 %v2492, %v2496
    %v2498 = vadd.f32 1.0, %v2497
    %v2499 = vmul.f32 %v2490, %v2490
    %v2500 = vmul.f32 %v2499, -0.00019511016
    %v2501 = vadd.f32 %v2500, 0.008332121
    %v2502 = vmul.f32 %v2499, %v2501
    %v2503 = vadd.f32 %v2502, -0.16666654
    %v2504 = vmul.f32 %v2499, %v2503
    %v2505 = vadd.f32 %v2504, 1.0
    %v2506 = vmul.f32 %v2505, %v2490
    %vm2507 = vweird.f32 %v1732
    %v2508 = vadd.s32 %v2491, 3
    %v2509 = vand.u32 %v2508, 3
    %vm2510 = vcmp.lt.s32.totalorder %v2509, 2
    %vm2511 = vcmp.eq.s32.totalorder %v2509, 0
    %v2512 = vxor.u32 %v2506, 2147483648
    %v2513 = vsel %vm2511, %v2498, %v2512
    %vm2514 = vcmp.eq.s32.totalorder %v2509, 2
    %v2515 = vxor.u32 %v2498, 2147483648
    %v2516 = vsel %vm2514, %v2515, %v2506
    %v2517 = vsel %vm2510, %v2513, %v2516
    %v2518 = vsel %vm2507, nan, %v2517
    %v2519 = vand.u32 2147483647, %v1733
    %vm2520 = vcmp.le.f32.partialorder %v2519, 0.7853982
    %vm2521 = vcmp.lt.s32.totalorder %v1733, 0
    %v2522 = vand.u32 %v1733, 2139095040
    %v2523 = vshrl.u32 %v2522, 23
    %v2524 = vsub.s32 %v2523, 127
    %v2525 = vand.u32 2147483647, %v1733
    %v2526 = vand.u32 %v2525, 8388607
    %v2527 = vor.u32 %v2526, 8388608
    %v2528 = vsub.s32 0, %v2527
    %v2529 = vadd.s32 %v2524, 1
    %vm2530 = vcmp.gt.s32.totalorder %v2529, 0
    %v2531 = vsel %vm2530, %v2529, 0
    %v2532 = vshrl.u32 %v2531, 5
    %v2533 = vand.u32 %v2531, 31
    %v2534 = vsub.s32 32, %v2533
    %v2535 = vshrl.u32 683565275, %v2534
    %v2536 = vshll.u32 683565275, %v2533
    %v2537 = vshrl.u32 2475754826, %v2534
    %v2538 = vor.u32 %v2536, %v2537
    %v2539 = vshll.u32 2475754826, %v2533
    %v2540 = vshrl.u32 2131351028, %v2534
    %v2541 = vor.u32 %v2539, %v2540
    %v2542 = vshll.u32 2131351028, %v2533
    %v2543 = vshrl.u32 2102212464, %v2534
    %v2544 = vor.u32 %v2542, %v2543
    %v2545 = vshll.u32 2102212464, %v2533
    %v2546 = vshrl.u32 920167782, %v2534
    %v2547 = vor.u32 %v2545, %v2546
    %v2548 = vshll.u32 920167782, %v2533
    %v2549 = vshrl.u32 1326507024, %v2534
    %v2550 = vor.u32 %v2548, %v2549
    %vm2551 = vcmp.lt.s32.totalorder %v2532, 1
    %vm2552 = vcmp.lt.s32.totalorder %v2532, 2
    %vm2553 = vcmp.lt.s32.totalorder %v2532, 3
    %vm2554 = vcmp.lt.s32.totalorder %v2532, 4
    %v2555 = vsel %vm2551, %v2535, %v2538
    %v2556 = vsel %vm2554, %v2544, 2102212464
    %v2557 = vsel %vm2553, %v2541, %v2556
    %v2558 = vsel %vm2552, %v2555, %v2557
    %v2559 = vsel %vm2551, %v2538, %v2541
    %v2560 = vsel %vm2554, %v2547, 920167782
    %v2561 = vsel %vm2553, %v2544, %v2560
    %v2562 = vsel %vm2552, %v2559, %v2561
    %v2563 = vsel %vm2551, %v2541, %v2544
    %v2564 = vsel %vm2554, %v2550, 1326507024
    %v2565 = vsel %vm2553, %v2547, %v2564
    %v2566 = vsel %vm2552, %v2563, %v2565
    %v2567 = vshll.u32 %v2527, 8
    %v2568 = vand.u32 %v2567, 65535
    %v2569 = vshrl.u32 %v2567, 16
    %v2570 = vand.u32 %v2566, 65535
    %v2571 = vshrl.u32 %v2566, 16
    %v2572 = vmul.u32 %v2568, %v2570
    %v2573 = vmul.u32 %v2568, %v2571
    %v2574 = vmul.u32 %v2569, %v2570
    %v2575 = vmul.u32 %v2569, %v2571
    %v2576 = vshll.u32 %v2573, 16
    %v2577 = vshrl.u32 %v2573, 16
    %v2578 = vshll.u32 %v2574, 16
    %v2579 = vshrl.u32 %v2574, 16
    %vm2580 = vc.u32 %v2572, %v2576
    %v2581 = vsel %vm2580, 1, 0
    %v2582 = vadd.s32 %v2572, %v2576
    %v2583 = vadd.s32 %v2575, %v2581
    %vm2584 = vc.u32 %v2582, %v2578
    %v2585 = vsel %vm2584, 1, 0
    %v2586 = vadd.s32 %v2582, %v2578
    %v2587 = vadd.s32 %v2583, %v2585
    %v2588 = vadd.s32 %v2587, %v2577
    %v2589 = vadd.s32 %v2588, %v2579
    %v2590 = vand.u32 %v2567, 65535
    %v2591 = vshrl.u32 %v2567, 16
    %v2592 = vand.u32 %v2562, 65535
    %v2593 = vshrl.u32 %v2562, 16
    %v2594 = vmul.u32 %v2590, %v2592
    %v2595 = vmul.u32 %v2590, %v2593
    %v2596 = vmul.u32 %v2591, %v2592
    %v2597 = vmul.u32 %v2591, %v2593
    %v2598 = vshll.u32 %v2595, 16
    %v2599 = vshrl.u32 %v2595, 16
    %v2600 = vshll.u32 %v2596, 16
    %v2601 = vshrl.u32 %v2596, 16
    %vm2602 = vc.u32 %v2594, %v2598
    %v2603 = vsel %vm2602, 1, 0
    %v2604 = vadd.s32 %v2594, %v2598
    %v2605 = vadd.s32 %v2597, %v2603
    %vm2606 = vc.u32 %v2604, %v2600
    %v2607 = vsel %vm2606, 1, 0
    %v2608 = vadd.s32 %v2604, %v2600
    %v2609 = vadd.s32 %v2605, %v2607
    %v2610 = vadd.s32 %v2609, %v2599
    %v2611 = vadd.s32 %v2610, %v2601
    %v2612 = vmul.u32 %v2567, %v2558
    %v2613 = vadd.s32 %v2589, %v2608
    %vm2614 = vc.u32 %v2589, %v2608
    %v2615 = vadd.s32 %v2611, 1
    %v2616 = vsel %vm2614, %v2615, %v2611
    %v2617 = vadd.s32 %v2612, %v2616
    %v2618 = vadd.s32 %v2617, 536870912
    %v2619 = vshrl.u32 %v2618, 30
    %v2620 = vshll.u32 %v2619, 30
    %v2621 = vsub.s32 %v2617, %v2620
    %vm2622 = vcmp.lt.s32.totalorder %v2621, 0
    %v2623 = vsub.s32 0, %v2621
    %v2624 = vsel %vm2622, %v2623, %v2621
    %v2625 = vclz %v2624
    %v2626 = vsub.s32 %v2625, 2
    %vm2627 = vcmp.gt.s32.totalorder 0, %v2626
    %v2628 = vsel %vm2627, 0, %v2626
    %v2629 = vsub.s32 32, %v2628
    %v2630 = vshll.u32 %v2621, %v2628
    %v2631 = vshrl.u32 %v2613, %v2629
    %v2632 = vor.u32 %v2630, %v2631
    %v2633 = vsub.s32 4294967266, %v2628
    %v2634 = vadd.s32 %v2633, 127
    %v2635 = vshll.u32 %v2634, 23
    %v2636 = vor.u32 4788187, %v2635
    %v2637 = vand.u32 2147483647, %v2636
    %v2639 = vcvt.s32.f32 %v2632
    %v2640 = vmul.f32 %v2639, %v2637
    %v2641 = vxor.u32 %v2640, 2147483648
    %v2642 = vsel %vm2521, %v2641, %v2640
    %v2643 = vsub.s32 4, %v2619
    %v2644 = vsel %vm2521, %v2643, %v2619
    %v2645 = vsel %vm2520, %v1733, %v2642
    %v2646 = vsel %vm2520, 0, %v2644
    %v2647 = vmul.f32 %v2645, %v2645
    %v2648 = vmul.f32 %v2647, -0.001358992
    %v2649 = vadd.f32 %v2648, 0.041655596
    %v2650 = vmul.f32 %v2647, %v2649
    %v2651 = vadd.f32 %v2650, -0.4999988
    %v2652 = vmul.f32 %v2647, %v2651
    %v2653 = vadd.f32 1.0, %v2652
    %v2654 = vmul.f32 %v2645, %v2645
    %v2655 = vmul.f32 %v2654, -0.00019511016
    %v2656 = vadd.f32 %v2655, 0.008332121
    %v2657 = vmul.f32 %v2654, %v2656
    %v2658 = vadd.f32 %v2657, -0.16666654
    %v2659 = vmul.f32 %v2654, %v2658
    %v2660 = vadd.f32 %v2659, 1.0
    %v2661 = vmul.f32 %v2660, %v2645
    %vm2662 = vweird.f32 %v1733
    %v2663 = vadd.s32 %v2646, 3
    %v2664 = vand.u32 %v2663, 3
    %vm2665 = vcmp.lt.s32.totalorder %v2664, 2
    %vm2666 = vcmp.eq.s32.totalorder %v2664, 0
    %v2667 = vxor.u32 %v2661, 2147483648
    %v2668 = vsel %vm2666, %v2653, %v2667
    %vm2669 = vcmp.eq.s32.totalorder %v2664, 2
    %v2670 = vxor.u32 %v2653, 2147483648
    %v2671 = vsel %vm2669, %v2670, %v2661
    %v2672 = vsel %vm2665, %v2668, %v2671
    %v2673 = vsel %vm2662, nan, %v2672
    %v2674 = vand.u32 2147483647, %v1734
    %vm2675 = vcmp.le.f32.partialorder %v2674, 0.7853982
    %vm2676 = vcmp.lt.s32.totalorder %v1734, 0
    %v2677 = vand.u32 %v1734, 2139095040
    %v2678 = vshrl.u32 %v2677, 23
    %v2679 = vsub.s32 %v2678, 127
    %v2680 = vand.u32 2147483647, %v1734
    %v2681 = vand.u32 %v2680, 8388607
    %v2682 = vor.u32 %v2681, 8388608
    %v2683 = vsub.s32 0, %v2682
    %v2684 = vadd.s32 %v2679, 1
    %vm2685 = vcmp.gt.s32.totalorder %v2684, 0
    %v2686 = vsel %vm2685, %v2684, 0
    %v2687 = vshrl.u32 %v2686, 5
    %v2688 = vand.u32 %v2686, 31
    %v2689 = vsub.s32 32, %v2688
    %v2690 = vshrl.u32 683565275, %v2689
    %v2691 = vshll.u32 683565275, %v2688
    %v2692 = vshrl.u32 2475754826, %v2689
    %v2693 = vor.u32 %v2691, %v2692
    %v2694 = vshll.u32 2475754826, %v2688
    %v2695 = vshrl.u32 2131351028, %v2689
    %v2696 = vor.u32 %v2694, %v2695
    %v2697 = vshll.u32 2131351028, %v2688
    %v2698 = vshrl.u32 2102212464, %v2689
    %v2699 = vor.u32 %v2697, %v2698
    %v2700 = vshll.u32 2102212464, %v2688
    %v2701 = vshrl.u32 920167782, %v2689
    %v2702 = vor.u32 %v2700, %v2701
    %v2703 = vshll.u32 920167782, %v2688
    %v2704 = vshrl.u32 1326507024, %v2689
    %v2705 = vor.u32 %v2703, %v2704
    %vm2706 = vcmp.lt.s32.totalorder %v2687, 1
    %vm2707 = vcmp.lt.s32.totalorder %v2687, 2
    %vm2708 = vcmp.lt.s32.totalorder %v2687, 3
    %vm2709 = vcmp.lt.s32.totalorder %v2687, 4
    %v2710 = vsel %vm2706, %v2690, %v2693
    %v2711 = vsel %vm2709, %v2699, 2102212464
    %v2712 = vsel %vm2708, %v2696, %v2711
    %v2713 = vsel %vm2707, %v2710, %v2712
    %v2714 = vsel %vm2706, %v2693, %v2696
    %v2715 = vsel %vm2709, %v2702, 920167782
    %v2716 = vsel %vm2708, %v2699, %v2715
    %v2717 = vsel %vm2707, %v2714, %v2716
    %v2718 = vsel %vm2706, %v2696, %v2699
    %v2719 = vsel %vm2709, %v2705, 1326507024
    %v2720 = vsel %vm2708, %v2702, %v2719
    %v2721 = vsel %vm2707, %v2718, %v2720
    %v2722 = vshll.u32 %v2682, 8
    %v2723 = vand.u32 %v2722, 65535
    %v2724 = vshrl.u32 %v2722, 16
    %v2725 = vand.u32 %v2721, 65535
    %v2726 = vshrl.u32 %v2721, 16
    %v2727 = vmul.u32 %v2723, %v2725
    %v2728 = vmul.u32 %v2723, %v2726
    %v2729 = vmul.u32 %v2724, %v2725
    %v2730 = vmul.u32 %v2724, %v2726
    %v2731 = vshll.u32 %v2728, 16
    %v2732 = vshrl.u32 %v2728, 16
    %v2733 = vshll.u32 %v2729, 16
    %v2734 = vshrl.u32 %v2729, 16
    %vm2735 = vc.u32 %v2727, %v2731
    %v2736 = vsel %vm2735, 1, 0
    %v2737 = vadd.s32 %v2727, %v2731
    %v2738 = vadd.s32 %v2730, %v2736
    %vm2739 = vc.u32 %v2737, %v2733
    %v2740 = vsel %vm2739, 1, 0
    %v2741 = vadd.s32 %v2737, %v2733
    %v2742 = vadd.s32 %v2738, %v2740
    %v2743 = vadd.s32 %v2742, %v2732
    %v2744 = vadd.s32 %v2743, %v2734
    %v2745 = vand.u32 %v2722, 65535
    %v2746 = vshrl.u32 %v2722, 16
    %v2747 = vand.u32 %v2717, 65535
    %v2748 = vshrl.u32 %v2717, 16
    %v2749 = vmul.u32 %v2745, %v2747
    %v2750 = vmul.u32 %v2745, %v2748
    %v2751 = vmul.u32 %v2746, %v2747
    %v2752 = vmul.u32 %v2746, %v2748
    %v2753 = vshll.u32 %v2750, 16
    %v2754 = vshrl.u32 %v2750, 16
    %v2755 = vshll.u32 %v2751, 16
    %v2756 = vshrl.u32 %v2751, 16
    %vm2757 = vc.u32 %v2749, %v2753
    %v2758 = vsel %vm2757, 1, 0
    %v2759 = vadd.s32 %v2749, %v2753
    %v2760 = vadd.s32 %v2752, %v2758
    %vm2761 = vc.u32 %v2759, %v2755
    %v2762 = vsel %vm2761, 1, 0
    %v2763 = vadd.s32 %v2759, %v2755
    %v2764 = vadd.s32 %v2760, %v2762
    %v2765 = vadd.s32 %v2764, %v2754
    %v2766 = vadd.s32 %v2765, %v2756
    %v2767 = vmul.u32 %v2722, %v2713
    %v2768 = vadd.s32 %v2744, %v2763
    %vm2769 = vc.u32 %v2744, %v2763
    %v2770 = vadd.s32 %v2766, 1
    %v2771 = vsel %vm2769, %v2770, %v2766
    %v2772 = vadd.s32 %v2767, %v2771
    %v2773 = vadd.s32 %v2772, 536870912
    %v2774 = vshrl.u32 %v2773, 30
    %v2775 = vshll.u32 %v2774, 30
    %v2776 = vsub.s32 %v2772, %v2775
    %vm2777 = vcmp.lt.s32.totalorder %v2776, 0
    %v2778 = vsub.s32 0, %v2776
    %v2779 = vsel %vm2777, %v2778, %v2776
    %v2780 = vclz %v2779
    %v2781 = vsub.s32 %v2780, 2
    %vm2782 = vcmp.gt.s32.totalorder 0, %v2781
    %v2783 = vsel %vm2782, 0, %v2781
    %v2784 = vsub.s32 32, %v2783
    %v2785 = vshll.u32 %v2776, %v2783
    %v2786 = vshrl.u32 %v2768, %v2784
    %v2787 = vor.u32 %v2785, %v2786
    %v2788 = vsub.s32 4294967266, %v2783
    %v2789 = vadd.s32 %v2788, 127
    %v2790 = vshll.u32 %v2789, 23
    %v2791 = vor.u32 4788187, %v2790
    %v2792 = vand.u32 2147483647, %v2791
    %v2794 = vcvt.s32.f32 %v2787
    %v2795 = vmul.f32 %v2794, %v2792
    %v2796 = vxor.u32 %v2795, 2147483648
    %v2797 = vsel %vm2676, %v2796, %v2795
    %v2798 = vsub.s32 4, %v2774
    %v2799 = vsel %vm2676, %v2798, %v2774
    %v2800 = vsel %vm2675, %v1734, %v2797
    %v2801 = vsel %vm2675, 0, %v2799
    %v2802 = vmul.f32 %v2800, %v2800
    %v2803 = vmul.f32 %v2802, -0.001358992
    %v2804 = vadd.f32 %v2803, 0.041655596
    %v2805 = vmul.f32 %v2802, %v2804
    %v2806 = vadd.f32 %v2805, -0.4999988
    %v2807 = vmul.f32 %v2802, %v2806
    %v2808 = vadd.f32 1.0, %v2807
    %v2809 = vmul.f32 %v2800, %v2800
    %v2810 = vmul.f32 %v2809, -0.00019511016
    %v2811 = vadd.f32 %v2810, 0.008332121
    %v2812 = vmul.f32 %v2809, %v2811
    %v2813 = vadd.f32 %v2812, -0.16666654
    %v2814 = vmul.f32 %v2809, %v2813
    %v2815 = vadd.f32 %v2814, 1.0
    %v2816 = vmul.f32 %v2815, %v2800
    %vm2817 = vweird.f32 %v1734
    %v2818 = vadd.s32 %v2801, 3
    %v2819 = vand.u32 %v2818, 3
    %vm2820 = vcmp.lt.s32.totalorder %v2819, 2
    %vm2821 = vcmp.eq.s32.totalorder %v2819, 0
    %v2822 = vxor.u32 %v2816, 2147483648
    %v2823 = vsel %vm2821, %v2808, %v2822
    %vm2824 = vcmp.eq.s32.totalorder %v2819, 2
    %v2825 = vxor.u32 %v2808, 2147483648
    %v2826 = vsel %vm2824, %v2825, %v2816
    %v2827 = vsel %vm2820, %v2823, %v2826
    %v2828 = vsel %vm2817, nan, %v2827
    %v2829 = vand.u32 2147483647, %v1735
    %vm2830 = vcmp.le.f32.partialorder %v2829, 0.7853982
    %vm2831 = vcmp.lt.s32.totalorder %v1735, 0
    %v2832 = vand.u32 %v1735, 2139095040
    %v2833 = vshrl.u32 %v2832, 23
    %v2834 = vsub.s32 %v2833, 127
    %v2835 = vand.u32 2147483647, %v1735
    %v2836 = vand.u32 %v2835, 8388607
    %v2837 = vor.u32 %v2836, 8388608
    %v2838 = vsub.s32 0, %v2837
    %v2839 = vadd.s32 %v2834, 1
    %vm2840 = vcmp.gt.s32.totalorder %v2839, 0
    %v2841 = vsel %vm2840, %v2839, 0
    %v2842 = vshrl.u32 %v2841, 5
    %v2843 = vand.u32 %v2841, 31
    %v2844 = vsub.s32 32, %v2843
    %v2845 = vshrl.u32 683565275, %v2844
    %v2846 = vshll.u32 683565275, %v2843
    %v2847 = vshrl.u32 2475754826, %v2844
    %v2848 = vor.u32 %v2846, %v2847
    %v2849 = vshll.u32 2475754826, %v2843
    %v2850 = vshrl.u32 2131351028, %v2844
    %v2851 = vor.u32 %v2849, %v2850
    %v2852 = vshll.u32 2131351028, %v2843
    %v2853 = vshrl.u32 2102212464, %v2844
    %v2854 = vor.u32 %v2852, %v2853
    %v2855 = vshll.u32 2102212464, %v2843
    %v2856 = vshrl.u32 920167782, %v2844
    %v2857 = vor.u32 %v2855, %v2856
    %v2858 = vshll.u32 920167782, %v2843
    %v2859 = vshrl.u32 1326507024, %v2844
    %v2860 = vor.u32 %v2858, %v2859
    %vm2861 = vcmp.lt.s32.totalorder %v2842, 1
    %vm2862 = vcmp.lt.s32.totalorder %v2842, 2
    %vm2863 = vcmp.lt.s32.totalorder %v2842, 3
    %vm2864 = vcmp.lt.s32.totalorder %v2842, 4
    %v2865 = vsel %vm2861, %v2845, %v2848
    %v2866 = vsel %vm2864, %v2854, 2102212464
    %v2867 = vsel %vm2863, %v2851, %v2866
    %v2868 = vsel %vm2862, %v2865, %v2867
    %v2869 = vsel %vm2861, %v2848, %v2851
    %v2870 = vsel %vm2864, %v2857, 920167782
    %v2871 = vsel %vm2863, %v2854, %v2870
    %v2872 = vsel %vm2862, %v2869, %v2871
    %v2873 = vsel %vm2861, %v2851, %v2854
    %v2874 = vsel %vm2864, %v2860, 1326507024
    %v2875 = vsel %vm2863, %v2857, %v2874
    %v2876 = vsel %vm2862, %v2873, %v2875
    %v2877 = vshll.u32 %v2837, 8
    %v2878 = vand.u32 %v2877, 65535
    %v2879 = vshrl.u32 %v2877, 16
    %v2880 = vand.u32 %v2876, 65535
    %v2881 = vshrl.u32 %v2876, 16
    %v2882 = vmul.u32 %v2878, %v2880
    %v2883 = vmul.u32 %v2878, %v2881
    %v2884 = vmul.u32 %v2879, %v2880
    %v2885 = vmul.u32 %v2879, %v2881
    %v2886 = vshll.u32 %v2883, 16
    %v2887 = vshrl.u32 %v2883, 16
    %v2888 = vshll.u32 %v2884, 16
    %v2889 = vshrl.u32 %v2884, 16
    %vm2890 = vc.u32 %v2882, %v2886
    %v2891 = vsel %vm2890, 1, 0
    %v2892 = vadd.s32 %v2882, %v2886
    %v2893 = vadd.s32 %v2885, %v2891
    %vm2894 = vc.u32 %v2892, %v2888
    %v2895 = vsel %vm2894, 1, 0
    %v2896 = vadd.s32 %v2892, %v2888
    %v2897 = vadd.s32 %v2893, %v2895
    %v2898 = vadd.s32 %v2897, %v2887
    %v2899 = vadd.s32 %v2898, %v2889
    %v2900 = vand.u32 %v2877, 65535
    %v2901 = vshrl.u32 %v2877, 16
    %v2902 = vand.u32 %v2872, 65535
    %v2903 = vshrl.u32 %v2872, 16
    %v2904 = vmul.u32 %v2900, %v2902
    %v2905 = vmul.u32 %v2900, %v2903
    %v2906 = vmul.u32 %v2901, %v2902
    %v2907 = vmul.u32 %v2901, %v2903
    %v2908 = vshll.u32 %v2905, 16
    %v2909 = vshrl.u32 %v2905, 16
    %v2910 = vshll.u32 %v2906, 16
    %v2911 = vshrl.u32 %v2906, 16
    %vm2912 = vc.u32 %v2904, %v2908
    %v2913 = vsel %vm2912, 1, 0
    %v2914 = vadd.s32 %v2904, %v2908
    %v2915 = vadd.s32 %v2907, %v2913
    %vm2916 = vc.u32 %v2914, %v2910
    %v2917 = vsel %vm2916, 1, 0
    %v2918 = vadd.s32 %v2914, %v2910
    %v2919 = vadd.s32 %v2915, %v2917
    %v2920 = vadd.s32 %v2919, %v2909
    %v2921 = vadd.s32 %v2920, %v2911
    %v2922 = vmul.u32 %v2877, %v2868
    %v2923 = vadd.s32 %v2899, %v2918
    %vm2924 = vc.u32 %v2899, %v2918
    %v2925 = vadd.s32 %v2921, 1
    %v2926 = vsel %vm2924, %v2925, %v2921
    %v2927 = vadd.s32 %v2922, %v2926
    %v2928 = vadd.s32 %v2927, 536870912
    %v2929 = vshrl.u32 %v2928, 30
    %v2930 = vshll.u32 %v2929, 30
    %v2931 = vsub.s32 %v2927, %v2930
    %vm2932 = vcmp.lt.s32.totalorder %v2931, 0
    %v2933 = vsub.s32 0, %v2931
    %v2934 = vsel %vm2932, %v2933, %v2931
    %v2935 = vclz %v2934
    %v2936 = vsub.s32 %v2935, 2
    %vm2937 = vcmp.gt.s32.totalorder 0, %v2936
    %v2938 = vsel %vm2937, 0, %v2936
    %v2939 = vsub.s32 32, %v2938
    %v2940 = vshll.u32 %v2931, %v2938
    %v2941 = vshrl.u32 %v2923, %v2939
    %v2942 = vor.u32 %v2940, %v2941
    %v2943 = vsub.s32 4294967266, %v2938
    %v2944 = vadd.s32 %v2943, 127
    %v2945 = vshll.u32 %v2944, 23
    %v2946 = vor.u32 4788187, %v2945
    %v2947 = vand.u32 2147483647, %v2946
    %v2949 = vcvt.s32.f32 %v2942
    %v2950 = vmul.f32 %v2949, %v2947
    %v2951 = vxor.u32 %v2950, 2147483648
    %v2952 = vsel %vm2831, %v2951, %v2950
    %v2953 = vsub.s32 4, %v2929
    %v2954 = vsel %vm2831, %v2953, %v2929
    %v2955 = vsel %vm2830, %v1735, %v2952
    %v2956 = vsel %vm2830, 0, %v2954
    %v2957 = vmul.f32 %v2955, %v2955
    %v2958 = vmul.f32 %v2957, -0.001358992
    %v2959 = vadd.f32 %v2958, 0.041655596
    %v2960 = vmul.f32 %v2957, %v2959
    %v2961 = vadd.f32 %v2960, -0.4999988
    %v2962 = vmul.f32 %v2957, %v2961
    %v2963 = vadd.f32 1.0, %v2962
    %v2964 = vmul.f32 %v2955, %v2955
    %v2965 = vmul.f32 %v2964, -0.00019511016
    %v2966 = vadd.f32 %v2965, 0.008332121
    %v2967 = vmul.f32 %v2964, %v2966
    %v2968 = vadd.f32 %v2967, -0.16666654
    %v2969 = vmul.f32 %v2964, %v2968
    %v2970 = vadd.f32 %v2969, 1.0
    %v2971 = vmul.f32 %v2970, %v2955
    %vm2972 = vweird.f32 %v1735
    %v2973 = vadd.s32 %v2956, 3
    %v2974 = vand.u32 %v2973, 3
    %vm2975 = vcmp.lt.s32.totalorder %v2974, 2
    %vm2976 = vcmp.eq.s32.totalorder %v2974, 0
    %v2977 = vxor.u32 %v2971, 2147483648
    %v2978 = vsel %vm2976, %v2963, %v2977
    %vm2979 = vcmp.eq.s32.totalorder %v2974, 2
    %v2980 = vxor.u32 %v2963, 2147483648
    %v2981 = vsel %vm2979, %v2980, %v2971
    %v2982 = vsel %vm2975, %v2978, %v2981
    %v2983 = vsel %vm2972, nan, %v2982
    %v2984 = vand.u32 2147483647, %v1736
    %vm2985 = vcmp.le.f32.partialorder %v2984, 0.7853982
    %vm2986 = vcmp.lt.s32.totalorder %v1736, 0
    %v2987 = vand.u32 %v1736, 2139095040
    %v2988 = vshrl.u32 %v2987, 23
    %v2989 = vsub.s32 %v2988, 127
    %v2990 = vand.u32 2147483647, %v1736
    %v2991 = vand.u32 %v2990, 8388607
    %v2992 = vor.u32 %v2991, 8388608
    %v2993 = vsub.s32 0, %v2992
    %v2994 = vadd.s32 %v2989, 1
    %vm2995 = vcmp.gt.s32.totalorder %v2994, 0
    %v2996 = vsel %vm2995, %v2994, 0
    %v2997 = vshrl.u32 %v2996, 5
    %v2998 = vand.u32 %v2996, 31
    %v2999 = vsub.s32 32, %v2998
    %v3000 = vshrl.u32 683565275, %v2999
    %v3001 = vshll.u32 683565275, %v2998
    %v3002 = vshrl.u32 2475754826, %v2999
    %v3003 = vor.u32 %v3001, %v3002
    %v3004 = vshll.u32 2475754826, %v2998
    %v3005 = vshrl.u32 2131351028, %v2999
    %v3006 = vor.u32 %v3004, %v3005
    %v3007 = vshll.u32 2131351028, %v2998
    %v3008 = vshrl.u32 2102212464, %v2999
    %v3009 = vor.u32 %v3007, %v3008
    %v3010 = vshll.u32 2102212464, %v2998
    %v3011 = vshrl.u32 920167782, %v2999
    %v3012 = vor.u32 %v3010, %v3011
    %v3013 = vshll.u32 920167782, %v2998
    %v3014 = vshrl.u32 1326507024, %v2999
    %v3015 = vor.u32 %v3013, %v3014
    %vm3016 = vcmp.lt.s32.totalorder %v2997, 1
    %vm3017 = vcmp.lt.s32.totalorder %v2997, 2
    %vm3018 = vcmp.lt.s32.totalorder %v2997, 3
    %vm3019 = vcmp.lt.s32.totalorder %v2997, 4
    %v3020 = vsel %vm3016, %v3000, %v3003
    %v3021 = vsel %vm3019, %v3009, 2102212464
    %v3022 = vsel %vm3018, %v3006, %v3021
    %v3023 = vsel %vm3017, %v3020, %v3022
    %v3024 = vsel %vm3016, %v3003, %v3006
    %v3025 = vsel %vm3019, %v3012, 920167782
    %v3026 = vsel %vm3018, %v3009, %v3025
    %v3027 = vsel %vm3017, %v3024, %v3026
    %v3028 = vsel %vm3016, %v3006, %v3009
    %v3029 = vsel %vm3019, %v3015, 1326507024
    %v3030 = vsel %vm3018, %v3012, %v3029
    %v3031 = vsel %vm3017, %v3028, %v3030
    %v3032 = vshll.u32 %v2992, 8
    %v3033 = vand.u32 %v3032, 65535
    %v3034 = vshrl.u32 %v3032, 16
    %v3035 = vand.u32 %v3031, 65535
    %v3036 = vshrl.u32 %v3031, 16
    %v3037 = vmul.u32 %v3033, %v3035
    %v3038 = vmul.u32 %v3033, %v3036
    %v3039 = vmul.u32 %v3034, %v3035
    %v3040 = vmul.u32 %v3034, %v3036
    %v3041 = vshll.u32 %v3038, 16
    %v3042 = vshrl.u32 %v3038, 16
    %v3043 = vshll.u32 %v3039, 16
    %v3044 = vshrl.u32 %v3039, 16
    %vm3045 = vc.u32 %v3037, %v3041
    %v3046 = vsel %vm3045, 1, 0
    %v3047 = vadd.s32 %v3037, %v3041
    %v3048 = vadd.s32 %v3040, %v3046
    %vm3049 = vc.u32 %v3047, %v3043
    %v3050 = vsel %vm3049, 1, 0
    %v3051 = vadd.s32 %v3047, %v3043
    %v3052 = vadd.s32 %v3048, %v3050
    %v3053 = vadd.s32 %v3052, %v3042
    %v3054 = vadd.s32 %v3053, %v3044
    %v3055 = vand.u32 %v3032, 65535
    %v3056 = vshrl.u32 %v3032, 16
    %v3057 = vand.u32 %v3027, 65535
    %v3058 = vshrl.u32 %v3027, 16
    %v3059 = vmul.u32 %v3055, %v3057
    %v3060 = vmul.u32 %v3055, %v3058
    %v3061 = vmul.u32 %v3056, %v3057
    %v3062 = vmul.u32 %v3056, %v3058
    %v3063 = vshll.u32 %v3060, 16
    %v3064 = vshrl.u32 %v3060, 16
    %v3065 = vshll.u32 %v3061, 16
    %v3066 = vshrl.u32 %v3061, 16
    %vm3067 = vc.u32 %v3059, %v3063
    %v3068 = vsel %vm3067, 1, 0
    %v3069 = vadd.s32 %v3059, %v3063
    %v3070 = vadd.s32 %v3062, %v3068
    %vm3071 = vc.u32 %v3069, %v3065
    %v3072 = vsel %vm3071, 1, 0
    %v3073 = vadd.s32 %v3069, %v3065
    %v3074 = vadd.s32 %v3070, %v3072
    %v3075 = vadd.s32 %v3074, %v3064
    %v3076 = vadd.s32 %v3075, %v3066
    %v3077 = vmul.u32 %v3032, %v3023
    %v3078 = vadd.s32 %v3054, %v3073
    %vm3079 = vc.u32 %v3054, %v3073
    %v3080 = vadd.s32 %v3076, 1
    %v3081 = vsel %vm3079, %v3080, %v3076
    %v3082 = vadd.s32 %v3077, %v3081
    %v3083 = vadd.s32 %v3082, 536870912
    %v3084 = vshrl.u32 %v3083, 30
    %v3085 = vshll.u32 %v3084, 30
    %v3086 = vsub.s32 %v3082, %v3085
    %vm3087 = vcmp.lt.s32.totalorder %v3086, 0
    %v3088 = vsub.s32 0, %v3086
    %v3089 = vsel %vm3087, %v3088, %v3086
    %v3090 = vclz %v3089
    %v3091 = vsub.s32 %v3090, 2
    %vm3092 = vcmp.gt.s32.totalorder 0, %v3091
    %v3093 = vsel %vm3092, 0, %v3091
    %v3094 = vsub.s32 32, %v3093
    %v3095 = vshll.u32 %v3086, %v3093
    %v3096 = vshrl.u32 %v3078, %v3094
    %v3097 = vor.u32 %v3095, %v3096
    %v3098 = vsub.s32 4294967266, %v3093
    %v3099 = vadd.s32 %v3098, 127
    %v3100 = vshll.u32 %v3099, 23
    %v3101 = vor.u32 4788187, %v3100
    %v3102 = vand.u32 2147483647, %v3101
    %v3104 = vcvt.s32.f32 %v3097
    %v3105 = vmul.f32 %v3104, %v3102
    %v3106 = vxor.u32 %v3105, 2147483648
    %v3107 = vsel %vm2986, %v3106, %v3105
    %v3108 = vsub.s32 4, %v3084
    %v3109 = vsel %vm2986, %v3108, %v3084
    %v3110 = vsel %vm2985, %v1736, %v3107
    %v3111 = vsel %vm2985, 0, %v3109
    %v3112 = vmul.f32 %v3110, %v3110
    %v3113 = vmul.f32 %v3112, -0.001358992
    %v3114 = vadd.f32 %v3113, 0.041655596
    %v3115 = vmul.f32 %v3112, %v3114
    %v3116 = vadd.f32 %v3115, -0.4999988
    %v3117 = vmul.f32 %v3112, %v3116
    %v3118 = vadd.f32 1.0, %v3117
    %v3119 = vmul.f32 %v3110, %v3110
    %v3120 = vmul.f32 %v3119, -0.00019511016
    %v3121 = vadd.f32 %v3120, 0.008332121
    %v3122 = vmul.f32 %v3119, %v3121
    %v3123 = vadd.f32 %v3122, -0.16666654
    %v3124 = vmul.f32 %v3119, %v3123
    %v3125 = vadd.f32 %v3124, 1.0
    %v3126 = vmul.f32 %v3125, %v3110
    %vm3127 = vweird.f32 %v1736
    %v3128 = vadd.s32 %v3111, 3
    %v3129 = vand.u32 %v3128, 3
    %vm3130 = vcmp.lt.s32.totalorder %v3129, 2
    %vm3131 = vcmp.eq.s32.totalorder %v3129, 0
    %v3132 = vxor.u32 %v3126, 2147483648
    %v3133 = vsel %vm3131, %v3118, %v3132
    %vm3134 = vcmp.eq.s32.totalorder %v3129, 2
    %v3135 = vxor.u32 %v3118, 2147483648
    %v3136 = vsel %vm3134, %v3135, %v3126
    %v3137 = vsel %vm3130, %v3133, %v3136
    %v3138 = vsel %vm3127, nan, %v3137
    %v3139 = vand.u32 2147483647, %v1737
    %vm3140 = vcmp.le.f32.partialorder %v3139, 0.7853982
    %vm3141 = vcmp.lt.s32.totalorder %v1737, 0
    %v3142 = vand.u32 %v1737, 2139095040
    %v3143 = vshrl.u32 %v3142, 23
    %v3144 = vsub.s32 %v3143, 127
    %v3145 = vand.u32 2147483647, %v1737
    %v3146 = vand.u32 %v3145, 8388607
    %v3147 = vor.u32 %v3146, 8388608
    %v3148 = vsub.s32 0, %v3147
    %v3149 = vadd.s32 %v3144, 1
    %vm3150 = vcmp.gt.s32.totalorder %v3149, 0
    %v3151 = vsel %vm3150, %v3149, 0
    %v3152 = vshrl.u32 %v3151, 5
    %v3153 = vand.u32 %v3151, 31
    %v3154 = vsub.s32 32, %v3153
    %v3155 = vshrl.u32 683565275, %v3154
    %v3156 = vshll.u32 683565275, %v3153
    %v3157 = vshrl.u32 2475754826, %v3154
    %v3158 = vor.u32 %v3156, %v3157
    %v3159 = vshll.u32 2475754826, %v3153
    %v3160 = vshrl.u32 2131351028, %v3154
    %v3161 = vor.u32 %v3159, %v3160
    %v3162 = vshll.u32 2131351028, %v3153
    %v3163 = vshrl.u32 2102212464, %v3154
    %v3164 = vor.u32 %v3162, %v3163
    %v3165 = vshll.u32 2102212464, %v3153
    %v3166 = vshrl.u32 920167782, %v3154
    %v3167 = vor.u32 %v3165, %v3166
    %v3168 = vshll.u32 920167782, %v3153
    %v3169 = vshrl.u32 1326507024, %v3154
    %v3170 = vor.u32 %v3168, %v3169
    %vm3171 = vcmp.lt.s32.totalorder %v3152, 1
    %vm3172 = vcmp.lt.s32.totalorder %v3152, 2
    %vm3173 = vcmp.lt.s32.totalorder %v3152, 3
    %vm3174 = vcmp.lt.s32.totalorder %v3152, 4
    %v3175 = vsel %vm3171, %v3155, %v3158
    %v3176 = vsel %vm3174, %v3164, 2102212464
    %v3177 = vsel %vm3173, %v3161, %v3176
    %v3178 = vsel %vm3172, %v3175, %v3177
    %v3179 = vsel %vm3171, %v3158, %v3161
    %v3180 = vsel %vm3174, %v3167, 920167782
    %v3181 = vsel %vm3173, %v3164, %v3180
    %v3182 = vsel %vm3172, %v3179, %v3181
    %v3183 = vsel %vm3171, %v3161, %v3164
    %v3184 = vsel %vm3174, %v3170, 1326507024
    %v3185 = vsel %vm3173, %v3167, %v3184
    %v3186 = vsel %vm3172, %v3183, %v3185
    %v3187 = vshll.u32 %v3147, 8
    %v3188 = vand.u32 %v3187, 65535
    %v3189 = vshrl.u32 %v3187, 16
    %v3190 = vand.u32 %v3186, 65535
    %v3191 = vshrl.u32 %v3186, 16
    %v3192 = vmul.u32 %v3188, %v3190
    %v3193 = vmul.u32 %v3188, %v3191
    %v3194 = vmul.u32 %v3189, %v3190
    %v3195 = vmul.u32 %v3189, %v3191
    %v3196 = vshll.u32 %v3193, 16
    %v3197 = vshrl.u32 %v3193, 16
    %v3198 = vshll.u32 %v3194, 16
    %v3199 = vshrl.u32 %v3194, 16
    %vm3200 = vc.u32 %v3192, %v3196
    %v3201 = vsel %vm3200, 1, 0
    %v3202 = vadd.s32 %v3192, %v3196
    %v3203 = vadd.s32 %v3195, %v3201
    %vm3204 = vc.u32 %v3202, %v3198
    %v3205 = vsel %vm3204, 1, 0
    %v3206 = vadd.s32 %v3202, %v3198
    %v3207 = vadd.s32 %v3203, %v3205
    %v3208 = vadd.s32 %v3207, %v3197
    %v3209 = vadd.s32 %v3208, %v3199
    %v3210 = vand.u32 %v3187, 65535
    %v3211 = vshrl.u32 %v3187, 16
    %v3212 = vand.u32 %v3182, 65535
    %v3213 = vshrl.u32 %v3182, 16
    %v3214 = vmul.u32 %v3210, %v3212
    %v3215 = vmul.u32 %v3210, %v3213
    %v3216 = vmul.u32 %v3211, %v3212
    %v3217 = vmul.u32 %v3211, %v3213
    %v3218 = vshll.u32 %v3215, 16
    %v3219 = vshrl.u32 %v3215, 16
    %v3220 = vshll.u32 %v3216, 16
    %v3221 = vshrl.u32 %v3216, 16
    %vm3222 = vc.u32 %v3214, %v3218
    %v3223 = vsel %vm3222, 1, 0
    %v3224 = vadd.s32 %v3214, %v3218
    %v3225 = vadd.s32 %v3217, %v3223
    %vm3226 = vc.u32 %v3224, %v3220
    %v3227 = vsel %vm3226, 1, 0
    %v3228 = vadd.s32 %v3224, %v3220
    %v3229 = vadd.s32 %v3225, %v3227
    %v3230 = vadd.s32 %v3229, %v3219
    %v3231 = vadd.s32 %v3230, %v3221
    %v3232 = vmul.u32 %v3187, %v3178
    %v3233 = vadd.s32 %v3209, %v3228
    %vm3234 = vc.u32 %v3209, %v3228
    %v3235 = vadd.s32 %v3231, 1
    %v3236 = vsel %vm3234, %v3235, %v3231
    %v3237 = vadd.s32 %v3232, %v3236
    %v3238 = vadd.s32 %v3237, 536870912
    %v3239 = vshrl.u32 %v3238, 30
    %v3240 = vshll.u32 %v3239, 30
    %v3241 = vsub.s32 %v3237, %v3240
    %vm3242 = vcmp.lt.s32.totalorder %v3241, 0
    %v3243 = vsub.s32 0, %v3241
    %v3244 = vsel %vm3242, %v3243, %v3241
    %v3245 = vclz %v3244
    %v3246 = vsub.s32 %v3245, 2
    %vm3247 = vcmp.gt.s32.totalorder 0, %v3246
    %v3248 = vsel %vm3247, 0, %v3246
    %v3249 = vsub.s32 32, %v3248
    %v3250 = vshll.u32 %v3241, %v3248
    %v3251 = vshrl.u32 %v3233, %v3249
    %v3252 = vor.u32 %v3250, %v3251
    %v3253 = vsub.s32 4294967266, %v3248
    %v3254 = vadd.s32 %v3253, 127
    %v3255 = vshll.u32 %v3254, 23
    %v3256 = vor.u32 4788187, %v3255
    %v3257 = vand.u32 2147483647, %v3256
    %v3259 = vcvt.s32.f32 %v3252
    %v3260 = vmul.f32 %v3259, %v3257
    %v3261 = vxor.u32 %v3260, 2147483648
    %v3262 = vsel %vm3141, %v3261, %v3260
    %v3263 = vsub.s32 4, %v3239
    %v3264 = vsel %vm3141, %v3263, %v3239
    %v3265 = vsel %vm3140, %v1737, %v3262
    %v3266 = vsel %vm3140, 0, %v3264
    %v3267 = vmul.f32 %v3265, %v3265
    %v3268 = vmul.f32 %v3267, -0.001358992
    %v3269 = vadd.f32 %v3268, 0.041655596
    %v3270 = vmul.f32 %v3267, %v3269
    %v3271 = vadd.f32 %v3270, -0.4999988
    %v3272 = vmul.f32 %v3267, %v3271
    %v3273 = vadd.f32 1.0, %v3272
    %v3274 = vmul.f32 %v3265, %v3265
    %v3275 = vmul.f32 %v3274, -0.00019511016
    %v3276 = vadd.f32 %v3275, 0.008332121
    %v3277 = vmul.f32 %v3274, %v3276
    %v3278 = vadd.f32 %v3277, -0.16666654
    %v3279 = vmul.f32 %v3274, %v3278
    %v3280 = vadd.f32 %v3279, 1.0
    %v3281 = vmul.f32 %v3280, %v3265
    %vm3282 = vweird.f32 %v1737
    %v3283 = vadd.s32 %v3266, 3
    %v3284 = vand.u32 %v3283, 3
    %vm3285 = vcmp.lt.s32.totalorder %v3284, 2
    %vm3286 = vcmp.eq.s32.totalorder %v3284, 0
    %v3287 = vxor.u32 %v3281, 2147483648
    %v3288 = vsel %vm3286, %v3273, %v3287
    %vm3289 = vcmp.eq.s32.totalorder %v3284, 2
    %v3290 = vxor.u32 %v3273, 2147483648
    %v3291 = vsel %vm3289, %v3290, %v3281
    %v3292 = vsel %vm3285, %v3288, %v3291
    %v3293 = vsel %vm3282, nan, %v3292
    %v3294 = vand.u32 2147483647, %v1738
    %vm3295 = vcmp.le.f32.partialorder %v3294, 0.7853982
    %vm3296 = vcmp.lt.s32.totalorder %v1738, 0
    %v3297 = vand.u32 %v1738, 2139095040
    %v3298 = vshrl.u32 %v3297, 23
    %v3299 = vsub.s32 %v3298, 127
    %v3300 = vand.u32 2147483647, %v1738
    %v3301 = vand.u32 %v3300, 8388607
    %v3302 = vor.u32 %v3301, 8388608
    %v3303 = vsub.s32 0, %v3302
    %v3304 = vadd.s32 %v3299, 1
    %vm3305 = vcmp.gt.s32.totalorder %v3304, 0
    %v3306 = vsel %vm3305, %v3304, 0
    %v3307 = vshrl.u32 %v3306, 5
    %v3308 = vand.u32 %v3306, 31
    %v3309 = vsub.s32 32, %v3308
    %v3310 = vshrl.u32 683565275, %v3309
    %v3311 = vshll.u32 683565275, %v3308
    %v3312 = vshrl.u32 2475754826, %v3309
    %v3313 = vor.u32 %v3311, %v3312
    %v3314 = vshll.u32 2475754826, %v3308
    %v3315 = vshrl.u32 2131351028, %v3309
    %v3316 = vor.u32 %v3314, %v3315
    %v3317 = vshll.u32 2131351028, %v3308
    %v3318 = vshrl.u32 2102212464, %v3309
    %v3319 = vor.u32 %v3317, %v3318
    %v3320 = vshll.u32 2102212464, %v3308
    %v3321 = vshrl.u32 920167782, %v3309
    %v3322 = vor.u32 %v3320, %v3321
    %v3323 = vshll.u32 920167782, %v3308
    %v3324 = vshrl.u32 1326507024, %v3309
    %v3325 = vor.u32 %v3323, %v3324
    %vm3326 = vcmp.lt.s32.totalorder %v3307, 1
    %vm3327 = vcmp.lt.s32.totalorder %v3307, 2
    %vm3328 = vcmp.lt.s32.totalorder %v3307, 3
    %vm3329 = vcmp.lt.s32.totalorder %v3307, 4
    %v3330 = vsel %vm3326, %v3310, %v3313
    %v3331 = vsel %vm3329, %v3319, 2102212464
    %v3332 = vsel %vm3328, %v3316, %v3331
    %v3333 = vsel %vm3327, %v3330, %v3332
    %v3334 = vsel %vm3326, %v3313, %v3316
    %v3335 = vsel %vm3329, %v3322, 920167782
    %v3336 = vsel %vm3328, %v3319, %v3335
    %v3337 = vsel %vm3327, %v3334, %v3336
    %v3338 = vsel %vm3326, %v3316, %v3319
    %v3339 = vsel %vm3329, %v3325, 1326507024
    %v3340 = vsel %vm3328, %v3322, %v3339
    %v3341 = vsel %vm3327, %v3338, %v3340
    %v3342 = vshll.u32 %v3302, 8
    %v3343 = vand.u32 %v3342, 65535
    %v3344 = vshrl.u32 %v3342, 16
    %v3345 = vand.u32 %v3341, 65535
    %v3346 = vshrl.u32 %v3341, 16
    %v3347 = vmul.u32 %v3343, %v3345
    %v3348 = vmul.u32 %v3343, %v3346
    %v3349 = vmul.u32 %v3344, %v3345
    %v3350 = vmul.u32 %v3344, %v3346
    %v3351 = vshll.u32 %v3348, 16
    %v3352 = vshrl.u32 %v3348, 16
    %v3353 = vshll.u32 %v3349, 16
    %v3354 = vshrl.u32 %v3349, 16
    %vm3355 = vc.u32 %v3347, %v3351
    %v3356 = vsel %vm3355, 1, 0
    %v3357 = vadd.s32 %v3347, %v3351
    %v3358 = vadd.s32 %v3350, %v3356
    %vm3359 = vc.u32 %v3357, %v3353
    %v3360 = vsel %vm3359, 1, 0
    %v3361 = vadd.s32 %v3357, %v3353
    %v3362 = vadd.s32 %v3358, %v3360
    %v3363 = vadd.s32 %v3362, %v3352
    %v3364 = vadd.s32 %v3363, %v3354
    %v3365 = vand.u32 %v3342, 65535
    %v3366 = vshrl.u32 %v3342, 16
    %v3367 = vand.u32 %v3337, 65535
    %v3368 = vshrl.u32 %v3337, 16
    %v3369 = vmul.u32 %v3365, %v3367
    %v3370 = vmul.u32 %v3365, %v3368
    %v3371 = vmul.u32 %v3366, %v3367
    %v3372 = vmul.u32 %v3366, %v3368
    %v3373 = vshll.u32 %v3370, 16
    %v3374 = vshrl.u32 %v3370, 16
    %v3375 = vshll.u32 %v3371, 16
    %v3376 = vshrl.u32 %v3371, 16
    %vm3377 = vc.u32 %v3369, %v3373
    %v3378 = vsel %vm3377, 1, 0
    %v3379 = vadd.s32 %v3369, %v3373
    %v3380 = vadd.s32 %v3372, %v3378
    %vm3381 = vc.u32 %v3379, %v3375
    %v3382 = vsel %vm3381, 1, 0
    %v3383 = vadd.s32 %v3379, %v3375
    %v3384 = vadd.s32 %v3380, %v3382
    %v3385 = vadd.s32 %v3384, %v3374
    %v3386 = vadd.s32 %v3385, %v3376
    %v3387 = vmul.u32 %v3342, %v3333
    %v3388 = vadd.s32 %v3364, %v3383
    %vm3389 = vc.u32 %v3364, %v3383
    %v3390 = vadd.s32 %v3386, 1
    %v3391 = vsel %vm3389, %v3390, %v3386
    %v3392 = vadd.s32 %v3387, %v3391
    %v3393 = vadd.s32 %v3392, 536870912
    %v3394 = vshrl.u32 %v3393, 30
    %v3395 = vshll.u32 %v3394, 30
    %v3396 = vsub.s32 %v3392, %v3395
    %vm3397 = vcmp.lt.s32.totalorder %v3396, 0
    %v3398 = vsub.s32 0, %v3396
    %v3399 = vsel %vm3397, %v3398, %v3396
    %v3400 = vclz %v3399
    %v3401 = vsub.s32 %v3400, 2
    %vm3402 = vcmp.gt.s32.totalorder 0, %v3401
    %v3403 = vsel %vm3402, 0, %v3401
    %v3404 = vsub.s32 32, %v3403
    %v3405 = vshll.u32 %v3396, %v3403
    %v3406 = vshrl.u32 %v3388, %v3404
    %v3407 = vor.u32 %v3405, %v3406
    %v3408 = vsub.s32 4294967266, %v3403
    %v3409 = vadd.s32 %v3408, 127
    %v3410 = vshll.u32 %v3409, 23
    %v3411 = vor.u32 4788187, %v3410
    %v3412 = vand.u32 2147483647, %v3411
    %v3414 = vcvt.s32.f32 %v3407
    %v3415 = vmul.f32 %v3414, %v3412
    %v3416 = vxor.u32 %v3415, 2147483648
    %v3417 = vsel %vm3296, %v3416, %v3415
    %v3418 = vsub.s32 4, %v3394
    %v3419 = vsel %vm3296, %v3418, %v3394
    %v3420 = vsel %vm3295, %v1738, %v3417
    %v3421 = vsel %vm3295, 0, %v3419
    %v3422 = vmul.f32 %v3420, %v3420
    %v3423 = vmul.f32 %v3422, -0.001358992
    %v3424 = vadd.f32 %v3423, 0.041655596
    %v3425 = vmul.f32 %v3422, %v3424
    %v3426 = vadd.f32 %v3425, -0.4999988
    %v3427 = vmul.f32 %v3422, %v3426
    %v3428 = vadd.f32 1.0, %v3427
    %v3429 = vmul.f32 %v3420, %v3420
    %v3430 = vmul.f32 %v3429, -0.00019511016
    %v3431 = vadd.f32 %v3430, 0.008332121
    %v3432 = vmul.f32 %v3429, %v3431
    %v3433 = vadd.f32 %v3432, -0.16666654
    %v3434 = vmul.f32 %v3429, %v3433
    %v3435 = vadd.f32 %v3434, 1.0
    %v3436 = vmul.f32 %v3435, %v3420
    %vm3437 = vweird.f32 %v1738
    %v3438 = vadd.s32 %v3421, 3
    %v3439 = vand.u32 %v3438, 3
    %vm3440 = vcmp.lt.s32.totalorder %v3439, 2
    %vm3441 = vcmp.eq.s32.totalorder %v3439, 0
    %v3442 = vxor.u32 %v3436, 2147483648
    %v3443 = vsel %vm3441, %v3428, %v3442
    %vm3444 = vcmp.eq.s32.totalorder %v3439, 2
    %v3445 = vxor.u32 %v3428, 2147483648
    %v3446 = vsel %vm3444, %v3445, %v3436
    %v3447 = vsel %vm3440, %v3443, %v3446
    %v3448 = vsel %vm3437, nan, %v3447
    %v3449 = vand.u32 2147483647, %v1739
    %vm3450 = vcmp.le.f32.partialorder %v3449, 0.7853982
    %vm3451 = vcmp.lt.s32.totalorder %v1739, 0
    %v3452 = vand.u32 %v1739, 2139095040
    %v3453 = vshrl.u32 %v3452, 23
    %v3454 = vsub.s32 %v3453, 127
    %v3455 = vand.u32 2147483647, %v1739
    %v3456 = vand.u32 %v3455, 8388607
    %v3457 = vor.u32 %v3456, 8388608
    %v3458 = vsub.s32 0, %v3457
    %v3459 = vadd.s32 %v3454, 1
    %vm3460 = vcmp.gt.s32.totalorder %v3459, 0
    %v3461 = vsel %vm3460, %v3459, 0
    %v3462 = vshrl.u32 %v3461, 5
    %v3463 = vand.u32 %v3461, 31
    %v3464 = vsub.s32 32, %v3463
    %v3465 = vshrl.u32 683565275, %v3464
    %v3466 = vshll.u32 683565275, %v3463
    %v3467 = vshrl.u32 2475754826, %v3464
    %v3468 = vor.u32 %v3466, %v3467
    %v3469 = vshll.u32 2475754826, %v3463
    %v3470 = vshrl.u32 2131351028, %v3464
    %v3471 = vor.u32 %v3469, %v3470
    %v3472 = vshll.u32 2131351028, %v3463
    %v3473 = vshrl.u32 2102212464, %v3464
    %v3474 = vor.u32 %v3472, %v3473
    %v3475 = vshll.u32 2102212464, %v3463
    %v3476 = vshrl.u32 920167782, %v3464
    %v3477 = vor.u32 %v3475, %v3476
    %v3478 = vshll.u32 920167782, %v3463
    %v3479 = vshrl.u32 1326507024, %v3464
    %v3480 = vor.u32 %v3478, %v3479
    %vm3481 = vcmp.lt.s32.totalorder %v3462, 1
    %vm3482 = vcmp.lt.s32.totalorder %v3462, 2
    %vm3483 = vcmp.lt.s32.totalorder %v3462, 3
    %vm3484 = vcmp.lt.s32.totalorder %v3462, 4
    %v3485 = vsel %vm3481, %v3465, %v3468
    %v3486 = vsel %vm3484, %v3474, 2102212464
    %v3487 = vsel %vm3483, %v3471, %v3486
    %v3488 = vsel %vm3482, %v3485, %v3487
    %v3489 = vsel %vm3481, %v3468, %v3471
    %v3490 = vsel %vm3484, %v3477, 920167782
    %v3491 = vsel %vm3483, %v3474, %v3490
    %v3492 = vsel %vm3482, %v3489, %v3491
    %v3493 = vsel %vm3481, %v3471, %v3474
    %v3494 = vsel %vm3484, %v3480, 1326507024
    %v3495 = vsel %vm3483, %v3477, %v3494
    %v3496 = vsel %vm3482, %v3493, %v3495
    %v3497 = vshll.u32 %v3457, 8
    %v3498 = vand.u32 %v3497, 65535
    %v3499 = vshrl.u32 %v3497, 16
    %v3500 = vand.u32 %v3496, 65535
    %v3501 = vshrl.u32 %v3496, 16
    %v3502 = vmul.u32 %v3498, %v3500
    %v3503 = vmul.u32 %v3498, %v3501
    %v3504 = vmul.u32 %v3499, %v3500
    %v3505 = vmul.u32 %v3499, %v3501
    %v3506 = vshll.u32 %v3503, 16
    %v3507 = vshrl.u32 %v3503, 16
    %v3508 = vshll.u32 %v3504, 16
    %v3509 = vshrl.u32 %v3504, 16
    %vm3510 = vc.u32 %v3502, %v3506
    %v3511 = vsel %vm3510, 1, 0
    %v3512 = vadd.s32 %v3502, %v3506
    %v3513 = vadd.s32 %v3505, %v3511
    %vm3514 = vc.u32 %v3512, %v3508
    %v3515 = vsel %vm3514, 1, 0
    %v3516 = vadd.s32 %v3512, %v3508
    %v3517 = vadd.s32 %v3513, %v3515
    %v3518 = vadd.s32 %v3517, %v3507
    %v3519 = vadd.s32 %v3518, %v3509
    %v3520 = vand.u32 %v3497, 65535
    %v3521 = vshrl.u32 %v3497, 16
    %v3522 = vand.u32 %v3492, 65535
    %v3523 = vshrl.u32 %v3492, 16
    %v3524 = vmul.u32 %v3520, %v3522
    %v3525 = vmul.u32 %v3520, %v3523
    %v3526 = vmul.u32 %v3521, %v3522
    %v3527 = vmul.u32 %v3521, %v3523
    %v3528 = vshll.u32 %v3525, 16
    %v3529 = vshrl.u32 %v3525, 16
    %v3530 = vshll.u32 %v3526, 16
    %v3531 = vshrl.u32 %v3526, 16
    %vm3532 = vc.u32 %v3524, %v3528
    %v3533 = vsel %vm3532, 1, 0
    %v3534 = vadd.s32 %v3524, %v3528
    %v3535 = vadd.s32 %v3527, %v3533
    %vm3536 = vc.u32 %v3534, %v3530
    %v3537 = vsel %vm3536, 1, 0
    %v3538 = vadd.s32 %v3534, %v3530
    %v3539 = vadd.s32 %v3535, %v3537
    %v3540 = vadd.s32 %v3539, %v3529
    %v3541 = vadd.s32 %v3540, %v3531
    %v3542 = vmul.u32 %v3497, %v3488
    %v3543 = vadd.s32 %v3519, %v3538
    %vm3544 = vc.u32 %v3519, %v3538
    %v3545 = vadd.s32 %v3541, 1
    %v3546 = vsel %vm3544, %v3545, %v3541
    %v3547 = vadd.s32 %v3542, %v3546
    %v3548 = vadd.s32 %v3547, 536870912
    %v3549 = vshrl.u32 %v3548, 30
    %v3550 = vshll.u32 %v3549, 30
    %v3551 = vsub.s32 %v3547, %v3550
    %vm3552 = vcmp.lt.s32.totalorder %v3551, 0
    %v3553 = vsub.s32 0, %v3551
    %v3554 = vsel %vm3552, %v3553, %v3551
    %v3555 = vclz %v3554
    %v3556 = vsub.s32 %v3555, 2
    %vm3557 = vcmp.gt.s32.totalorder 0, %v3556
    %v3558 = vsel %vm3557, 0, %v3556
    %v3559 = vsub.s32 32, %v3558
    %v3560 = vshll.u32 %v3551, %v3558
    %v3561 = vshrl.u32 %v3543, %v3559
    %v3562 = vor.u32 %v3560, %v3561
    %v3563 = vsub.s32 4294967266, %v3558
    %v3564 = vadd.s32 %v3563, 127
    %v3565 = vshll.u32 %v3564, 23
    %v3566 = vor.u32 4788187, %v3565
    %v3567 = vand.u32 2147483647, %v3566
    %v3569 = vcvt.s32.f32 %v3562
    %v3570 = vmul.f32 %v3569, %v3567
    %v3571 = vxor.u32 %v3570, 2147483648
    %v3572 = vsel %vm3451, %v3571, %v3570
    %v3573 = vsub.s32 4, %v3549
    %v3574 = vsel %vm3451, %v3573, %v3549
    %v3575 = vsel %vm3450, %v1739, %v3572
    %v3576 = vsel %vm3450, 0, %v3574
    %v3577 = vmul.f32 %v3575, %v3575
    %v3578 = vmul.f32 %v3577, -0.001358992
    %v3579 = vadd.f32 %v3578, 0.041655596
    %v3580 = vmul.f32 %v3577, %v3579
    %v3581 = vadd.f32 %v3580, -0.4999988
    %v3582 = vmul.f32 %v3577, %v3581
    %v3583 = vadd.f32 1.0, %v3582
    %v3584 = vmul.f32 %v3575, %v3575
    %v3585 = vmul.f32 %v3584, -0.00019511016
    %v3586 = vadd.f32 %v3585, 0.008332121
    %v3587 = vmul.f32 %v3584, %v3586
    %v3588 = vadd.f32 %v3587, -0.16666654
    %v3589 = vmul.f32 %v3584, %v3588
    %v3590 = vadd.f32 %v3589, 1.0
    %v3591 = vmul.f32 %v3590, %v3575
    %vm3592 = vweird.f32 %v1739
    %v3593 = vadd.s32 %v3576, 3
    %v3594 = vand.u32 %v3593, 3
    %vm3595 = vcmp.lt.s32.totalorder %v3594, 2
    %vm3596 = vcmp.eq.s32.totalorder %v3594, 0
    %v3597 = vxor.u32 %v3591, 2147483648
    %v3598 = vsel %vm3596, %v3583, %v3597
    %vm3599 = vcmp.eq.s32.totalorder %v3594, 2
    %v3600 = vxor.u32 %v3583, 2147483648
    %v3601 = vsel %vm3599, %v3600, %v3591
    %v3602 = vsel %vm3595, %v3598, %v3601
    %v3603 = vsel %vm3592, nan, %v3602
    %v3604 = vand.u32 2147483647, %v1740
    %vm3605 = vcmp.le.f32.partialorder %v3604, 0.7853982
    %vm3606 = vcmp.lt.s32.totalorder %v1740, 0
    %v3607 = vand.u32 %v1740, 2139095040
    %v3608 = vshrl.u32 %v3607, 23
    %v3609 = vsub.s32 %v3608, 127
    %v3610 = vand.u32 2147483647, %v1740
    %v3611 = vand.u32 %v3610, 8388607
    %v3612 = vor.u32 %v3611, 8388608
    %v3613 = vsub.s32 0, %v3612
    %v3614 = vadd.s32 %v3609, 1
    %vm3615 = vcmp.gt.s32.totalorder %v3614, 0
    %v3616 = vsel %vm3615, %v3614, 0
    %v3617 = vshrl.u32 %v3616, 5
    %v3618 = vand.u32 %v3616, 31
    %v3619 = vsub.s32 32, %v3618
    %v3620 = vshrl.u32 683565275, %v3619
    %v3621 = vshll.u32 683565275, %v3618
    %v3622 = vshrl.u32 2475754826, %v3619
    %v3623 = vor.u32 %v3621, %v3622
    %v3624 = vshll.u32 2475754826, %v3618
    %v3625 = vshrl.u32 2131351028, %v3619
    %v3626 = vor.u32 %v3624, %v3625
    %v3627 = vshll.u32 2131351028, %v3618
    %v3628 = vshrl.u32 2102212464, %v3619
    %v3629 = vor.u32 %v3627, %v3628
    %v3630 = vshll.u32 2102212464, %v3618
    %v3631 = vshrl.u32 920167782, %v3619
    %v3632 = vor.u32 %v3630, %v3631
    %v3633 = vshll.u32 920167782, %v3618
    %v3634 = vshrl.u32 1326507024, %v3619
    %v3635 = vor.u32 %v3633, %v3634
    %vm3636 = vcmp.lt.s32.totalorder %v3617, 1
    %vm3637 = vcmp.lt.s32.totalorder %v3617, 2
    %vm3638 = vcmp.lt.s32.totalorder %v3617, 3
    %vm3639 = vcmp.lt.s32.totalorder %v3617, 4
    %v3640 = vsel %vm3636, %v3620, %v3623
    %v3641 = vsel %vm3639, %v3629, 2102212464
    %v3642 = vsel %vm3638, %v3626, %v3641
    %v3643 = vsel %vm3637, %v3640, %v3642
    %v3644 = vsel %vm3636, %v3623, %v3626
    %v3645 = vsel %vm3639, %v3632, 920167782
    %v3646 = vsel %vm3638, %v3629, %v3645
    %v3647 = vsel %vm3637, %v3644, %v3646
    %v3648 = vsel %vm3636, %v3626, %v3629
    %v3649 = vsel %vm3639, %v3635, 1326507024
    %v3650 = vsel %vm3638, %v3632, %v3649
    %v3651 = vsel %vm3637, %v3648, %v3650
    %v3652 = vshll.u32 %v3612, 8
    %v3653 = vand.u32 %v3652, 65535
    %v3654 = vshrl.u32 %v3652, 16
    %v3655 = vand.u32 %v3651, 65535
    %v3656 = vshrl.u32 %v3651, 16
    %v3657 = vmul.u32 %v3653, %v3655
    %v3658 = vmul.u32 %v3653, %v3656
    %v3659 = vmul.u32 %v3654, %v3655
    %v3660 = vmul.u32 %v3654, %v3656
    %v3661 = vshll.u32 %v3658, 16
    %v3662 = vshrl.u32 %v3658, 16
    %v3663 = vshll.u32 %v3659, 16
    %v3664 = vshrl.u32 %v3659, 16
    %vm3665 = vc.u32 %v3657, %v3661
    %v3666 = vsel %vm3665, 1, 0
    %v3667 = vadd.s32 %v3657, %v3661
    %v3668 = vadd.s32 %v3660, %v3666
    %vm3669 = vc.u32 %v3667, %v3663
    %v3670 = vsel %vm3669, 1, 0
    %v3671 = vadd.s32 %v3667, %v3663
    %v3672 = vadd.s32 %v3668, %v3670
    %v3673 = vadd.s32 %v3672, %v3662
    %v3674 = vadd.s32 %v3673, %v3664
    %v3675 = vand.u32 %v3652, 65535
    %v3676 = vshrl.u32 %v3652, 16
    %v3677 = vand.u32 %v3647, 65535
    %v3678 = vshrl.u32 %v3647, 16
    %v3679 = vmul.u32 %v3675, %v3677
    %v3680 = vmul.u32 %v3675, %v3678
    %v3681 = vmul.u32 %v3676, %v3677
    %v3682 = vmul.u32 %v3676, %v3678
    %v3683 = vshll.u32 %v3680, 16
    %v3684 = vshrl.u32 %v3680, 16
    %v3685 = vshll.u32 %v3681, 16
    %v3686 = vshrl.u32 %v3681, 16
    %vm3687 = vc.u32 %v3679, %v3683
    %v3688 = vsel %vm3687, 1, 0
    %v3689 = vadd.s32 %v3679, %v3683
    %v3690 = vadd.s32 %v3682, %v3688
    %vm3691 = vc.u32 %v3689, %v3685
    %v3692 = vsel %vm3691, 1, 0
    %v3693 = vadd.s32 %v3689, %v3685
    %v3694 = vadd.s32 %v3690, %v3692
    %v3695 = vadd.s32 %v3694, %v3684
    %v3696 = vadd.s32 %v3695, %v3686
    %v3697 = vmul.u32 %v3652, %v3643
    %v3698 = vadd.s32 %v3674, %v3693
    %vm3699 = vc.u32 %v3674, %v3693
    %v3700 = vadd.s32 %v3696, 1
    %v3701 = vsel %vm3699, %v3700, %v3696
    %v3702 = vadd.s32 %v3697, %v3701
    %v3703 = vadd.s32 %v3702, 536870912
    %v3704 = vshrl.u32 %v3703, 30
    %v3705 = vshll.u32 %v3704, 30
    %v3706 = vsub.s32 %v3702, %v3705
    %vm3707 = vcmp.lt.s32.totalorder %v3706, 0
    %v3708 = vsub.s32 0, %v3706
    %v3709 = vsel %vm3707, %v3708, %v3706
    %v3710 = vclz %v3709
    %v3711 = vsub.s32 %v3710, 2
    %vm3712 = vcmp.gt.s32.totalorder 0, %v3711
    %v3713 = vsel %vm3712, 0, %v3711
    %v3714 = vsub.s32 32, %v3713
    %v3715 = vshll.u32 %v3706, %v3713
    %v3716 = vshrl.u32 %v3698, %v3714
    %v3717 = vor.u32 %v3715, %v3716
    %v3718 = vsub.s32 4294967266, %v3713
    %v3719 = vadd.s32 %v3718, 127
    %v3720 = vshll.u32 %v3719, 23
    %v3721 = vor.u32 4788187, %v3720
    %v3722 = vand.u32 2147483647, %v3721
    %v3724 = vcvt.s32.f32 %v3717
    %v3725 = vmul.f32 %v3724, %v3722
    %v3726 = vxor.u32 %v3725, 2147483648
    %v3727 = vsel %vm3606, %v3726, %v3725
    %v3728 = vsub.s32 4, %v3704
    %v3729 = vsel %vm3606, %v3728, %v3704
    %v3730 = vsel %vm3605, %v1740, %v3727
    %v3731 = vsel %vm3605, 0, %v3729
    %v3732 = vmul.f32 %v3730, %v3730
    %v3733 = vmul.f32 %v3732, -0.001358992
    %v3734 = vadd.f32 %v3733, 0.041655596
    %v3735 = vmul.f32 %v3732, %v3734
    %v3736 = vadd.f32 %v3735, -0.4999988
    %v3737 = vmul.f32 %v3732, %v3736
    %v3738 = vadd.f32 1.0, %v3737
    %v3739 = vmul.f32 %v3730, %v3730
    %v3740 = vmul.f32 %v3739, -0.00019511016
    %v3741 = vadd.f32 %v3740, 0.008332121
    %v3742 = vmul.f32 %v3739, %v3741
    %v3743 = vadd.f32 %v3742, -0.16666654
    %v3744 = vmul.f32 %v3739, %v3743
    %v3745 = vadd.f32 %v3744, 1.0
    %v3746 = vmul.f32 %v3745, %v3730
    %vm3747 = vweird.f32 %v1740
    %v3748 = vadd.s32 %v3731, 3
    %v3749 = vand.u32 %v3748, 3
    %vm3750 = vcmp.lt.s32.totalorder %v3749, 2
    %vm3751 = vcmp.eq.s32.totalorder %v3749, 0
    %v3752 = vxor.u32 %v3746, 2147483648
    %v3753 = vsel %vm3751, %v3738, %v3752
    %vm3754 = vcmp.eq.s32.totalorder %v3749, 2
    %v3755 = vxor.u32 %v3738, 2147483648
    %v3756 = vsel %vm3754, %v3755, %v3746
    %v3757 = vsel %vm3750, %v3753, %v3756
    %v3758 = vsel %vm3747, nan, %v3757
    %v3759 = vand.u32 2147483647, %v1741
    %vm3760 = vcmp.le.f32.partialorder %v3759, 0.7853982
    %vm3761 = vcmp.lt.s32.totalorder %v1741, 0
    %v3762 = vand.u32 %v1741, 2139095040
    %v3763 = vshrl.u32 %v3762, 23
    %v3764 = vsub.s32 %v3763, 127
    %v3765 = vand.u32 2147483647, %v1741
    %v3766 = vand.u32 %v3765, 8388607
    %v3767 = vor.u32 %v3766, 8388608
    %v3768 = vsub.s32 0, %v3767
    %v3769 = vadd.s32 %v3764, 1
    %vm3770 = vcmp.gt.s32.totalorder %v3769, 0
    %v3771 = vsel %vm3770, %v3769, 0
    %v3772 = vshrl.u32 %v3771, 5
    %v3773 = vand.u32 %v3771, 31
    %v3774 = vsub.s32 32, %v3773
    %v3775 = vshrl.u32 683565275, %v3774
    %v3776 = vshll.u32 683565275, %v3773
    %v3777 = vshrl.u32 2475754826, %v3774
    %v3778 = vor.u32 %v3776, %v3777
    %v3779 = vshll.u32 2475754826, %v3773
    %v3780 = vshrl.u32 2131351028, %v3774
    %v3781 = vor.u32 %v3779, %v3780
    %v3782 = vshll.u32 2131351028, %v3773
    %v3783 = vshrl.u32 2102212464, %v3774
    %v3784 = vor.u32 %v3782, %v3783
    %v3785 = vshll.u32 2102212464, %v3773
    %v3786 = vshrl.u32 920167782, %v3774
    %v3787 = vor.u32 %v3785, %v3786
    %v3788 = vshll.u32 920167782, %v3773
    %v3789 = vshrl.u32 1326507024, %v3774
    %v3790 = vor.u32 %v3788, %v3789
    %vm3791 = vcmp.lt.s32.totalorder %v3772, 1
    %vm3792 = vcmp.lt.s32.totalorder %v3772, 2
    %vm3793 = vcmp.lt.s32.totalorder %v3772, 3
    %vm3794 = vcmp.lt.s32.totalorder %v3772, 4
    %v3795 = vsel %vm3791, %v3775, %v3778
    %v3796 = vsel %vm3794, %v3784, 2102212464
    %v3797 = vsel %vm3793, %v3781, %v3796
    %v3798 = vsel %vm3792, %v3795, %v3797
    %v3799 = vsel %vm3791, %v3778, %v3781
    %v3800 = vsel %vm3794, %v3787, 920167782
    %v3801 = vsel %vm3793, %v3784, %v3800
    %v3802 = vsel %vm3792, %v3799, %v3801
    %v3803 = vsel %vm3791, %v3781, %v3784
    %v3804 = vsel %vm3794, %v3790, 1326507024
    %v3805 = vsel %vm3793, %v3787, %v3804
    %v3806 = vsel %vm3792, %v3803, %v3805
    %v3807 = vshll.u32 %v3767, 8
    %v3808 = vand.u32 %v3807, 65535
    %v3809 = vshrl.u32 %v3807, 16
    %v3810 = vand.u32 %v3806, 65535
    %v3811 = vshrl.u32 %v3806, 16
    %v3812 = vmul.u32 %v3808, %v3810
    %v3813 = vmul.u32 %v3808, %v3811
    %v3814 = vmul.u32 %v3809, %v3810
    %v3815 = vmul.u32 %v3809, %v3811
    %v3816 = vshll.u32 %v3813, 16
    %v3817 = vshrl.u32 %v3813, 16
    %v3818 = vshll.u32 %v3814, 16
    %v3819 = vshrl.u32 %v3814, 16
    %vm3820 = vc.u32 %v3812, %v3816
    %v3821 = vsel %vm3820, 1, 0
    %v3822 = vadd.s32 %v3812, %v3816
    %v3823 = vadd.s32 %v3815, %v3821
    %vm3824 = vc.u32 %v3822, %v3818
    %v3825 = vsel %vm3824, 1, 0
    %v3826 = vadd.s32 %v3822, %v3818
    %v3827 = vadd.s32 %v3823, %v3825
    %v3828 = vadd.s32 %v3827, %v3817
    %v3829 = vadd.s32 %v3828, %v3819
    %v3830 = vand.u32 %v3807, 65535
    %v3831 = vshrl.u32 %v3807, 16
    %v3832 = vand.u32 %v3802, 65535
    %v3833 = vshrl.u32 %v3802, 16
    %v3834 = vmul.u32 %v3830, %v3832
    %v3835 = vmul.u32 %v3830, %v3833
    %v3836 = vmul.u32 %v3831, %v3832
    %v3837 = vmul.u32 %v3831, %v3833
    %v3838 = vshll.u32 %v3835, 16
    %v3839 = vshrl.u32 %v3835, 16
    %v3840 = vshll.u32 %v3836, 16
    %v3841 = vshrl.u32 %v3836, 16
    %vm3842 = vc.u32 %v3834, %v3838
    %v3843 = vsel %vm3842, 1, 0
    %v3844 = vadd.s32 %v3834, %v3838
    %v3845 = vadd.s32 %v3837, %v3843
    %vm3846 = vc.u32 %v3844, %v3840
    %v3847 = vsel %vm3846, 1, 0
    %v3848 = vadd.s32 %v3844, %v3840
    %v3849 = vadd.s32 %v3845, %v3847
    %v3850 = vadd.s32 %v3849, %v3839
    %v3851 = vadd.s32 %v3850, %v3841
    %v3852 = vmul.u32 %v3807, %v3798
    %v3853 = vadd.s32 %v3829, %v3848
    %vm3854 = vc.u32 %v3829, %v3848
    %v3855 = vadd.s32 %v3851, 1
    %v3856 = vsel %vm3854, %v3855, %v3851
    %v3857 = vadd.s32 %v3852, %v3856
    %v3858 = vadd.s32 %v3857, 536870912
    %v3859 = vshrl.u32 %v3858, 30
    %v3860 = vshll.u32 %v3859, 30
    %v3861 = vsub.s32 %v3857, %v3860
    %vm3862 = vcmp.lt.s32.totalorder %v3861, 0
    %v3863 = vsub.s32 0, %v3861
    %v3864 = vsel %vm3862, %v3863, %v3861
    %v3865 = vclz %v3864
    %v3866 = vsub.s32 %v3865, 2
    %vm3867 = vcmp.gt.s32.totalorder 0, %v3866
    %v3868 = vsel %vm3867, 0, %v3866
    %v3869 = vsub.s32 32, %v3868
    %v3870 = vshll.u32 %v3861, %v3868
    %v3871 = vshrl.u32 %v3853, %v3869
    %v3872 = vor.u32 %v3870, %v3871
    %v3873 = vsub.s32 4294967266, %v3868
    %v3874 = vadd.s32 %v3873, 127
    %v3875 = vshll.u32 %v3874, 23
    %v3876 = vor.u32 4788187, %v3875
    %v3877 = vand.u32 2147483647, %v3876
    %v3879 = vcvt.s32.f32 %v3872
    %v3880 = vmul.f32 %v3879, %v3877
    %v3881 = vxor.u32 %v3880, 2147483648
    %v3882 = vsel %vm3761, %v3881, %v3880
    %v3883 = vsub.s32 4, %v3859
    %v3884 = vsel %vm3761, %v3883, %v3859
    %v3885 = vsel %vm3760, %v1741, %v3882
    %v3886 = vsel %vm3760, 0, %v3884
    %v3887 = vmul.f32 %v3885, %v3885
    %v3888 = vmul.f32 %v3887, -0.001358992
    %v3889 = vadd.f32 %v3888, 0.041655596
    %v3890 = vmul.f32 %v3887, %v3889
    %v3891 = vadd.f32 %v3890, -0.4999988
    %v3892 = vmul.f32 %v3887, %v3891
    %v3893 = vadd.f32 1.0, %v3892
    %v3894 = vmul.f32 %v3885, %v3885
    %v3895 = vmul.f32 %v3894, -0.00019511016
    %v3896 = vadd.f32 %v3895, 0.008332121
    %v3897 = vmul.f32 %v3894, %v3896
    %v3898 = vadd.f32 %v3897, -0.16666654
    %v3899 = vmul.f32 %v3894, %v3898
    %v3900 = vadd.f32 %v3899, 1.0
    %v3901 = vmul.f32 %v3900, %v3885
    %vm3902 = vweird.f32 %v1741
    %v3903 = vadd.s32 %v3886, 3
    %v3904 = vand.u32 %v3903, 3
    %vm3905 = vcmp.lt.s32.totalorder %v3904, 2
    %vm3906 = vcmp.eq.s32.totalorder %v3904, 0
    %v3907 = vxor.u32 %v3901, 2147483648
    %v3908 = vsel %vm3906, %v3893, %v3907
    %vm3909 = vcmp.eq.s32.totalorder %v3904, 2
    %v3910 = vxor.u32 %v3893, 2147483648
    %v3911 = vsel %vm3909, %v3910, %v3901
    %v3912 = vsel %vm3905, %v3908, %v3911
    %v3913 = vsel %vm3902, nan, %v3912
    %v3914 = vand.u32 2147483647, %v1742
    %vm3915 = vcmp.le.f32.partialorder %v3914, 0.7853982
    %vm3916 = vcmp.lt.s32.totalorder %v1742, 0
    %v3917 = vand.u32 %v1742, 2139095040
    %v3918 = vshrl.u32 %v3917, 23
    %v3919 = vsub.s32 %v3918, 127
    %v3920 = vand.u32 2147483647, %v1742
    %v3921 = vand.u32 %v3920, 8388607
    %v3922 = vor.u32 %v3921, 8388608
    %v3923 = vsub.s32 0, %v3922
    %v3924 = vadd.s32 %v3919, 1
    %vm3925 = vcmp.gt.s32.totalorder %v3924, 0
    %v3926 = vsel %vm3925, %v3924, 0
    %v3927 = vshrl.u32 %v3926, 5
    %v3928 = vand.u32 %v3926, 31
    %v3929 = vsub.s32 32, %v3928
    %v3930 = vshrl.u32 683565275, %v3929
    %v3931 = vshll.u32 683565275, %v3928
    %v3932 = vshrl.u32 2475754826, %v3929
    %v3933 = vor.u32 %v3931, %v3932
    %v3934 = vshll.u32 2475754826, %v3928
    %v3935 = vshrl.u32 2131351028, %v3929
    %v3936 = vor.u32 %v3934, %v3935
    %v3937 = vshll.u32 2131351028, %v3928
    %v3938 = vshrl.u32 2102212464, %v3929
    %v3939 = vor.u32 %v3937, %v3938
    %v3940 = vshll.u32 2102212464, %v3928
    %v3941 = vshrl.u32 920167782, %v3929
    %v3942 = vor.u32 %v3940, %v3941
    %v3943 = vshll.u32 920167782, %v3928
    %v3944 = vshrl.u32 1326507024, %v3929
    %v3945 = vor.u32 %v3943, %v3944
    %vm3946 = vcmp.lt.s32.totalorder %v3927, 1
    %vm3947 = vcmp.lt.s32.totalorder %v3927, 2
    %vm3948 = vcmp.lt.s32.totalorder %v3927, 3
    %vm3949 = vcmp.lt.s32.totalorder %v3927, 4
    %v3950 = vsel %vm3946, %v3930, %v3933
    %v3951 = vsel %vm3949, %v3939, 2102212464
    %v3952 = vsel %vm3948, %v3936, %v3951
    %v3953 = vsel %vm3947, %v3950, %v3952
    %v3954 = vsel %vm3946, %v3933, %v3936
    %v3955 = vsel %vm3949, %v3942, 920167782
    %v3956 = vsel %vm3948, %v3939, %v3955
    %v3957 = vsel %vm3947, %v3954, %v3956
    %v3958 = vsel %vm3946, %v3936, %v3939
    %v3959 = vsel %vm3949, %v3945, 1326507024
    %v3960 = vsel %vm3948, %v3942, %v3959
    %v3961 = vsel %vm3947, %v3958, %v3960
    %v3962 = vshll.u32 %v3922, 8
    %v3963 = vand.u32 %v3962, 65535
    %v3964 = vshrl.u32 %v3962, 16
    %v3965 = vand.u32 %v3961, 65535
    %v3966 = vshrl.u32 %v3961, 16
    %v3967 = vmul.u32 %v3963, %v3965
    %v3968 = vmul.u32 %v3963, %v3966
    %v3969 = vmul.u32 %v3964, %v3965
    %v3970 = vmul.u32 %v3964, %v3966
    %v3971 = vshll.u32 %v3968, 16
    %v3972 = vshrl.u32 %v3968, 16
    %v3973 = vshll.u32 %v3969, 16
    %v3974 = vshrl.u32 %v3969, 16
    %vm3975 = vc.u32 %v3967, %v3971
    %v3976 = vsel %vm3975, 1, 0
    %v3977 = vadd.s32 %v3967, %v3971
    %v3978 = vadd.s32 %v3970, %v3976
    %vm3979 = vc.u32 %v3977, %v3973
    %v3980 = vsel %vm3979, 1, 0
    %v3981 = vadd.s32 %v3977, %v3973
    %v3982 = vadd.s32 %v3978, %v3980
    %v3983 = vadd.s32 %v3982, %v3972
    %v3984 = vadd.s32 %v3983, %v3974
    %v3985 = vand.u32 %v3962, 65535
    %v3986 = vshrl.u32 %v3962, 16
    %v3987 = vand.u32 %v3957, 65535
    %v3988 = vshrl.u32 %v3957, 16
    %v3989 = vmul.u32 %v3985, %v3987
    %v3990 = vmul.u32 %v3985, %v3988
    %v3991 = vmul.u32 %v3986, %v3987
    %v3992 = vmul.u32 %v3986, %v3988
    %v3993 = vshll.u32 %v3990, 16
    %v3994 = vshrl.u32 %v3990, 16
    %v3995 = vshll.u32 %v3991, 16
    %v3996 = vshrl.u32 %v3991, 16
    %vm3997 = vc.u32 %v3989, %v3993
    %v3998 = vsel %vm3997, 1, 0
    %v3999 = vadd.s32 %v3989, %v3993
    %v4000 = vadd.s32 %v3992, %v3998
    %vm4001 = vc.u32 %v3999, %v3995
    %v4002 = vsel %vm4001, 1, 0
    %v4003 = vadd.s32 %v3999, %v3995
    %v4004 = vadd.s32 %v4000, %v4002
    %v4005 = vadd.s32 %v4004, %v3994
    %v4006 = vadd.s32 %v4005, %v3996
    %v4007 = vmul.u32 %v3962, %v3953
    %v4008 = vadd.s32 %v3984, %v4003
    %vm4009 = vc.u32 %v3984, %v4003
    %v4010 = vadd.s32 %v4006, 1
    %v4011 = vsel %vm4009, %v4010, %v4006
    %v4012 = vadd.s32 %v4007, %v4011
    %v4013 = vadd.s32 %v4012, 536870912
    %v4014 = vshrl.u32 %v4013, 30
    %v4015 = vshll.u32 %v4014, 30
    %v4016 = vsub.s32 %v4012, %v4015
    %vm4017 = vcmp.lt.s32.totalorder %v4016, 0
    %v4018 = vsub.s32 0, %v4016
    %v4019 = vsel %vm4017, %v4018, %v4016
    %v4020 = vclz %v4019
    %v4021 = vsub.s32 %v4020, 2
    %vm4022 = vcmp.gt.s32.totalorder 0, %v4021
    %v4023 = vsel %vm4022, 0, %v4021
    %v4024 = vsub.s32 32, %v4023
    %v4025 = vshll.u32 %v4016, %v4023
    %v4026 = vshrl.u32 %v4008, %v4024
    %v4027 = vor.u32 %v4025, %v4026
    %v4028 = vsub.s32 4294967266, %v4023
    %v4029 = vadd.s32 %v4028, 127
    %v4030 = vshll.u32 %v4029, 23
    %v4031 = vor.u32 4788187, %v4030
    %v4032 = vand.u32 2147483647, %v4031
    %v4034 = vcvt.s32.f32 %v4027
    %v4035 = vmul.f32 %v4034, %v4032
    %v4036 = vxor.u32 %v4035, 2147483648
    %v4037 = vsel %vm3916, %v4036, %v4035
    %v4038 = vsub.s32 4, %v4014
    %v4039 = vsel %vm3916, %v4038, %v4014
    %v4040 = vsel %vm3915, %v1742, %v4037
    %v4041 = vsel %vm3915, 0, %v4039
    %v4042 = vmul.f32 %v4040, %v4040
    %v4043 = vmul.f32 %v4042, -0.001358992
    %v4044 = vadd.f32 %v4043, 0.041655596
    %v4045 = vmul.f32 %v4042, %v4044
    %v4046 = vadd.f32 %v4045, -0.4999988
    %v4047 = vmul.f32 %v4042, %v4046
    %v4048 = vadd.f32 1.0, %v4047
    %v4049 = vmul.f32 %v4040, %v4040
    %v4050 = vmul.f32 %v4049, -0.00019511016
    %v4051 = vadd.f32 %v4050, 0.008332121
    %v4052 = vmul.f32 %v4049, %v4051
    %v4053 = vadd.f32 %v4052, -0.16666654
    %v4054 = vmul.f32 %v4049, %v4053
    %v4055 = vadd.f32 %v4054, 1.0
    %v4056 = vmul.f32 %v4055, %v4040
    %vm4057 = vweird.f32 %v1742
    %v4058 = vadd.s32 %v4041, 3
    %v4059 = vand.u32 %v4058, 3
    %vm4060 = vcmp.lt.s32.totalorder %v4059, 2
    %vm4061 = vcmp.eq.s32.totalorder %v4059, 0
    %v4062 = vxor.u32 %v4056, 2147483648
    %v4063 = vsel %vm4061, %v4048, %v4062
    %vm4064 = vcmp.eq.s32.totalorder %v4059, 2
    %v4065 = vxor.u32 %v4048, 2147483648
    %v4066 = vsel %vm4064, %v4065, %v4056
    %v4067 = vsel %vm4060, %v4063, %v4066
    %v4068 = vsel %vm4057, nan, %v4067
    %v4069 = vand.u32 2147483647, %v1743
    %vm4070 = vcmp.le.f32.partialorder %v4069, 0.7853982
    %vm4071 = vcmp.lt.s32.totalorder %v1743, 0
    %v4072 = vand.u32 %v1743, 2139095040
    %v4073 = vshrl.u32 %v4072, 23
    %v4074 = vsub.s32 %v4073, 127
    %v4075 = vand.u32 2147483647, %v1743
    %v4076 = vand.u32 %v4075, 8388607
    %v4077 = vor.u32 %v4076, 8388608
    %v4078 = vsub.s32 0, %v4077
    %v4079 = vadd.s32 %v4074, 1
    %vm4080 = vcmp.gt.s32.totalorder %v4079, 0
    %v4081 = vsel %vm4080, %v4079, 0
    %v4082 = vshrl.u32 %v4081, 5
    %v4083 = vand.u32 %v4081, 31
    %v4084 = vsub.s32 32, %v4083
    %v4085 = vshrl.u32 683565275, %v4084
    %v4086 = vshll.u32 683565275, %v4083
    %v4087 = vshrl.u32 2475754826, %v4084
    %v4088 = vor.u32 %v4086, %v4087
    %v4089 = vshll.u32 2475754826, %v4083
    %v4090 = vshrl.u32 2131351028, %v4084
    %v4091 = vor.u32 %v4089, %v4090
    %v4092 = vshll.u32 2131351028, %v4083
    %v4093 = vshrl.u32 2102212464, %v4084
    %v4094 = vor.u32 %v4092, %v4093
    %v4095 = vshll.u32 2102212464, %v4083
    %v4096 = vshrl.u32 920167782, %v4084
    %v4097 = vor.u32 %v4095, %v4096
    %v4098 = vshll.u32 920167782, %v4083
    %v4099 = vshrl.u32 1326507024, %v4084
    %v4100 = vor.u32 %v4098, %v4099
    %vm4101 = vcmp.lt.s32.totalorder %v4082, 1
    %vm4102 = vcmp.lt.s32.totalorder %v4082, 2
    %vm4103 = vcmp.lt.s32.totalorder %v4082, 3
    %vm4104 = vcmp.lt.s32.totalorder %v4082, 4
    %v4105 = vsel %vm4101, %v4085, %v4088
    %v4106 = vsel %vm4104, %v4094, 2102212464
    %v4107 = vsel %vm4103, %v4091, %v4106
    %v4108 = vsel %vm4102, %v4105, %v4107
    %v4109 = vsel %vm4101, %v4088, %v4091
    %v4110 = vsel %vm4104, %v4097, 920167782
    %v4111 = vsel %vm4103, %v4094, %v4110
    %v4112 = vsel %vm4102, %v4109, %v4111
    %v4113 = vsel %vm4101, %v4091, %v4094
    %v4114 = vsel %vm4104, %v4100, 1326507024
    %v4115 = vsel %vm4103, %v4097, %v4114
    %v4116 = vsel %vm4102, %v4113, %v4115
    %v4117 = vshll.u32 %v4077, 8
    %v4118 = vand.u32 %v4117, 65535
    %v4119 = vshrl.u32 %v4117, 16
    %v4120 = vand.u32 %v4116, 65535
    %v4121 = vshrl.u32 %v4116, 16
    %v4122 = vmul.u32 %v4118, %v4120
    %v4123 = vmul.u32 %v4118, %v4121
    %v4124 = vmul.u32 %v4119, %v4120
    %v4125 = vmul.u32 %v4119, %v4121
    %v4126 = vshll.u32 %v4123, 16
    %v4127 = vshrl.u32 %v4123, 16
    %v4128 = vshll.u32 %v4124, 16
    %v4129 = vshrl.u32 %v4124, 16
    %vm4130 = vc.u32 %v4122, %v4126
    %v4131 = vsel %vm4130, 1, 0
    %v4132 = vadd.s32 %v4122, %v4126
    %v4133 = vadd.s32 %v4125, %v4131
    %vm4134 = vc.u32 %v4132, %v4128
    %v4135 = vsel %vm4134, 1, 0
    %v4136 = vadd.s32 %v4132, %v4128
    %v4137 = vadd.s32 %v4133, %v4135
    %v4138 = vadd.s32 %v4137, %v4127
    %v4139 = vadd.s32 %v4138, %v4129
    %v4140 = vand.u32 %v4117, 65535
    %v4141 = vshrl.u32 %v4117, 16
    %v4142 = vand.u32 %v4112, 65535
    %v4143 = vshrl.u32 %v4112, 16
    %v4144 = vmul.u32 %v4140, %v4142
    %v4145 = vmul.u32 %v4140, %v4143
    %v4146 = vmul.u32 %v4141, %v4142
    %v4147 = vmul.u32 %v4141, %v4143
    %v4148 = vshll.u32 %v4145, 16
    %v4149 = vshrl.u32 %v4145, 16
    %v4150 = vshll.u32 %v4146, 16
    %v4151 = vshrl.u32 %v4146, 16
    %vm4152 = vc.u32 %v4144, %v4148
    %v4153 = vsel %vm4152, 1, 0
    %v4154 = vadd.s32 %v4144, %v4148
    %v4155 = vadd.s32 %v4147, %v4153
    %vm4156 = vc.u32 %v4154, %v4150
    %v4157 = vsel %vm4156, 1, 0
    %v4158 = vadd.s32 %v4154, %v4150
    %v4159 = vadd.s32 %v4155, %v4157
    %v4160 = vadd.s32 %v4159, %v4149
    %v4161 = vadd.s32 %v4160, %v4151
    %v4162 = vmul.u32 %v4117, %v4108
    %v4163 = vadd.s32 %v4139, %v4158
    %vm4164 = vc.u32 %v4139, %v4158
    %v4165 = vadd.s32 %v4161, 1
    %v4166 = vsel %vm4164, %v4165, %v4161
    %v4167 = vadd.s32 %v4162, %v4166
    %v4168 = vadd.s32 %v4167, 536870912
    %v4169 = vshrl.u32 %v4168, 30
    %v4170 = vshll.u32 %v4169, 30
    %v4171 = vsub.s32 %v4167, %v4170
    %vm4172 = vcmp.lt.s32.totalorder %v4171, 0
    %v4173 = vsub.s32 0, %v4171
    %v4174 = vsel %vm4172, %v4173, %v4171
    %v4175 = vclz %v4174
    %v4176 = vsub.s32 %v4175, 2
    %vm4177 = vcmp.gt.s32.totalorder 0, %v4176
    %v4178 = vsel %vm4177, 0, %v4176
    %v4179 = vsub.s32 32, %v4178
    %v4180 = vshll.u32 %v4171, %v4178
    %v4181 = vshrl.u32 %v4163, %v4179
    %v4182 = vor.u32 %v4180, %v4181
    %v4183 = vsub.s32 4294967266, %v4178
    %v4184 = vadd.s32 %v4183, 127
    %v4185 = vshll.u32 %v4184, 23
    %v4186 = vor.u32 4788187, %v4185
    %v4187 = vand.u32 2147483647, %v4186
    %v4189 = vcvt.s32.f32 %v4182
    %v4190 = vmul.f32 %v4189, %v4187
    %v4191 = vxor.u32 %v4190, 2147483648
    %v4192 = vsel %vm4071, %v4191, %v4190
    %v4193 = vsub.s32 4, %v4169
    %v4194 = vsel %vm4071, %v4193, %v4169
    %v4195 = vsel %vm4070, %v1743, %v4192
    %v4196 = vsel %vm4070, 0, %v4194
    %v4197 = vmul.f32 %v4195, %v4195
    %v4198 = vmul.f32 %v4197, -0.001358992
    %v4199 = vadd.f32 %v4198, 0.041655596
    %v4200 = vmul.f32 %v4197, %v4199
    %v4201 = vadd.f32 %v4200, -0.4999988
    %v4202 = vmul.f32 %v4197, %v4201
    %v4203 = vadd.f32 1.0, %v4202
    %v4204 = vmul.f32 %v4195, %v4195
    %v4205 = vmul.f32 %v4204, -0.00019511016
    %v4206 = vadd.f32 %v4205, 0.008332121
    %v4207 = vmul.f32 %v4204, %v4206
    %v4208 = vadd.f32 %v4207, -0.16666654
    %v4209 = vmul.f32 %v4204, %v4208
    %v4210 = vadd.f32 %v4209, 1.0
    %v4211 = vmul.f32 %v4210, %v4195
    %vm4212 = vweird.f32 %v1743
    %v4213 = vadd.s32 %v4196, 3
    %v4214 = vand.u32 %v4213, 3
    %vm4215 = vcmp.lt.s32.totalorder %v4214, 2
    %vm4216 = vcmp.eq.s32.totalorder %v4214, 0
    %v4217 = vxor.u32 %v4211, 2147483648
    %v4218 = vsel %vm4216, %v4203, %v4217
    %vm4219 = vcmp.eq.s32.totalorder %v4214, 2
    %v4220 = vxor.u32 %v4203, 2147483648
    %v4221 = vsel %vm4219, %v4220, %v4211
    %v4222 = vsel %vm4215, %v4218, %v4221
    %v4223 = vsel %vm4212, nan, %v4222
    %v4224 = vpack.c.bf16 %v781, %v781
    %v4225 = vpack.c.bf16 %v783, %v783
    %v4226 = vpack.c.bf16 %v786, %v786
    %v4227 = vpack.c.bf16 %v788, %v788
    %v4228 = vpack.c.bf16 %v791, %v791
    %v4229 = vpack.c.bf16 %v793, %v793
    %v4230 = vpack.c.bf16 %v796, %v796
    %v4231 = vpack.c.bf16 %v798, %v798
    %v4232 = vpack.c.bf16 %v801, %v801
    %v4233 = vpack.c.bf16 %v803, %v803
    %v4234 = vpack.c.bf16 %v806, %v806
    %v4235 = vpack.c.bf16 %v808, %v808
    %v4236 = vpack.c.bf16 %v811, %v811
    %v4237 = vpack.c.bf16 %v813, %v813
    %v4238 = vpack.c.bf16 %v816, %v816
    %v4239 = vpack.c.bf16 %v818, %v818
    %v4240 = vpack.c.bf16 %v1017, %v1017
    %v4241 = vpack.c.bf16 %v1019, %v1019
    %v4242 = vpack.c.bf16 %v1022, %v1022
    %v4243 = vpack.c.bf16 %v1024, %v1024
    %v4244 = vpack.c.bf16 %v1027, %v1027
    %v4245 = vpack.c.bf16 %v1029, %v1029
    %v4246 = vpack.c.bf16 %v1032, %v1032
    %v4247 = vpack.c.bf16 %v1034, %v1034
    %v4248 = vpack.c.bf16 %v1037, %v1037
    %v4249 = vpack.c.bf16 %v1039, %v1039
    %v4250 = vpack.c.bf16 %v1042, %v1042
    %v4251 = vpack.c.bf16 %v1044, %v1044
    %v4252 = vpack.c.bf16 %v1047, %v1047
    %v4253 = vpack.c.bf16 %v1049, %v1049
    %v4254 = vpack.c.bf16 %v1052, %v1052
    %v4255 = vpack.c.bf16 %v1054, %v1054
    %v4256 = vpack.c.bf16 %v1583, %v1583
    %v4257 = vpack.c.bf16 %v1584, %v1584
    %v4258 = vpack.c.bf16 %v1585, %v1585
    %v4259 = vpack.c.bf16 %v1586, %v1586
    %v4260 = vpack.c.bf16 %v1587, %v1587
    %v4261 = vpack.c.bf16 %v1588, %v1588
    %v4262 = vpack.c.bf16 %v1589, %v1589
    %v4263 = vpack.c.bf16 %v1590, %v1590
    %v4264 = vpack.c.bf16 %v1591, %v1591
    %v4265 = vpack.c.bf16 %v1592, %v1592
    %v4266 = vpack.c.bf16 %v1593, %v1593
    %v4267 = vpack.c.bf16 %v1594, %v1594
    %v4268 = vpack.c.bf16 %v1595, %v1595
    %v4269 = vpack.c.bf16 %v1596, %v1596
    %v4270 = vpack.c.bf16 %v1597, %v1597
    %v4271 = vpack.c.bf16 %v1598, %v1598
    %v4272 = vmul.f32 %v22, %v1521
    %v4273 = vmul.f32 %v23, %v1525
    %v4274 = vmul.f32 %v24, %v1529
    %v4275 = vmul.f32 %v25, %v1533
    %v4276 = vmul.f32 %v26, %v1537
    %v4277 = vmul.f32 %v27, %v1541
    %v4278 = vmul.f32 %v28, %v1545
    %v4279 = vmul.f32 %v29, %v1549
    %v4280 = vmul.f32 %v30, %v1553
    %v4281 = vmul.f32 %v31, %v1557
    %v4282 = vmul.f32 %v32, %v1561
    %v4283 = vmul.f32 %v33, %v1565
    %v4284 = vmul.f32 %v34, %v1569
    %v4285 = vmul.f32 %v35, %v1573
    %v4286 = vmul.f32 %v36, %v1577
    %v4287 = vmul.f32 %v37, %v1581
    %v4288 = vpack.c.bf16 %v4272, %v4272
    %v4289 = vpack.c.bf16 %v4273, %v4273
    %v4290 = vpack.c.bf16 %v4274, %v4274
    %v4291 = vpack.c.bf16 %v4275, %v4275
    %v4292 = vpack.c.bf16 %v4276, %v4276
    %v4293 = vpack.c.bf16 %v4277, %v4277
    %v4294 = vpack.c.bf16 %v4278, %v4278
    %v4295 = vpack.c.bf16 %v4279, %v4279
    %v4296 = vpack.c.bf16 %v4280, %v4280
    %v4297 = vpack.c.bf16 %v4281, %v4281
    %v4298 = vpack.c.bf16 %v4282, %v4282
    %v4299 = vpack.c.bf16 %v4283, %v4283
    %v4300 = vpack.c.bf16 %v4284, %v4284
    %v4301 = vpack.c.bf16 %v4285, %v4285
    %v4302 = vpack.c.bf16 %v4286, %v4286
    %v4303 = vpack.c.bf16 %v4287, %v4287
    %v4304 = vmul.f32 %v1898, %v1521
    %v4305 = vmul.f32 %v2053, %v1525
    %v4306 = vmul.f32 %v2208, %v1529
    %v4307 = vmul.f32 %v2363, %v1533
    %v4308 = vmul.f32 %v2518, %v1537
    %v4309 = vmul.f32 %v2673, %v1541
    %v4310 = vmul.f32 %v2828, %v1545
    %v4311 = vmul.f32 %v2983, %v1549
    %v4312 = vmul.f32 %v3138, %v1553
    %v4313 = vmul.f32 %v3293, %v1557
    %v4314 = vmul.f32 %v3448, %v1561
    %v4315 = vmul.f32 %v3603, %v1565
    %v4316 = vmul.f32 %v3758, %v1569
    %v4317 = vmul.f32 %v3913, %v1573
    %v4318 = vmul.f32 %v4068, %v1577
    %v4319 = vmul.f32 %v4223, %v1581
    %v4320 = vpack.c.bf16 %v4304, %v4304
    %v4321 = vpack.c.bf16 %v4305, %v4305
    %v4322 = vpack.c.bf16 %v4306, %v4306
    %v4323 = vpack.c.bf16 %v4307, %v4307
    %v4324 = vpack.c.bf16 %v4308, %v4308
    %v4325 = vpack.c.bf16 %v4309, %v4309
    %v4326 = vpack.c.bf16 %v4310, %v4310
    %v4327 = vpack.c.bf16 %v4311, %v4311
    %v4328 = vpack.c.bf16 %v4312, %v4312
    %v4329 = vpack.c.bf16 %v4313, %v4313
    %v4330 = vpack.c.bf16 %v4314, %v4314
    %v4331 = vpack.c.bf16 %v4315, %v4315
    %v4332 = vpack.c.bf16 %v4316, %v4316
    %v4333 = vpack.c.bf16 %v4317, %v4317
    %v4334 = vpack.c.bf16 %v4318, %v4318
    %v4335 = vpack.c.bf16 %v4319, %v4319
    %v4352 = vunpack.c.l.b16 %v4224
    %v4353 = vunpack.c.l.b16 %v4225
    %v4354 = vunpack.c.l.b16 %v4226
    %v4355 = vunpack.c.l.b16 %v4227
    %v4356 = vunpack.c.l.b16 %v4228
    %v4357 = vunpack.c.l.b16 %v4229
    %v4358 = vunpack.c.l.b16 %v4230
    %v4359 = vunpack.c.l.b16 %v4231
    %v4360 = vunpack.c.l.b16 %v4232
    %v4361 = vunpack.c.l.b16 %v4233
    %v4362 = vunpack.c.l.b16 %v4234
    %v4363 = vunpack.c.l.b16 %v4235
    %v4364 = vunpack.c.l.b16 %v4236
    %v4365 = vunpack.c.l.b16 %v4237
    %v4366 = vunpack.c.l.b16 %v4238
    %v4367 = vunpack.c.l.b16 %v4239
    %v4368 = vpack.c.b16 %v4353, %v4352
    %v4369 = vpack.c.b16 %v4355, %v4354
    %v4370 = vpack.c.b16 %v4357, %v4356
    %v4371 = vpack.c.b16 %v4359, %v4358
    %v4372 = vpack.c.b16 %v4361, %v4360
    %v4373 = vpack.c.b16 %v4363, %v4362
    %v4374 = vpack.c.b16 %v4365, %v4364
    %v4375 = vpack.c.b16 %v4367, %v4366
    %v4392 = vunpack.c.l.b16 %v4240
    %v4393 = vunpack.c.l.b16 %v4241
    %v4394 = vunpack.c.l.b16 %v4242
    %v4395 = vunpack.c.l.b16 %v4243
    %v4396 = vunpack.c.l.b16 %v4244
    %v4397 = vunpack.c.l.b16 %v4245
    %v4398 = vunpack.c.l.b16 %v4246
    %v4399 = vunpack.c.l.b16 %v4247
    %v4400 = vunpack.c.l.b16 %v4248
    %v4401 = vunpack.c.l.b16 %v4249
    %v4402 = vunpack.c.l.b16 %v4250
    %v4403 = vunpack.c.l.b16 %v4251
    %v4404 = vunpack.c.l.b16 %v4252
    %v4405 = vunpack.c.l.b16 %v4253
    %v4406 = vunpack.c.l.b16 %v4254
    %v4407 = vunpack.c.l.b16 %v4255
    %v4408 = vpack.c.b16 %v4393, %v4392
    %v4409 = vpack.c.b16 %v4395, %v4394
    %v4410 = vpack.c.b16 %v4397, %v4396
    %v4411 = vpack.c.b16 %v4399, %v4398
    %v4412 = vpack.c.b16 %v4401, %v4400
    %v4413 = vpack.c.b16 %v4403, %v4402
    %v4414 = vpack.c.b16 %v4405, %v4404
    %v4415 = vpack.c.b16 %v4407, %v4406
    %4416 = vrot.lane.b32.xlu0 %v4408, 32
    %v4417 = vpop.permute.xlu0 %4416
    %4418 = vrot.lane.b32.xlu0 %v4409, 32
    %v4419 = vpop.permute.xlu0 %4418
    %4420 = vrot.lane.b32.xlu0 %v4410, 32
    %v4421 = vpop.permute.xlu0 %4420
    %4422 = vrot.lane.b32.xlu0 %v4411, 32
    %v4423 = vpop.permute.xlu0 %4422
    %4424 = vrot.lane.b32.xlu0 %v4412, 32
    %v4425 = vpop.permute.xlu0 %4424
    %4426 = vrot.lane.b32.xlu0 %v4413, 32
    %v4427 = vpop.permute.xlu0 %4426
    %4428 = vrot.lane.b32.xlu0 %v4414, 32
    %v4429 = vpop.permute.xlu0 %4428
    %4430 = vrot.lane.b32.xlu0 %v4415, 32
    %v4431 = vpop.permute.xlu0 %4430
    %v4448 = vunpack.c.l.b16 %v4256
    %v4449 = vunpack.c.l.b16 %v4257
    %v4450 = vunpack.c.l.b16 %v4258
    %v4451 = vunpack.c.l.b16 %v4259
    %v4452 = vunpack.c.l.b16 %v4260
    %v4453 = vunpack.c.l.b16 %v4261
    %v4454 = vunpack.c.l.b16 %v4262
    %v4455 = vunpack.c.l.b16 %v4263
    %v4456 = vunpack.c.l.b16 %v4264
    %v4457 = vunpack.c.l.b16 %v4265
    %v4458 = vunpack.c.l.b16 %v4266
    %v4459 = vunpack.c.l.b16 %v4267
    %v4460 = vunpack.c.l.b16 %v4268
    %v4461 = vunpack.c.l.b16 %v4269
    %v4462 = vunpack.c.l.b16 %v4270
    %v4463 = vunpack.c.l.b16 %v4271
    %v4464 = vpack.c.b16 %v4449, %v4448
    %v4465 = vpack.c.b16 %v4451, %v4450
    %v4466 = vpack.c.b16 %v4453, %v4452
    %v4467 = vpack.c.b16 %v4455, %v4454
    %v4468 = vpack.c.b16 %v4457, %v4456
    %v4469 = vpack.c.b16 %v4459, %v4458
    %v4470 = vpack.c.b16 %v4461, %v4460
    %v4471 = vpack.c.b16 %v4463, %v4462
    %4472 = vrot.lane.b32.xlu0 %v4464, 64
    %v4473 = vpop.permute.xlu0 %4472
    %4474 = vrot.lane.b32.xlu0 %v4465, 64
    %v4475 = vpop.permute.xlu0 %4474
    %4476 = vrot.lane.b32.xlu0 %v4466, 64
    %v4477 = vpop.permute.xlu0 %4476
    %4478 = vrot.lane.b32.xlu0 %v4467, 64
    %v4479 = vpop.permute.xlu0 %4478
    %4480 = vrot.lane.b32.xlu0 %v4468, 64
    %v4481 = vpop.permute.xlu0 %4480
    %4482 = vrot.lane.b32.xlu0 %v4469, 64
    %v4483 = vpop.permute.xlu0 %4482
    %4484 = vrot.lane.b32.xlu0 %v4470, 64
    %v4485 = vpop.permute.xlu0 %4484
    %4486 = vrot.lane.b32.xlu0 %v4471, 64
    %v4487 = vpop.permute.xlu0 %4486
    %v4504 = vunpack.c.l.b16 %v4288
    %v4505 = vunpack.c.l.b16 %v4289
    %v4506 = vunpack.c.l.b16 %v4290
    %v4507 = vunpack.c.l.b16 %v4291
    %v4508 = vunpack.c.l.b16 %v4292
    %v4509 = vunpack.c.l.b16 %v4293
    %v4510 = vunpack.c.l.b16 %v4294
    %v4511 = vunpack.c.l.b16 %v4295
    %v4512 = vunpack.c.l.b16 %v4296
    %v4513 = vunpack.c.l.b16 %v4297
    %v4514 = vunpack.c.l.b16 %v4298
    %v4515 = vunpack.c.l.b16 %v4299
    %v4516 = vunpack.c.l.b16 %v4300
    %v4517 = vunpack.c.l.b16 %v4301
    %v4518 = vunpack.c.l.b16 %v4302
    %v4519 = vunpack.c.l.b16 %v4303
    %v4520 = vpack.c.b16 %v4505, %v4504
    %v4521 = vpack.c.b16 %v4507, %v4506
    %v4522 = vpack.c.b16 %v4509, %v4508
    %v4523 = vpack.c.b16 %v4511, %v4510
    %v4524 = vpack.c.b16 %v4513, %v4512
    %v4525 = vpack.c.b16 %v4515, %v4514
    %v4526 = vpack.c.b16 %v4517, %v4516
    %v4527 = vpack.c.b16 %v4519, %v4518
    %4528 = vrot.lane.b32.xlu0 %v4520, 62
    %v4529 = vpop.permute.xlu0 %4528
    %4530 = vrot.lane.b32.xlu0 %v4521, 62
    %v4531 = vpop.permute.xlu0 %4530
    %4532 = vrot.lane.b32.xlu0 %v4522, 62
    %v4533 = vpop.permute.xlu0 %4532
    %4534 = vrot.lane.b32.xlu0 %v4523, 62
    %v4535 = vpop.permute.xlu0 %4534
    %4536 = vrot.lane.b32.xlu0 %v4524, 62
    %v4537 = vpop.permute.xlu0 %4536
    %4538 = vrot.lane.b32.xlu0 %v4525, 62
    %v4539 = vpop.permute.xlu0 %4538
    %4540 = vrot.lane.b32.xlu0 %v4526, 62
    %v4541 = vpop.permute.xlu0 %4540
    %4542 = vrot.lane.b32.xlu0 %v4527, 62
    %v4543 = vpop.permute.xlu0 %4542
    %v4560 = vunpack.c.l.b16 %v4320
    %v4561 = vunpack.c.l.b16 %v4321
    %v4562 = vunpack.c.l.b16 %v4322
    %v4563 = vunpack.c.l.b16 %v4323
    %v4564 = vunpack.c.l.b16 %v4324
    %v4565 = vunpack.c.l.b16 %v4325
    %v4566 = vunpack.c.l.b16 %v4326
    %v4567 = vunpack.c.l.b16 %v4327
    %v4568 = vunpack.c.l.b16 %v4328
    %v4569 = vunpack.c.l.b16 %v4329
    %v4570 = vunpack.c.l.b16 %v4330
    %v4571 = vunpack.c.l.b16 %v4331
    %v4572 = vunpack.c.l.b16 %v4332
    %v4573 = vunpack.c.l.b16 %v4333
    %v4574 = vunpack.c.l.b16 %v4334
    %v4575 = vunpack.c.l.b16 %v4335
    %v4576 = vpack.c.b16 %v4561, %v4560
    %v4577 = vpack.c.b16 %v4563, %v4562
    %v4578 = vpack.c.b16 %v4565, %v4564
    %v4579 = vpack.c.b16 %v4567, %v4566
    %v4580 = vpack.c.b16 %v4569, %v4568
    %v4581 = vpack.c.b16 %v4571, %v4570
    %v4582 = vpack.c.b16 %v4573, %v4572
    %v4583 = vpack.c.b16 %v4575, %v4574
    %4584 = vrot.lane.b32.xlu0 %v4576, 98
    %v4585 = vpop.permute.xlu0 %4584
    %4586 = vrot.lane.b32.xlu0 %v4577, 98
    %v4587 = vpop.permute.xlu0 %4586
    %4588 = vrot.lane.b32.xlu0 %v4578, 98
    %v4589 = vpop.permute.xlu0 %4588
    %4590 = vrot.lane.b32.xlu0 %v4579, 98
    %v4591 = vpop.permute.xlu0 %4590
    %4592 = vrot.lane.b32.xlu0 %v4580, 98
    %v4593 = vpop.permute.xlu0 %4592
    %4594 = vrot.lane.b32.xlu0 %v4581, 98
    %v4595 = vpop.permute.xlu0 %4594
    %4596 = vrot.lane.b32.xlu0 %v4582, 98
    %v4597 = vpop.permute.xlu0 %4596
    %4598 = vrot.lane.b32.xlu0 %v4583, 98
    %v4599 = vpop.permute.xlu0 %4598
    %v4602 = vsel %vm1429, %v4368, %v4417
    %v4605 = vsel %vm1429, %v4369, %v4419
    %v4608 = vsel %vm1429, %v4370, %v4421
    %v4611 = vsel %vm1429, %v4371, %v4423
    %v4614 = vsel %vm1429, %v4372, %v4425
    %v4617 = vsel %vm1429, %v4373, %v4427
    %v4620 = vsel %vm1429, %v4374, %v4429
    %v4623 = vsel %vm1429, %v4375, %v4431
    %vm4624 = vcmask 523264
    %v4626 = vsel %vm4624, %v4602, %v4473
    %v4628 = vsel %vm4624, %v4605, %v4475
    %v4630 = vsel %vm4624, %v4608, %v4477
    %v4632 = vsel %vm4624, %v4611, %v4479
    %v4634 = vsel %vm4624, %v4614, %v4481
    %v4636 = vsel %vm4624, %v4617, %v4483
    %v4638 = vsel %vm4624, %v4620, %v4485
    %v4640 = vsel %vm4624, %v4623, %v4487
    %vm4641 = vcmask 785408
    %v4643 = vsel %vm4641, %v4626, %v4529
    %v4645 = vsel %vm4641, %v4628, %v4531
    %v4647 = vsel %vm4641, %v4630, %v4533
    %v4649 = vsel %vm4641, %v4632, %v4535
    %v4651 = vsel %vm4641, %v4634, %v4537
    %v4653 = vsel %vm4641, %v4636, %v4539
    %v4655 = vsel %vm4641, %v4638, %v4541
    %v4657 = vsel %vm4641, %v4640, %v4543
    %vm4658 = vcmask 801792
    %v4660 = vsel %vm4658, %v4643, %v4585
    %v4662 = vsel %vm4658, %v4645, %v4587
    %v4664 = vsel %vm4658, %v4647, %v4589
    %v4666 = vsel %vm4658, %v4649, %v4591
    %v4668 = vsel %vm4658, %v4651, %v4593
    %v4670 = vsel %vm4658, %v4653, %v4595
    %v4672 = vsel %vm4658, %v4655, %v4597
    %v4674 = vsel %vm4658, %v4657, %v4599
    %vm4675 = vcmask 900096
    %v4676 = vsel %vm4675, %v4660, %v4585
    %v4677 = vsel %vm4675, %v4662, %v4587
    %v4678 = vsel %vm4675, %v4664, %v4589
    %v4679 = vsel %vm4675, %v4666, %v4591
    %v4680 = vsel %vm4675, %v4668, %v4593
    %v4681 = vsel %vm4675, %v4670, %v4595
    %v4682 = vsel %vm4675, %v4672, %v4597
    %v4683 = vsel %vm4675, %v4674, %v4599
    %vm4684 = vcmask 998400
    %v4686 = vsel %vm4684, %v4676, 0
    %v4688 = vsel %vm4684, %v4677, 0
    %v4690 = vsel %vm4684, %v4678, 0
    %v4692 = vsel %vm4684, %v4679, 0
    %v4694 = vsel %vm4684, %v4680, 0
    %v4696 = vsel %vm4684, %v4681, 0
    %v4698 = vsel %vm4684, %v4682, 0
    %v4700 = vsel %vm4684, %v4683, 0
    %v4702 = vperm.slane %v1086, 2
    %v4719 = vunpack.c.l.b16 %v1062
    %v4720 = vunpack.c.l.b16 %v1063
    %v4721 = vunpack.c.l.b16 %v1064
    %v4722 = vunpack.c.l.b16 %v1065
    %v4723 = vunpack.c.l.b16 %v1066
    %v4724 = vunpack.c.l.b16 %v1067
    %v4725 = vunpack.c.l.b16 %v1068
    %v4726 = vunpack.c.l.b16 %v1069
    %v4727 = vunpack.c.l.b16 %v1070
    %v4728 = vunpack.c.l.b16 %v1071
    %v4729 = vunpack.c.l.b16 %v1072
    %v4730 = vunpack.c.l.b16 %v1073
    %v4731 = vunpack.c.l.b16 %v1074
    %v4732 = vunpack.c.l.b16 %v1075
    %v4733 = vunpack.c.l.b16 %v1076
    %v4734 = vunpack.c.l.b16 %v1077
    %v4735 = vpack.c.b16 %v4720, %v4719
    %v4736 = vpack.c.b16 %v4722, %v4721
    %v4737 = vpack.c.b16 %v4724, %v4723
    %v4738 = vpack.c.b16 %v4726, %v4725
    %v4739 = vpack.c.b16 %v4728, %v4727
    %v4740 = vpack.c.b16 %v4730, %v4729
    %v4741 = vpack.c.b16 %v4732, %v4731
    %v4742 = vpack.c.b16 %v4734, %v4733
    %4751 = vmatpush.bf16.msra.mxu0 %v4742
    %4752 = vmatpush.bf16.msra.mxu0 %v4741
    %4753 = vmatpush.bf16.msra.mxu0 %v4740
    %4754 = vmatpush.bf16.msra.mxu0 %v4739
    %4755 = vmatpush.bf16.msra.mxu0 %v4738
    %4756 = vmatpush.bf16.msra.mxu0 %v4737
    %4757 = vmatpush.bf16.msra.mxu0 %v4736
    %4758 = vmatpush.bf16.msra.mxu0 %v4735
    %4759 = vmatmul.bf16.gmra.mxu0 %v4686
    %v4760 = vpop.f32.mrf.mxu0
    %v4761 = vadd.f32 %v4702, %v4760
    %v4762 = vpop.f32.mrf.mxu0
    %v4763 = vadd.f32 %v4702, %v4762
    %4764 = vmatmul.bf16.gmra.mxu0 %v4688
    %v4765 = vpop.f32.mrf.mxu0
    %v4766 = vadd.f32 %v4702, %v4765
    %v4767 = vpop.f32.mrf.mxu0
    %v4768 = vadd.f32 %v4702, %v4767
    %4769 = vmatmul.bf16.gmra.mxu0 %v4690
    %v4770 = vpop.f32.mrf.mxu0
    %v4771 = vadd.f32 %v4702, %v4770
    %v4772 = vpop.f32.mrf.mxu0
    %v4773 = vadd.f32 %v4702, %v4772
    %4774 = vmatmul.bf16.gmra.mxu0 %v4692
    %v4775 = vpop.f32.mrf.mxu0
    %v4776 = vadd.f32 %v4702, %v4775
    %v4777 = vpop.f32.mrf.mxu0
    %v4778 = vadd.f32 %v4702, %v4777
    %4779 = vmatmul.bf16.gmra.mxu0 %v4694
    %v4780 = vpop.f32.mrf.mxu0
    %v4781 = vadd.f32 %v4702, %v4780
    %v4782 = vpop.f32.mrf.mxu0
    %v4783 = vadd.f32 %v4702, %v4782
    %4784 = vmatmul.bf16.gmra.mxu0 %v4696
    %v4785 = vpop.f32.mrf.mxu0
    %v4786 = vadd.f32 %v4702, %v4785
    %v4787 = vpop.f32.mrf.mxu0
    %v4788 = vadd.f32 %v4702, %v4787
    %4789 = vmatmul.bf16.gmra.mxu0 %v4698
    %v4790 = vpop.f32.mrf.mxu0
    %v4791 = vadd.f32 %v4702, %v4790
    %v4792 = vpop.f32.mrf.mxu0
    %v4793 = vadd.f32 %v4702, %v4792
    %4794 = vmatmul.bf16.gmra.mxu0 %v4700
    %v4795 = vpop.f32.mrf.mxu0
    %v4796 = vadd.f32 %v4702, %v4795
    %v4797 = vpop.f32.mrf.mxu0
    %v4798 = vadd.f32 %v4702, %v4797
    %4799 = vdwg.mxu0
    %v4800 = vmax.f32 %v4761, 0.0
    %v4801 = vmax.f32 %v4763, 0.0
    %v4802 = vmax.f32 %v4766, 0.0
    %v4803 = vmax.f32 %v4768, 0.0
    %v4804 = vmax.f32 %v4771, 0.0
    %v4805 = vmax.f32 %v4773, 0.0
    %v4806 = vmax.f32 %v4776, 0.0
    %v4807 = vmax.f32 %v4778, 0.0
    %v4808 = vmax.f32 %v4781, 0.0
    %v4809 = vmax.f32 %v4783, 0.0
    %v4810 = vmax.f32 %v4786, 0.0
    %v4811 = vmax.f32 %v4788, 0.0
    %v4812 = vmax.f32 %v4791, 0.0
    %v4813 = vmax.f32 %v4793, 0.0
    %v4814 = vmax.f32 %v4796, 0.0
    %v4815 = vmax.f32 %v4798, 0.0
    %v4816 = vpack.c.bf16 %v4801, %v4800
    %v4817 = vpack.c.bf16 %v4803, %v4802
    %v4818 = vpack.c.bf16 %v4805, %v4804
    %v4819 = vpack.c.bf16 %v4807, %v4806
    %v4820 = vpack.c.bf16 %v4809, %v4808
    %v4821 = vpack.c.bf16 %v4811, %v4810
    %v4822 = vpack.c.bf16 %v4813, %v4812
    %v4823 = vpack.c.bf16 %v4815, %v4814
    %v4824 = vperm.slane %v1086, 3
    %v4829 = vunpack.c.l.b16 %v1078
    %v4830 = vunpack.c.l.b16 %v1079
    %v4831 = vunpack.c.l.b16 %v1080
    %v4832 = vunpack.c.l.b16 %v1081
    %v4833 = vpack.c.b16 %v4830, %v4829
    %v4834 = vpack.c.b16 %v4832, %v4831
    %v4838 = vsel %vm1429, %v4816, 0
    %v4841 = vsel %vm1429, %v4817, 0
    %v4844 = vsel %vm1429, %v4818, 0
    %v4847 = vsel %vm1429, %v4819, 0
    %v4850 = vsel %vm1429, %v4820, 0
    %v4853 = vsel %vm1429, %v4821, 0
    %v4856 = vsel %vm1429, %v4822, 0
    %v4859 = vsel %vm1429, %v4823, 0
    %4861 = vmatpush.bf16.msra.mxu0 0
    %4862 = vmatpush.bf16.msra.mxu0 0
    %4863 = vmatpush.bf16.msra.mxu0 0
    %4864 = vmatpush.bf16.msra.mxu0 0
    %4865 = vmatpush.bf16.msra.mxu0 0
    %4866 = vmatpush.bf16.msra.mxu0 0
    %4867 = vmatpush.bf16.msra.mxu0 %v4834
    %4868 = vmatpush.bf16.msra.mxu0 %v4833
    %4869 = vmatmul.bf16.gmra.mxu0 %v4838
    %v4870 = vpop.f32.mrf.mxu0
    %v4871 = vadd.f32 %v4824, %v4870
    %v4872 = vpop.f32.mrf.mxu0
    %v4873 = vadd.f32 %v4824, %v4872
    %4874 = vmatmul.bf16.gmra.mxu0 %v4841
    %v4875 = vpop.f32.mrf.mxu0
    %v4876 = vadd.f32 %v4824, %v4875
    %v4877 = vpop.f32.mrf.mxu0
    %v4878 = vadd.f32 %v4824, %v4877
    %4879 = vmatmul.bf16.gmra.mxu0 %v4844
    %v4880 = vpop.f32.mrf.mxu0
    %v4881 = vadd.f32 %v4824, %v4880
    %v4882 = vpop.f32.mrf.mxu0
    %v4883 = vadd.f32 %v4824, %v4882
    %4884 = vmatmul.bf16.gmra.mxu0 %v4847
    %v4885 = vpop.f32.mrf.mxu0
    %v4886 = vadd.f32 %v4824, %v4885
    %v4887 = vpop.f32.mrf.mxu0
    %v4888 = vadd.f32 %v4824, %v4887
    %4889 = vmatmul.bf16.gmra.mxu0 %v4850
    %v4890 = vpop.f32.mrf.mxu0
    %v4891 = vadd.f32 %v4824, %v4890
    %v4892 = vpop.f32.mrf.mxu0
    %v4893 = vadd.f32 %v4824, %v4892
    %4894 = vmatmul.bf16.gmra.mxu0 %v4853
    %v4895 = vpop.f32.mrf.mxu0
    %v4896 = vadd.f32 %v4824, %v4895
    %v4897 = vpop.f32.mrf.mxu0
    %v4898 = vadd.f32 %v4824, %v4897
    %4899 = vmatmul.bf16.gmra.mxu0 %v4856
    %v4900 = vpop.f32.mrf.mxu0
    %v4901 = vadd.f32 %v4824, %v4900
    %v4902 = vpop.f32.mrf.mxu0
    %v4903 = vadd.f32 %v4824, %v4902
    %4904 = vmatmul.bf16.gmra.mxu0 %v4859
    %v4905 = vpop.f32.mrf.mxu0
    %v4906 = vadd.f32 %v4824, %v4905
    %v4907 = vpop.f32.mrf.mxu0
    %v4908 = vadd.f32 %v4824, %v4907
    %4909 = vdwg.mxu0
    %v4910 = vmax.f32 %v4871, 0.0
    %v4911 = vmax.f32 %v4873, 0.0
    %v4912 = vmax.f32 %v4876, 0.0
    %v4913 = vmax.f32 %v4878, 0.0
    %v4914 = vmax.f32 %v4881, 0.0
    %v4915 = vmax.f32 %v4883, 0.0
    %v4916 = vmax.f32 %v4886, 0.0
    %v4917 = vmax.f32 %v4888, 0.0
    %v4918 = vmax.f32 %v4891, 0.0
    %v4919 = vmax.f32 %v4893, 0.0
    %v4920 = vmax.f32 %v4896, 0.0
    %v4921 = vmax.f32 %v4898, 0.0
    %v4922 = vmax.f32 %v4901, 0.0
    %v4923 = vmax.f32 %v4903, 0.0
    %v4924 = vmax.f32 %v4906, 0.0
    %v4925 = vmax.f32 %v4908, 0.0
    %v4926 = vpack.c.bf16 %v4911, %v4910
    %v4927 = vpack.c.bf16 %v4913, %v4912
    %v4928 = vpack.c.bf16 %v4915, %v4914
    %v4929 = vpack.c.bf16 %v4917, %v4916
    %v4930 = vpack.c.bf16 %v4919, %v4918
    %v4931 = vpack.c.bf16 %v4921, %v4920
    %v4932 = vpack.c.bf16 %v4923, %v4922
    %v4933 = vpack.c.bf16 %v4925, %v4924
    %v4934 = vperm.slane %v1086, 4
    %v4939 = vunpack.c.l.b16 %v1082
    %v4940 = vunpack.c.l.b16 %v1083
    %v4941 = vunpack.c.l.b16 %v1084
    %v4942 = vunpack.c.l.b16 %v1085
    %v4943 = vpack.c.b16 %v4940, %v4939
    %v4944 = vpack.c.b16 %v4942, %v4941
    %v4948 = vsel %vm1429, %v4926, 0
    %v4951 = vsel %vm1429, %v4927, 0
    %v4954 = vsel %vm1429, %v4928, 0
    %v4957 = vsel %vm1429, %v4929, 0
    %v4960 = vsel %vm1429, %v4930, 0
    %v4963 = vsel %vm1429, %v4931, 0
    %v4966 = vsel %vm1429, %v4932, 0
    %v4969 = vsel %vm1429, %v4933, 0
    %4971 = vmatpush.bf16.msra.mxu0 0
    %4972 = vmatpush.bf16.msra.mxu0 0
    %4973 = vmatpush.bf16.msra.mxu0 0
    %4974 = vmatpush.bf16.msra.mxu0 0
    %4975 = vmatpush.bf16.msra.mxu0 0
    %4976 = vmatpush.bf16.msra.mxu0 0
    %4977 = vmatpush.bf16.msra.mxu0 %v4944
    %4978 = vmatpush.bf16.msra.mxu0 %v4943
    %4979 = vmatmul.bf16.gmra.mxu0 %v4948
    %v4980 = vpop.f32.mrf.mxu0
    %v4981 = vadd.f32 %v4934, %v4980
    %v4982 = vpop.f32.mrf.mxu0
    %v4983 = vadd.f32 %v4934, %v4982
    %4984 = vmatmul.bf16.gmra.mxu0 %v4951
    %v4985 = vpop.f32.mrf.mxu0
    %v4986 = vadd.f32 %v4934, %v4985
    %v4987 = vpop.f32.mrf.mxu0
    %v4988 = vadd.f32 %v4934, %v4987
    %4989 = vmatmul.bf16.gmra.mxu0 %v4954
    %v4990 = vpop.f32.mrf.mxu0
    %v4991 = vadd.f32 %v4934, %v4990
    %v4992 = vpop.f32.mrf.mxu0
    %v4993 = vadd.f32 %v4934, %v4992
    %4994 = vmatmul.bf16.gmra.mxu0 %v4957
    %v4995 = vpop.f32.mrf.mxu0
    %v4996 = vadd.f32 %v4934, %v4995
    %v4997 = vpop.f32.mrf.mxu0
    %v4998 = vadd.f32 %v4934, %v4997
    %4999 = vmatmul.bf16.gmra.mxu0 %v4960
    %v5000 = vpop.f32.mrf.mxu0
    %v5001 = vadd.f32 %v4934, %v5000
    %v5002 = vpop.f32.mrf.mxu0
    %v5003 = vadd.f32 %v4934, %v5002
    %5004 = vmatmul.bf16.gmra.mxu0 %v4963
    %v5005 = vpop.f32.mrf.mxu0
    %v5006 = vadd.f32 %v4934, %v5005
    %v5007 = vpop.f32.mrf.mxu0
    %v5008 = vadd.f32 %v4934, %v5007
    %5009 = vmatmul.bf16.gmra.mxu0 %v4966
    %v5010 = vpop.f32.mrf.mxu0
    %v5011 = vadd.f32 %v4934, %v5010
    %v5012 = vpop.f32.mrf.mxu0
    %v5013 = vadd.f32 %v4934, %v5012
    %5014 = vmatmul.bf16.gmra.mxu0 %v4969
    %v5015 = vpop.f32.mrf.mxu0
    %v5016 = vadd.f32 %v4934, %v5015
    %v5017 = vpop.f32.mrf.mxu0
    %v5018 = vadd.f32 %v4934, %v5017
    %5019 = vdwg.mxu0
    %5020 = vset.pattern.permute.xlu0 49
    %5021 = vperm.xlu0 %5020, %v22
    %v5022 = vpop.permute.xlu0 %5021
    %5024 = vset.pattern.permute.xlu0 49
    %5025 = vperm.xlu0 %5024, %v23
    %v5026 = vpop.permute.xlu0 %5025
    %5028 = vset.pattern.permute.xlu0 49
    %5029 = vperm.xlu0 %5028, %v24
    %v5030 = vpop.permute.xlu0 %5029
    %5032 = vset.pattern.permute.xlu0 49
    %5033 = vperm.xlu0 %5032, %v25
    %v5034 = vpop.permute.xlu0 %5033
    %5036 = vset.pattern.permute.xlu0 49
    %5037 = vperm.xlu0 %5036, %v26
    %v5038 = vpop.permute.xlu0 %5037
    %5040 = vset.pattern.permute.xlu0 49
    %5041 = vperm.xlu0 %5040, %v27
    %v5042 = vpop.permute.xlu0 %5041
    %5044 = vset.pattern.permute.xlu0 49
    %5045 = vperm.xlu0 %5044, %v28
    %v5046 = vpop.permute.xlu0 %5045
    %5048 = vset.pattern.permute.xlu0 49
    %5049 = vperm.xlu0 %5048, %v29
    %v5050 = vpop.permute.xlu0 %5049
    %5052 = vset.pattern.permute.xlu0 49
    %5053 = vperm.xlu0 %5052, %v30
    %v5054 = vpop.permute.xlu0 %5053
    %5056 = vset.pattern.permute.xlu0 49
    %5057 = vperm.xlu0 %5056, %v31
    %v5058 = vpop.permute.xlu0 %5057
    %5060 = vset.pattern.permute.xlu0 49
    %5061 = vperm.xlu0 %5060, %v32
    %v5062 = vpop.permute.xlu0 %5061
    %5064 = vset.pattern.permute.xlu0 49
    %5065 = vperm.xlu0 %5064, %v33
    %v5066 = vpop.permute.xlu0 %5065
    %5068 = vset.pattern.permute.xlu0 49
    %5069 = vperm.xlu0 %5068, %v34
    %v5070 = vpop.permute.xlu0 %5069
    %5072 = vset.pattern.permute.xlu0 49
    %5073 = vperm.xlu0 %5072, %v35
    %v5074 = vpop.permute.xlu0 %5073
    %5076 = vset.pattern.permute.xlu0 49
    %5077 = vperm.xlu0 %5076, %v36
    %v5078 = vpop.permute.xlu0 %5077
    %5080 = vset.pattern.permute.xlu0 49
    %5081 = vperm.xlu0 %5080, %v37
    %v5082 = vpop.permute.xlu0 %5081
    %v5084 = vmul.f32 %v4981, %v5022
    %v5085 = vmul.f32 %v4983, %v5026
    %v5086 = vmul.f32 %v4986, %v5030
    %v5087 = vmul.f32 %v4988, %v5034
    %v5088 = vmul.f32 %v4991, %v5038
    %v5089 = vmul.f32 %v4993, %v5042
    %v5090 = vmul.f32 %v4996, %v5046
    %v5091 = vmul.f32 %v4998, %v5050
    %v5092 = vmul.f32 %v5001, %v5054
    %v5093 = vmul.f32 %v5003, %v5058
    %v5094 = vmul.f32 %v5006, %v5062
    %v5095 = vmul.f32 %v5008, %v5066
    %v5096 = vmul.f32 %v5011, %v5070
    %v5097 = vmul.f32 %v5013, %v5074
    %v5098 = vmul.f32 %v5016, %v5078
    %v5099 = vmul.f32 %v5018, %v5082
    %5104 = vrot.lane.b32.xlu0 %v5088, 32
    %v5105 = vpop.permute.xlu0 %5104
    %5106 = vrot.lane.b32.xlu0 %v5089, 32
    %v5107 = vpop.permute.xlu0 %5106
    %5108 = vrot.lane.b32.xlu0 %v5090, 32
    %v5109 = vpop.permute.xlu0 %5108
    %5110 = vrot.lane.b32.xlu0 %v5091, 32
    %v5111 = vpop.permute.xlu0 %5110
    %5120 = vrot.lane.b32.xlu0 %v5092, 64
    %v5121 = vpop.permute.xlu0 %5120
    %5122 = vrot.lane.b32.xlu0 %v5093, 64
    %v5123 = vpop.permute.xlu0 %5122
    %5124 = vrot.lane.b32.xlu0 %v5094, 64
    %v5125 = vpop.permute.xlu0 %5124
    %5126 = vrot.lane.b32.xlu0 %v5095, 64
    %v5127 = vpop.permute.xlu0 %5126
    %5136 = vrot.lane.b32.xlu0 %v5096, 96
    %v5137 = vpop.permute.xlu0 %5136
    %5138 = vrot.lane.b32.xlu0 %v5097, 96
    %v5139 = vpop.permute.xlu0 %5138
    %5140 = vrot.lane.b32.xlu0 %v5098, 96
    %v5141 = vpop.permute.xlu0 %5140
    %5142 = vrot.lane.b32.xlu0 %v5099, 96
    %v5143 = vpop.permute.xlu0 %5142
    %v5148 = vsel %vm1429, %v5084, %v5105
    %v5149 = vsel %vm1429, %v5085, %v5107
    %v5150 = vsel %vm1429, %v5086, %v5109
    %v5151 = vsel %vm1429, %v5087, %v5111
    %v5152 = vsel %vm4624, %v5148, %v5121
    %v5153 = vsel %vm4624, %v5149, %v5123
    %v5154 = vsel %vm4624, %v5150, %v5125
    %v5155 = vsel %vm4624, %v5151, %v5127
    %v5156 = vsel %vm4641, %v5152, %v5137
    %v5157 = vsel %vm4641, %v5153, %v5139
    %v5158 = vsel %vm4641, %v5154, %v5141
    %v5159 = vsel %vm4641, %v5155, %v5143
    %5160 = vst [vmem:[#allocation2] sm:$0xff] %v5156
    %5161 = vst [vmem:[#allocation2 + $0x8] sm:$0xff] %v5157
    %5162 = vst [vmem:[#allocation2 + $0x10] sm:$0xff] %v5158
    %5163 = vst [vmem:[#allocation2 + $0x18] sm:$0xff] %v5159
    // Predicated region
    $region22: #{tpu_custom_call.1} parent=1 // pred_check
      _
    $region23: #{tpu_custom_call.1} parent=1 // pred_check_branch
      %5165 = sbr.rel (0) target = $region25
    $region24: #{tpu_custom_call.1} parent=1 // pred_region
      %5167 = vsyncadd [#allocation3], 0
      %s5168 = sshll.u32 [#allocation2], 4
      %s5169 = int_to_ptr.vmem [resolvable:$true] %s5168
      %s5170 = sshll.u32 %s5, 4
      %s5171 = int_to_ptr.hbm [resolvable:$true] %s5170
      %5176 = dma.vmem_to_hbm [thread:$0]  %s5169, 512, %s5171, [#allocation3], 128, 128, 8
    $region25: #{tpu_custom_call.1} parent=1 // pred_fallthru
      _
    // Predicated region
    $region26: #{tpu_custom_call.1} parent=1 // pred_check
      _
    $region27: #{tpu_custom_call.1} parent=1 // pred_check_branch
      %5178 = sbr.rel (0) target = $region29
    $region28: #{tpu_custom_call.1} parent=1 // pred_region
      %5180 = dma.done [#allocation3], 512
    $region29: #{tpu_custom_call.1} parent=1 // pred_fallthru
      _
    %5181 = vsyncpa [#allocation3], 1

</llo_original>
